<compile_context>
chip_gen: v6e
topology: v6e:2x2x1
jax: 0.10.0
libtpu: 0.0.40
codegen_flags: <defaults>
</compile_context>

<pallas_src>
import functools
from math import sqrt

import jax
import jax.numpy as jnp
from jax import lax
from jax.experimental import pallas as pl
from jax.experimental.pallas import tpu as pltpu


def _neg_log_sigmoid(z):
    # -log(sigmoid(z)) = log(1 + exp(-|z|)) - min(z, 0)   (numerically stable)
    return jnp.log(1.0 + jnp.exp(-jnp.abs(z))) - jnp.minimum(z, 0.0)


def _sgns_kernel(in_ids_ref, pos_ids_ref, neg_ids_ref,    # scalar prefetch (SMEM)
                 emb_hbm, out_emb_hbm,                     # HBM tables (pl.ANY)
                 out_ref,                                  # (1, TB) output block
                 x_buf, o_buf, dma_sems,                   # scratch
                 *, tile_b, num_neg, clamp):
    kp1 = num_neg + 1
    base = pl.program_id(0) * tile_b

    # ---- fused gather: per-row DMAs from the HBM tables into VMEM -----------
    # o_buf row layout: slot 0 = positive out-embedding, slots 1..K = negatives.
    def issue_row(r, carry):
        row = base + r
        pltpu.make_async_copy(emb_hbm.at[in_ids_ref[row]],
                              x_buf.at[r], dma_sems.at[0]).start()
        pltpu.make_async_copy(out_emb_hbm.at[pos_ids_ref[row]],
                              o_buf.at[r, 0], dma_sems.at[1]).start()
        for k in range(num_neg):
            pltpu.make_async_copy(
                out_emb_hbm.at[neg_ids_ref[row * num_neg + k]],
                o_buf.at[r, k + 1], dma_sems.at[1]).start()
        return carry

    lax.fori_loop(0, tile_b, issue_row, 0)

    # Drain: one wait per issued copy. Every copy of a class has identical
    # byte size, so the semaphore accounting matches exactly (no hang risk).
    def drain_row(r, carry):
        pltpu.make_async_copy(emb_hbm.at[0], x_buf.at[0], dma_sems.at[0]).wait()
        for _ in range(kp1):
            pltpu.make_async_copy(out_emb_hbm.at[0], o_buf.at[0, 0],
                                  dma_sems.at[1]).wait()
        return carry

    lax.fori_loop(0, tile_b, drain_row, 0)

    # ---- compute (always fp32, tables may be bf16 on v5e) --------------------
    x = x_buf[...].astype(jnp.float32)                      # (TB, D)
    o = o_buf[...].astype(jnp.float32)                      # (TB, K+1, D)

    scores = jnp.sum(x[:, None, :] * o, axis=2)             # (TB, K+1)
    # Column 0 keeps +score (positive pair), columns 1..K get -score.
    # clip is symmetric, so sign-then-clip == clip-then-sign (matches PyTorch).
    col = lax.broadcasted_iota(jnp.int32, scores.shape, 1)
    signed = jnp.where(col == 0, scores, -scores)
    clipped = jnp.clip(signed, -clamp, clamp)
    loss = jnp.sum(_neg_log_sigmoid(clipped), axis=1)       # (TB,)

    out_ref[...] = loss[None, :].astype(out_ref.dtype)      # lane-dense (1, TB)


def sgns_forward(in_emb_table, out_emb_table, inputs, positive_outputs,
                 negative_outputs, inner_product_clamp, *, tile_b=128):
    """Pallas implementation of SkipGramWithNegativeSampling.forward."""
    batch = inputs.shape[0]
    num_neg = negative_outputs.shape[1]
    _, emb_dim = in_emb_table.shape

    num_tiles = pl.cdiv(batch, tile_b)
    padded = num_tiles * tile_b
    pad = padded - batch
    # Pad the index arrays (index 0 is always valid); padded rows are discarded.
    in_ids = jnp.pad(inputs.astype(jnp.int32), (0, pad))
    pos_ids = jnp.pad(positive_outputs.astype(jnp.int32), (0, pad))
    neg_ids = jnp.pad(negative_outputs.astype(jnp.int32),
                      ((0, pad), (0, 0))).reshape(-1)

    grid_spec = pltpu.PrefetchScalarGridSpec(
        num_scalar_prefetch=3,
        grid=(num_tiles,),
        in_specs=[pl.BlockSpec(memory_space=pl.ANY),     # in-embedding table
                  pl.BlockSpec(memory_space=pl.ANY)],    # out-embedding table
        out_specs=pl.BlockSpec((1, tile_b), lambda t, *_: (0, t)),
        scratch_shapes=[
            pltpu.VMEM((tile_b, emb_dim), in_emb_table.dtype),
            pltpu.VMEM((tile_b, num_neg + 1, emb_dim), out_emb_table.dtype),
            pltpu.SemaphoreType.DMA((2,)),
        ],
    )

    out = pl.pallas_call(
        functools.partial(_sgns_kernel, tile_b=tile_b, num_neg=num_neg,
                          clamp=float(inner_product_clamp)),
        out_shape=jax.ShapeDtypeStruct((1, padded), jnp.float32),
        grid_spec=grid_spec,
        compiler_params=pltpu.CompilerParams(
            dimension_semantics=("parallel",)),
    )(in_ids, pos_ids, neg_ids, in_emb_table, out_emb_table)

    return out.reshape(padded)[:batch]


def sgns_reference(in_emb_table, out_emb_table, inputs, positive_outputs,
                   negative_outputs, inner_product_clamp):
    """Pure-JAX reference mirroring the PyTorch forward."""
    x = jnp.take(in_emb_table, inputs, axis=0)
    p = jnp.take(out_emb_table, positive_outputs, axis=0)
    n = jnp.take(out_emb_table, negative_outputs, axis=0)
    c = float(inner_product_clamp)
    pos_score = jnp.clip(jnp.sum(x * p, axis=1), -c, c)
    pos_loss = -jax.nn.log_sigmoid(pos_score)
    neg_scores = jnp.clip(jnp.sum(x[:, None, :] * n, axis=2), -c, c)
    neg_loss = jnp.sum(-jax.nn.log_sigmoid(-neg_scores), axis=1)
    return pos_loss + neg_loss


if __name__ == "__main__":
    # Module-consistent shapes; batch/tile chosen so the lane-dense output
    # blocks are 128-wide and the grid has more than one (parallel) step.
    vocab_size = 64
    embedding_dim = 128
    context_size = 2            # unused by forward()
    num_negative_samples = 8
    inner_product_clamp = 2.0
    batch = 256
    tile_b = 128                # per-tile batch rows; size up per TPU gen VMEM

    key = jax.random.PRNGKey(0)
    k_in, k_out, k_i, k_p, k_n = jax.random.split(key, 5)

    # Deterministic init: uniform(-1/sqrt(D), 1/sqrt(D)), like the module.
    max_w = 1.0 / sqrt(embedding_dim)
    embeddings = jax.random.uniform(
        k_in, (vocab_size, embedding_dim), jnp.float32, -max_w, max_w)
    out_embeddings = jax.random.uniform(
        k_out, (vocab_size, embedding_dim), jnp.float32, -max_w, max_w)

    inputs = jax.random.randint(k_i, (batch,), 0, vocab_size, jnp.int32)
    positive_outputs = jax.random.randint(k_p, (batch,), 0, vocab_size, jnp.int32)
    negative_outputs = jax.random.randint(
        k_n, (batch, num_negative_samples), 0, vocab_size, jnp.int32)

    result = sgns_forward(embeddings, out_embeddings, inputs,
                          positive_outputs, negative_outputs,
                          inner_product_clamp, tile_b=tile_b)
    result = jax.block_until_ready(result)

    expected = sgns_reference(embeddings, out_embeddings, inputs,
                              positive_outputs, negative_outputs,
                              inner_product_clamp)
    assert result.shape == (batch,)
    assert jnp.allclose(result, expected, atol=1e-4, rtol=1e-5), (
        float(jnp.max(jnp.abs(result - expected))))

    print("KERNEL_OK")
</pallas_src>

<mosaic_0001>
module attributes {stable_mosaic.version = 11 : i64} {
  func.func @_sgns_kernel(%arg0: i32, %arg1: memref<256xi32, #tpu.memory_space<smem>>, %arg2: memref<256xi32, #tpu.memory_space<smem>>, %arg3: memref<2048xi32, #tpu.memory_space<smem>>, %arg4: memref<64x128xf32, #tpu.memory_space<any>>, %arg5: memref<64x128xf32, #tpu.memory_space<any>>, %arg6: memref<1x128xf32, #tpu.memory_space<vmem>>, %arg7: memref<128x128xf32, #tpu.memory_space<vmem>>, %arg8: memref<128x9x128xf32, #tpu.memory_space<vmem>>, %arg9: memref<2x!tpu.dma_semaphore, #tpu.memory_space<semaphore_mem>>) attributes {dimension_semantics = [#tpu.dimension_semantics<parallel>], iteration_bounds = array<i64: 2>, scalar_prefetch = 3 : i64, scratch_operands = 3 : i64, tpu.core_type = #tpu.core_type<tc>, window_params = [{}, {}, {transform_indices = @transform_2, window_bounds = array<i64: 1, 128>}]} {
    %c128_i32 = arith.constant 128 : i32
    %0 = arith.muli %arg0, %c128_i32 : i32
    %c0_i32 = arith.constant 0 : i32
    %c128_i32_0 = arith.constant 128 : i32
    %1 = arith.addi %c0_i32, %c128_i32_0 : i32
    %c1_i32 = arith.constant 1 : i32
    scf.for %arg10 = %c0_i32 to %1 step %c1_i32  : i32 {
      %32 = arith.addi %0, %arg10 : i32
      %33 = arith.index_cast %32 : i32 to index
      %34 = memref.load %arg1[%33] : memref<256xi32, #tpu.memory_space<smem>>
      %c0_i32_19 = arith.constant 0 : i32
      %c0_i32_20 = arith.constant 0 : i32
      %35 = tpu.memref_slice %arg4[%34, %c0_i32_20] : memref<64x128xf32, #tpu.memory_space<any>> -> memref<1x128xf32, #tpu.memory_space<any>>
      %36 = tpu.memref_squeeze %35 : memref<1x128xf32, #tpu.memory_space<any>> -> memref<128xf32, #tpu.memory_space<any>>
      %c0_i32_21 = arith.constant 0 : i32
      %37 = tpu.memref_slice %arg7[%arg10, %c0_i32_21] : memref<128x128xf32, #tpu.memory_space<vmem>> -> memref<1x128xf32, #tpu.memory_space<vmem>>
      %38 = tpu.memref_squeeze %37 : memref<1x128xf32, #tpu.memory_space<vmem>> -> memref<128xf32, #tpu.memory_space<vmem>>
      %39 = tpu.memref_slice %arg9[%c0_i32_19] : memref<2x!tpu.dma_semaphore, #tpu.memory_space<semaphore_mem>> -> memref<1x!tpu.dma_semaphore, #tpu.memory_space<semaphore_mem>>
      %40 = tpu.memref_squeeze %39 : memref<1x!tpu.dma_semaphore, #tpu.memory_space<semaphore_mem>> -> memref<!tpu.dma_semaphore, #tpu.memory_space<semaphore_mem>>
      tpu.enqueue_dma source(%36 : memref<128xf32, #tpu.memory_space<any>>) target(%38 : memref<128xf32, #tpu.memory_space<vmem>>) target_semaphore(%40 : memref<!tpu.dma_semaphore, #tpu.memory_space<semaphore_mem>>)
      %41 = arith.index_cast %32 : i32 to index
      %42 = memref.load %arg2[%41] : memref<256xi32, #tpu.memory_space<smem>>
      %c0_i32_22 = arith.constant 0 : i32
      %c1_i32_23 = arith.constant 1 : i32
      %c0_i32_24 = arith.constant 0 : i32
      %43 = tpu.memref_slice %arg5[%42, %c0_i32_24] : memref<64x128xf32, #tpu.memory_space<any>> -> memref<1x128xf32, #tpu.memory_space<any>>
      %44 = tpu.memref_squeeze %43 : memref<1x128xf32, #tpu.memory_space<any>> -> memref<128xf32, #tpu.memory_space<any>>
      %c0_i32_25 = arith.constant 0 : i32
      %45 = tpu.memref_slice %arg8[%arg10, %c0_i32_22, %c0_i32_25] : memref<128x9x128xf32, #tpu.memory_space<vmem>> -> memref<1x1x128xf32, #tpu.memory_space<vmem>>
      %46 = tpu.memref_squeeze %45 : memref<1x1x128xf32, #tpu.memory_space<vmem>> -> memref<128xf32, #tpu.memory_space<vmem>>
      %47 = tpu.memref_slice %arg9[%c1_i32_23] : memref<2x!tpu.dma_semaphore, #tpu.memory_space<semaphore_mem>> -> memref<1x!tpu.dma_semaphore, #tpu.memory_space<semaphore_mem>>
      %48 = tpu.memref_squeeze %47 : memref<1x!tpu.dma_semaphore, #tpu.memory_space<semaphore_mem>> -> memref<!tpu.dma_semaphore, #tpu.memory_space<semaphore_mem>>
      tpu.enqueue_dma source(%44 : memref<128xf32, #tpu.memory_space<any>>) target(%46 : memref<128xf32, #tpu.memory_space<vmem>>) target_semaphore(%48 : memref<!tpu.dma_semaphore, #tpu.memory_space<semaphore_mem>>)
      %c8_i32 = arith.constant 8 : i32
      %49 = arith.muli %32, %c8_i32 : i32
      %c0_i32_26 = arith.constant 0 : i32
      %50 = arith.addi %49, %c0_i32_26 : i32
      %51 = arith.index_cast %50 : i32 to index
      %52 = memref.load %arg3[%51] : memref<2048xi32, #tpu.memory_space<smem>>
      %c1_i32_27 = arith.constant 1 : i32
      %c1_i32_28 = arith.constant 1 : i32
      %c0_i32_29 = arith.constant 0 : i32
      %53 = tpu.memref_slice %arg5[%52, %c0_i32_29] : memref<64x128xf32, #tpu.memory_space<any>> -> memref<1x128xf32, #tpu.memory_space<any>>
      %54 = tpu.memref_squeeze %53 : memref<1x128xf32, #tpu.memory_space<any>> -> memref<128xf32, #tpu.memory_space<any>>
      %c0_i32_30 = arith.constant 0 : i32
      %55 = tpu.memref_slice %arg8[%arg10, %c1_i32_27, %c0_i32_30] : memref<128x9x128xf32, #tpu.memory_space<vmem>> -> memref<1x1x128xf32, #tpu.memory_space<vmem>>
      %56 = tpu.memref_squeeze %55 : memref<1x1x128xf32, #tpu.memory_space<vmem>> -> memref<128xf32, #tpu.memory_space<vmem>>
      %57 = tpu.memref_slice %arg9[%c1_i32_28] : memref<2x!tpu.dma_semaphore, #tpu.memory_space<semaphore_mem>> -> memref<1x!tpu.dma_semaphore, #tpu.memory_space<semaphore_mem>>
      %58 = tpu.memref_squeeze %57 : memref<1x!tpu.dma_semaphore, #tpu.memory_space<semaphore_mem>> -> memref<!tpu.dma_semaphore, #tpu.memory_space<semaphore_mem>>
      tpu.enqueue_dma source(%54 : memref<128xf32, #tpu.memory_space<any>>) target(%56 : memref<128xf32, #tpu.memory_space<vmem>>) target_semaphore(%58 : memref<!tpu.dma_semaphore, #tpu.memory_space<semaphore_mem>>)
      %c8_i32_31 = arith.constant 8 : i32
      %59 = arith.muli %32, %c8_i32_31 : i32
      %c1_i32_32 = arith.constant 1 : i32
      %60 = arith.addi %59, %c1_i32_32 : i32
      %61 = arith.index_cast %60 : i32 to index
      %62 = memref.load %arg3[%61] : memref<2048xi32, #tpu.memory_space<smem>>
      %c2_i32 = arith.constant 2 : i32
      %c1_i32_33 = arith.constant 1 : i32
      %c0_i32_34 = arith.constant 0 : i32
      %63 = tpu.memref_slice %arg5[%62, %c0_i32_34] : memref<64x128xf32, #tpu.memory_space<any>> -> memref<1x128xf32, #tpu.memory_space<any>>
      %64 = tpu.memref_squeeze %63 : memref<1x128xf32, #tpu.memory_space<any>> -> memref<128xf32, #tpu.memory_space<any>>
      %c0_i32_35 = arith.constant 0 : i32
      %65 = tpu.memref_slice %arg8[%arg10, %c2_i32, %c0_i32_35] : memref<128x9x128xf32, #tpu.memory_space<vmem>> -> memref<1x1x128xf32, #tpu.memory_space<vmem>>
      %66 = tpu.memref_squeeze %65 : memref<1x1x128xf32, #tpu.memory_space<vmem>> -> memref<128xf32, #tpu.memory_space<vmem>>
      %67 = tpu.memref_slice %arg9[%c1_i32_33] : memref<2x!tpu.dma_semaphore, #tpu.memory_space<semaphore_mem>> -> memref<1x!tpu.dma_semaphore, #tpu.memory_space<semaphore_mem>>
      %68 = tpu.memref_squeeze %67 : memref<1x!tpu.dma_semaphore, #tpu.memory_space<semaphore_mem>> -> memref<!tpu.dma_semaphore, #tpu.memory_space<semaphore_mem>>
      tpu.enqueue_dma source(%64 : memref<128xf32, #tpu.memory_space<any>>) target(%66 : memref<128xf32, #tpu.memory_space<vmem>>) target_semaphore(%68 : memref<!tpu.dma_semaphore, #tpu.memory_space<semaphore_mem>>)
      %c8_i32_36 = arith.constant 8 : i32
      %69 = arith.muli %32, %c8_i32_36 : i32
      %c2_i32_37 = arith.constant 2 : i32
      %70 = arith.addi %69, %c2_i32_37 : i32
      %71 = arith.index_cast %70 : i32 to index
      %72 = memref.load %arg3[%71] : memref<2048xi32, #tpu.memory_space<smem>>
      %c3_i32 = arith.constant 3 : i32
      %c1_i32_38 = arith.constant 1 : i32
      %c0_i32_39 = arith.constant 0 : i32
      %73 = tpu.memref_slice %arg5[%72, %c0_i32_39] : memref<64x128xf32, #tpu.memory_space<any>> -> memref<1x128xf32, #tpu.memory_space<any>>
      %74 = tpu.memref_squeeze %73 : memref<1x128xf32, #tpu.memory_space<any>> -> memref<128xf32, #tpu.memory_space<any>>
      %c0_i32_40 = arith.constant 0 : i32
      %75 = tpu.memref_slice %arg8[%arg10, %c3_i32, %c0_i32_40] : memref<128x9x128xf32, #tpu.memory_space<vmem>> -> memref<1x1x128xf32, #tpu.memory_space<vmem>>
      %76 = tpu.memref_squeeze %75 : memref<1x1x128xf32, #tpu.memory_space<vmem>> -> memref<128xf32, #tpu.memory_space<vmem>>
      %77 = tpu.memref_slice %arg9[%c1_i32_38] : memref<2x!tpu.dma_semaphore, #tpu.memory_space<semaphore_mem>> -> memref<1x!tpu.dma_semaphore, #tpu.memory_space<semaphore_mem>>
      %78 = tpu.memref_squeeze %77 : memref<1x!tpu.dma_semaphore, #tpu.memory_space<semaphore_mem>> -> memref<!tpu.dma_semaphore, #tpu.memory_space<semaphore_mem>>
      tpu.enqueue_dma source(%74 : memref<128xf32, #tpu.memory_space<any>>) target(%76 : memref<128xf32, #tpu.memory_space<vmem>>) target_semaphore(%78 : memref<!tpu.dma_semaphore, #tpu.memory_space<semaphore_mem>>)
      %c8_i32_41 = arith.constant 8 : i32
      %79 = arith.muli %32, %c8_i32_41 : i32
      %c3_i32_42 = arith.constant 3 : i32
      %80 = arith.addi %79, %c3_i32_42 : i32
      %81 = arith.index_cast %80 : i32 to index
      %82 = memref.load %arg3[%81] : memref<2048xi32, #tpu.memory_space<smem>>
      %c4_i32 = arith.constant 4 : i32
      %c1_i32_43 = arith.constant 1 : i32
      %c0_i32_44 = arith.constant 0 : i32
      %83 = tpu.memref_slice %arg5[%82, %c0_i32_44] : memref<64x128xf32, #tpu.memory_space<any>> -> memref<1x128xf32, #tpu.memory_space<any>>
      %84 = tpu.memref_squeeze %83 : memref<1x128xf32, #tpu.memory_space<any>> -> memref<128xf32, #tpu.memory_space<any>>
      %c0_i32_45 = arith.constant 0 : i32
      %85 = tpu.memref_slice %arg8[%arg10, %c4_i32, %c0_i32_45] : memref<128x9x128xf32, #tpu.memory_space<vmem>> -> memref<1x1x128xf32, #tpu.memory_space<vmem>>
      %86 = tpu.memref_squeeze %85 : memref<1x1x128xf32, #tpu.memory_space<vmem>> -> memref<128xf32, #tpu.memory_space<vmem>>
      %87 = tpu.memref_slice %arg9[%c1_i32_43] : memref<2x!tpu.dma_semaphore, #tpu.memory_space<semaphore_mem>> -> memref<1x!tpu.dma_semaphore, #tpu.memory_space<semaphore_mem>>
      %88 = tpu.memref_squeeze %87 : memref<1x!tpu.dma_semaphore, #tpu.memory_space<semaphore_mem>> -> memref<!tpu.dma_semaphore, #tpu.memory_space<semaphore_mem>>
      tpu.enqueue_dma source(%84 : memref<128xf32, #tpu.memory_space<any>>) target(%86 : memref<128xf32, #tpu.memory_space<vmem>>) target_semaphore(%88 : memref<!tpu.dma_semaphore, #tpu.memory_space<semaphore_mem>>)
      %c8_i32_46 = arith.constant 8 : i32
      %89 = arith.muli %32, %c8_i32_46 : i32
      %c4_i32_47 = arith.constant 4 : i32
      %90 = arith.addi %89, %c4_i32_47 : i32
      %91 = arith.index_cast %90 : i32 to index
      %92 = memref.load %arg3[%91] : memref<2048xi32, #tpu.memory_space<smem>>
      %c5_i32 = arith.constant 5 : i32
      %c1_i32_48 = arith.constant 1 : i32
      %c0_i32_49 = arith.constant 0 : i32
      %93 = tpu.memref_slice %arg5[%92, %c0_i32_49] : memref<64x128xf32, #tpu.memory_space<any>> -> memref<1x128xf32, #tpu.memory_space<any>>
      %94 = tpu.memref_squeeze %93 : memref<1x128xf32, #tpu.memory_space<any>> -> memref<128xf32, #tpu.memory_space<any>>
      %c0_i32_50 = arith.constant 0 : i32
      %95 = tpu.memref_slice %arg8[%arg10, %c5_i32, %c0_i32_50] : memref<128x9x128xf32, #tpu.memory_space<vmem>> -> memref<1x1x128xf32, #tpu.memory_space<vmem>>
      %96 = tpu.memref_squeeze %95 : memref<1x1x128xf32, #tpu.memory_space<vmem>> -> memref<128xf32, #tpu.memory_space<vmem>>
      %97 = tpu.memref_slice %arg9[%c1_i32_48] : memref<2x!tpu.dma_semaphore, #tpu.memory_space<semaphore_mem>> -> memref<1x!tpu.dma_semaphore, #tpu.memory_space<semaphore_mem>>
      %98 = tpu.memref_squeeze %97 : memref<1x!tpu.dma_semaphore, #tpu.memory_space<semaphore_mem>> -> memref<!tpu.dma_semaphore, #tpu.memory_space<semaphore_mem>>
      tpu.enqueue_dma source(%94 : memref<128xf32, #tpu.memory_space<any>>) target(%96 : memref<128xf32, #tpu.memory_space<vmem>>) target_semaphore(%98 : memref<!tpu.dma_semaphore, #tpu.memory_space<semaphore_mem>>)
      %c8_i32_51 = arith.constant 8 : i32
      %99 = arith.muli %32, %c8_i32_51 : i32
      %c5_i32_52 = arith.constant 5 : i32
      %100 = arith.addi %99, %c5_i32_52 : i32
      %101 = arith.index_cast %100 : i32 to index
      %102 = memref.load %arg3[%101] : memref<2048xi32, #tpu.memory_space<smem>>
      %c6_i32 = arith.constant 6 : i32
      %c1_i32_53 = arith.constant 1 : i32
      %c0_i32_54 = arith.constant 0 : i32
      %103 = tpu.memref_slice %arg5[%102, %c0_i32_54] : memref<64x128xf32, #tpu.memory_space<any>> -> memref<1x128xf32, #tpu.memory_space<any>>
      %104 = tpu.memref_squeeze %103 : memref<1x128xf32, #tpu.memory_space<any>> -> memref<128xf32, #tpu.memory_space<any>>
      %c0_i32_55 = arith.constant 0 : i32
      %105 = tpu.memref_slice %arg8[%arg10, %c6_i32, %c0_i32_55] : memref<128x9x128xf32, #tpu.memory_space<vmem>> -> memref<1x1x128xf32, #tpu.memory_space<vmem>>
      %106 = tpu.memref_squeeze %105 : memref<1x1x128xf32, #tpu.memory_space<vmem>> -> memref<128xf32, #tpu.memory_space<vmem>>
      %107 = tpu.memref_slice %arg9[%c1_i32_53] : memref<2x!tpu.dma_semaphore, #tpu.memory_space<semaphore_mem>> -> memref<1x!tpu.dma_semaphore, #tpu.memory_space<semaphore_mem>>
      %108 = tpu.memref_squeeze %107 : memref<1x!tpu.dma_semaphore, #tpu.memory_space<semaphore_mem>> -> memref<!tpu.dma_semaphore, #tpu.memory_space<semaphore_mem>>
      tpu.enqueue_dma source(%104 : memref<128xf32, #tpu.memory_space<any>>) target(%106 : memref<128xf32, #tpu.memory_space<vmem>>) target_semaphore(%108 : memref<!tpu.dma_semaphore, #tpu.memory_space<semaphore_mem>>)
      %c8_i32_56 = arith.constant 8 : i32
      %109 = arith.muli %32, %c8_i32_56 : i32
      %c6_i32_57 = arith.constant 6 : i32
      %110 = arith.addi %109, %c6_i32_57 : i32
      %111 = arith.index_cast %110 : i32 to index
      %112 = memref.load %arg3[%111] : memref<2048xi32, #tpu.memory_space<smem>>
      %c7_i32 = arith.constant 7 : i32
      %c1_i32_58 = arith.constant 1 : i32
      %c0_i32_59 = arith.constant 0 : i32
      %113 = tpu.memref_slice %arg5[%112, %c0_i32_59] : memref<64x128xf32, #tpu.memory_space<any>> -> memref<1x128xf32, #tpu.memory_space<any>>
      %114 = tpu.memref_squeeze %113 : memref<1x128xf32, #tpu.memory_space<any>> -> memref<128xf32, #tpu.memory_space<any>>
      %c0_i32_60 = arith.constant 0 : i32
      %115 = tpu.memref_slice %arg8[%arg10, %c7_i32, %c0_i32_60] : memref<128x9x128xf32, #tpu.memory_space<vmem>> -> memref<1x1x128xf32, #tpu.memory_space<vmem>>
      %116 = tpu.memref_squeeze %115 : memref<1x1x128xf32, #tpu.memory_space<vmem>> -> memref<128xf32, #tpu.memory_space<vmem>>
      %117 = tpu.memref_slice %arg9[%c1_i32_58] : memref<2x!tpu.dma_semaphore, #tpu.memory_space<semaphore_mem>> -> memref<1x!tpu.dma_semaphore, #tpu.memory_space<semaphore_mem>>
      %118 = tpu.memref_squeeze %117 : memref<1x!tpu.dma_semaphore, #tpu.memory_space<semaphore_mem>> -> memref<!tpu.dma_semaphore, #tpu.memory_space<semaphore_mem>>
      tpu.enqueue_dma source(%114 : memref<128xf32, #tpu.memory_space<any>>) target(%116 : memref<128xf32, #tpu.memory_space<vmem>>) target_semaphore(%118 : memref<!tpu.dma_semaphore, #tpu.memory_space<semaphore_mem>>)
      %c8_i32_61 = arith.constant 8 : i32
      %119 = arith.muli %32, %c8_i32_61 : i32
      %c7_i32_62 = arith.constant 7 : i32
      %120 = arith.addi %119, %c7_i32_62 : i32
      %121 = arith.index_cast %120 : i32 to index
      %122 = memref.load %arg3[%121] : memref<2048xi32, #tpu.memory_space<smem>>
      %c8_i32_63 = arith.constant 8 : i32
      %c1_i32_64 = arith.constant 1 : i32
      %c0_i32_65 = arith.constant 0 : i32
      %123 = tpu.memref_slice %arg5[%122, %c0_i32_65] : memref<64x128xf32, #tpu.memory_space<any>> -> memref<1x128xf32, #tpu.memory_space<any>>
      %124 = tpu.memref_squeeze %123 : memref<1x128xf32, #tpu.memory_space<any>> -> memref<128xf32, #tpu.memory_space<any>>
      %c0_i32_66 = arith.constant 0 : i32
      %125 = tpu.memref_slice %arg8[%arg10, %c8_i32_63, %c0_i32_66] : memref<128x9x128xf32, #tpu.memory_space<vmem>> -> memref<1x1x128xf32, #tpu.memory_space<vmem>>
      %126 = tpu.memref_squeeze %125 : memref<1x1x128xf32, #tpu.memory_space<vmem>> -> memref<128xf32, #tpu.memory_space<vmem>>
      %127 = tpu.memref_slice %arg9[%c1_i32_64] : memref<2x!tpu.dma_semaphore, #tpu.memory_space<semaphore_mem>> -> memref<1x!tpu.dma_semaphore, #tpu.memory_space<semaphore_mem>>
      %128 = tpu.memref_squeeze %127 : memref<1x!tpu.dma_semaphore, #tpu.memory_space<semaphore_mem>> -> memref<!tpu.dma_semaphore, #tpu.memory_space<semaphore_mem>>
      tpu.enqueue_dma source(%124 : memref<128xf32, #tpu.memory_space<any>>) target(%126 : memref<128xf32, #tpu.memory_space<vmem>>) target_semaphore(%128 : memref<!tpu.dma_semaphore, #tpu.memory_space<semaphore_mem>>)
    }
    %c128_i32_1 = arith.constant 128 : i32
    %c0_i32_2 = arith.constant 0 : i32
    %c128_i32_3 = arith.constant 128 : i32
    %2 = arith.addi %c0_i32_2, %c128_i32_3 : i32
    %c1_i32_4 = arith.constant 1 : i32
    scf.for %arg10 = %c0_i32_2 to %2 step %c1_i32_4  : i32 {
      %c0_i32_19 = arith.constant 0 : i32
      %c0_i32_20 = arith.constant 0 : i32
      %c0_i32_21 = arith.constant 0 : i32
      %c0_i32_22 = arith.constant 0 : i32
      %32 = tpu.memref_slice %arg4[%c0_i32_19, %c0_i32_22] : memref<64x128xf32, #tpu.memory_space<any>> -> memref<1x128xf32, #tpu.memory_space<any>>
      %33 = tpu.memref_squeeze %32 : memref<1x128xf32, #tpu.memory_space<any>> -> memref<128xf32, #tpu.memory_space<any>>
      %c0_i32_23 = arith.constant 0 : i32
      %34 = tpu.memref_slice %arg7[%c0_i32_20, %c0_i32_23] : memref<128x128xf32, #tpu.memory_space<vmem>> -> memref<1x128xf32, #tpu.memory_space<vmem>>
      %35 = tpu.memref_squeeze %34 : memref<1x128xf32, #tpu.memory_space<vmem>> -> memref<128xf32, #tpu.memory_space<vmem>>
      %36 = tpu.memref_slice %arg9[%c0_i32_21] : memref<2x!tpu.dma_semaphore, #tpu.memory_space<semaphore_mem>> -> memref<1x!tpu.dma_semaphore, #tpu.memory_space<semaphore_mem>>
      %37 = tpu.memref_squeeze %36 : memref<1x!tpu.dma_semaphore, #tpu.memory_space<semaphore_mem>> -> memref<!tpu.dma_semaphore, #tpu.memory_space<semaphore_mem>>
      tpu.wait_dma2 semaphore(%37 : memref<!tpu.dma_semaphore, #tpu.memory_space<semaphore_mem>>) src(%33 : memref<128xf32, #tpu.memory_space<any>>) dst(%35 : memref<128xf32, #tpu.memory_space<vmem>>)
      %c0_i32_24 = arith.constant 0 : i32
      %c0_i32_25 = arith.constant 0 : i32
      %c0_i32_26 = arith.constant 0 : i32
      %c1_i32_27 = arith.constant 1 : i32
      %c0_i32_28 = arith.constant 0 : i32
      %38 = tpu.memref_slice %arg5[%c0_i32_24, %c0_i32_28] : memref<64x128xf32, #tpu.memory_space<any>> -> memref<1x128xf32, #tpu.memory_space<any>>
      %39 = tpu.memref_squeeze %38 : memref<1x128xf32, #tpu.memory_space<any>> -> memref<128xf32, #tpu.memory_space<any>>
      %c0_i32_29 = arith.constant 0 : i32
      %40 = tpu.memref_slice %arg8[%c0_i32_25, %c0_i32_26, %c0_i32_29] : memref<128x9x128xf32, #tpu.memory_space<vmem>> -> memref<1x1x128xf32, #tpu.memory_space<vmem>>
      %41 = tpu.memref_squeeze %40 : memref<1x1x128xf32, #tpu.memory_space<vmem>> -> memref<128xf32, #tpu.memory_space<vmem>>
      %42 = tpu.memref_slice %arg9[%c1_i32_27] : memref<2x!tpu.dma_semaphore, #tpu.memory_space<semaphore_mem>> -> memref<1x!tpu.dma_semaphore, #tpu.memory_space<semaphore_mem>>
      %43 = tpu.memref_squeeze %42 : memref<1x!tpu.dma_semaphore, #tpu.memory_space<semaphore_mem>> -> memref<!tpu.dma_semaphore, #tpu.memory_space<semaphore_mem>>
      tpu.wait_dma2 semaphore(%43 : memref<!tpu.dma_semaphore, #tpu.memory_space<semaphore_mem>>) src(%39 : memref<128xf32, #tpu.memory_space<any>>) dst(%41 : memref<128xf32, #tpu.memory_space<vmem>>)
      %c0_i32_30 = arith.constant 0 : i32
      %c0_i32_31 = arith.constant 0 : i32
      %c0_i32_32 = arith.constant 0 : i32
      %c1_i32_33 = arith.constant 1 : i32
      %c0_i32_34 = arith.constant 0 : i32
      %44 = tpu.memref_slice %arg5[%c0_i32_30, %c0_i32_34] : memref<64x128xf32, #tpu.memory_space<any>> -> memref<1x128xf32, #tpu.memory_space<any>>
      %45 = tpu.memref_squeeze %44 : memref<1x128xf32, #tpu.memory_space<any>> -> memref<128xf32, #tpu.memory_space<any>>
      %c0_i32_35 = arith.constant 0 : i32
      %46 = tpu.memref_slice %arg8[%c0_i32_31, %c0_i32_32, %c0_i32_35] : memref<128x9x128xf32, #tpu.memory_space<vmem>> -> memref<1x1x128xf32, #tpu.memory_space<vmem>>
      %47 = tpu.memref_squeeze %46 : memref<1x1x128xf32, #tpu.memory_space<vmem>> -> memref<128xf32, #tpu.memory_space<vmem>>
      %48 = tpu.memref_slice %arg9[%c1_i32_33] : memref<2x!tpu.dma_semaphore, #tpu.memory_space<semaphore_mem>> -> memref<1x!tpu.dma_semaphore, #tpu.memory_space<semaphore_mem>>
      %49 = tpu.memref_squeeze %48 : memref<1x!tpu.dma_semaphore, #tpu.memory_space<semaphore_mem>> -> memref<!tpu.dma_semaphore, #tpu.memory_space<semaphore_mem>>
      tpu.wait_dma2 semaphore(%49 : memref<!tpu.dma_semaphore, #tpu.memory_space<semaphore_mem>>) src(%45 : memref<128xf32, #tpu.memory_space<any>>) dst(%47 : memref<128xf32, #tpu.memory_space<vmem>>)
      %c0_i32_36 = arith.constant 0 : i32
      %c0_i32_37 = arith.constant 0 : i32
      %c0_i32_38 = arith.constant 0 : i32
      %c1_i32_39 = arith.constant 1 : i32
      %c0_i32_40 = arith.constant 0 : i32
      %50 = tpu.memref_slice %arg5[%c0_i32_36, %c0_i32_40] : memref<64x128xf32, #tpu.memory_space<any>> -> memref<1x128xf32, #tpu.memory_space<any>>
      %51 = tpu.memref_squeeze %50 : memref<1x128xf32, #tpu.memory_space<any>> -> memref<128xf32, #tpu.memory_space<any>>
      %c0_i32_41 = arith.constant 0 : i32
      %52 = tpu.memref_slice %arg8[%c0_i32_37, %c0_i32_38, %c0_i32_41] : memref<128x9x128xf32, #tpu.memory_space<vmem>> -> memref<1x1x128xf32, #tpu.memory_space<vmem>>
      %53 = tpu.memref_squeeze %52 : memref<1x1x128xf32, #tpu.memory_space<vmem>> -> memref<128xf32, #tpu.memory_space<vmem>>
      %54 = tpu.memref_slice %arg9[%c1_i32_39] : memref<2x!tpu.dma_semaphore, #tpu.memory_space<semaphore_mem>> -> memref<1x!tpu.dma_semaphore, #tpu.memory_space<semaphore_mem>>
      %55 = tpu.memref_squeeze %54 : memref<1x!tpu.dma_semaphore, #tpu.memory_space<semaphore_mem>> -> memref<!tpu.dma_semaphore, #tpu.memory_space<semaphore_mem>>
      tpu.wait_dma2 semaphore(%55 : memref<!tpu.dma_semaphore, #tpu.memory_space<semaphore_mem>>) src(%51 : memref<128xf32, #tpu.memory_space<any>>) dst(%53 : memref<128xf32, #tpu.memory_space<vmem>>)
      %c0_i32_42 = arith.constant 0 : i32
      %c0_i32_43 = arith.constant 0 : i32
      %c0_i32_44 = arith.constant 0 : i32
      %c1_i32_45 = arith.constant 1 : i32
      %c0_i32_46 = arith.constant 0 : i32
      %56 = tpu.memref_slice %arg5[%c0_i32_42, %c0_i32_46] : memref<64x128xf32, #tpu.memory_space<any>> -> memref<1x128xf32, #tpu.memory_space<any>>
      %57 = tpu.memref_squeeze %56 : memref<1x128xf32, #tpu.memory_space<any>> -> memref<128xf32, #tpu.memory_space<any>>
      %c0_i32_47 = arith.constant 0 : i32
      %58 = tpu.memref_slice %arg8[%c0_i32_43, %c0_i32_44, %c0_i32_47] : memref<128x9x128xf32, #tpu.memory_space<vmem>> -> memref<1x1x128xf32, #tpu.memory_space<vmem>>
      %59 = tpu.memref_squeeze %58 : memref<1x1x128xf32, #tpu.memory_space<vmem>> -> memref<128xf32, #tpu.memory_space<vmem>>
      %60 = tpu.memref_slice %arg9[%c1_i32_45] : memref<2x!tpu.dma_semaphore, #tpu.memory_space<semaphore_mem>> -> memref<1x!tpu.dma_semaphore, #tpu.memory_space<semaphore_mem>>
      %61 = tpu.memref_squeeze %60 : memref<1x!tpu.dma_semaphore, #tpu.memory_space<semaphore_mem>> -> memref<!tpu.dma_semaphore, #tpu.memory_space<semaphore_mem>>
      tpu.wait_dma2 semaphore(%61 : memref<!tpu.dma_semaphore, #tpu.memory_space<semaphore_mem>>) src(%57 : memref<128xf32, #tpu.memory_space<any>>) dst(%59 : memref<128xf32, #tpu.memory_space<vmem>>)
      %c0_i32_48 = arith.constant 0 : i32
      %c0_i32_49 = arith.constant 0 : i32
      %c0_i32_50 = arith.constant 0 : i32
      %c1_i32_51 = arith.constant 1 : i32
      %c0_i32_52 = arith.constant 0 : i32
      %62 = tpu.memref_slice %arg5[%c0_i32_48, %c0_i32_52] : memref<64x128xf32, #tpu.memory_space<any>> -> memref<1x128xf32, #tpu.memory_space<any>>
      %63 = tpu.memref_squeeze %62 : memref<1x128xf32, #tpu.memory_space<any>> -> memref<128xf32, #tpu.memory_space<any>>
      %c0_i32_53 = arith.constant 0 : i32
      %64 = tpu.memref_slice %arg8[%c0_i32_49, %c0_i32_50, %c0_i32_53] : memref<128x9x128xf32, #tpu.memory_space<vmem>> -> memref<1x1x128xf32, #tpu.memory_space<vmem>>
      %65 = tpu.memref_squeeze %64 : memref<1x1x128xf32, #tpu.memory_space<vmem>> -> memref<128xf32, #tpu.memory_space<vmem>>
      %66 = tpu.memref_slice %arg9[%c1_i32_51] : memref<2x!tpu.dma_semaphore, #tpu.memory_space<semaphore_mem>> -> memref<1x!tpu.dma_semaphore, #tpu.memory_space<semaphore_mem>>
      %67 = tpu.memref_squeeze %66 : memref<1x!tpu.dma_semaphore, #tpu.memory_space<semaphore_mem>> -> memref<!tpu.dma_semaphore, #tpu.memory_space<semaphore_mem>>
      tpu.wait_dma2 semaphore(%67 : memref<!tpu.dma_semaphore, #tpu.memory_space<semaphore_mem>>) src(%63 : memref<128xf32, #tpu.memory_space<any>>) dst(%65 : memref<128xf32, #tpu.memory_space<vmem>>)
      %c0_i32_54 = arith.constant 0 : i32
      %c0_i32_55 = arith.constant 0 : i32
      %c0_i32_56 = arith.constant 0 : i32
      %c1_i32_57 = arith.constant 1 : i32
      %c0_i32_58 = arith.constant 0 : i32
      %68 = tpu.memref_slice %arg5[%c0_i32_54, %c0_i32_58] : memref<64x128xf32, #tpu.memory_space<any>> -> memref<1x128xf32, #tpu.memory_space<any>>
      %69 = tpu.memref_squeeze %68 : memref<1x128xf32, #tpu.memory_space<any>> -> memref<128xf32, #tpu.memory_space<any>>
      %c0_i32_59 = arith.constant 0 : i32
      %70 = tpu.memref_slice %arg8[%c0_i32_55, %c0_i32_56, %c0_i32_59] : memref<128x9x128xf32, #tpu.memory_space<vmem>> -> memref<1x1x128xf32, #tpu.memory_space<vmem>>
      %71 = tpu.memref_squeeze %70 : memref<1x1x128xf32, #tpu.memory_space<vmem>> -> memref<128xf32, #tpu.memory_space<vmem>>
      %72 = tpu.memref_slice %arg9[%c1_i32_57] : memref<2x!tpu.dma_semaphore, #tpu.memory_space<semaphore_mem>> -> memref<1x!tpu.dma_semaphore, #tpu.memory_space<semaphore_mem>>
      %73 = tpu.memref_squeeze %72 : memref<1x!tpu.dma_semaphore, #tpu.memory_space<semaphore_mem>> -> memref<!tpu.dma_semaphore, #tpu.memory_space<semaphore_mem>>
      tpu.wait_dma2 semaphore(%73 : memref<!tpu.dma_semaphore, #tpu.memory_space<semaphore_mem>>) src(%69 : memref<128xf32, #tpu.memory_space<any>>) dst(%71 : memref<128xf32, #tpu.memory_space<vmem>>)
      %c0_i32_60 = arith.constant 0 : i32
      %c0_i32_61 = arith.constant 0 : i32
      %c0_i32_62 = arith.constant 0 : i32
      %c1_i32_63 = arith.constant 1 : i32
      %c0_i32_64 = arith.constant 0 : i32
      %74 = tpu.memref_slice %arg5[%c0_i32_60, %c0_i32_64] : memref<64x128xf32, #tpu.memory_space<any>> -> memref<1x128xf32, #tpu.memory_space<any>>
      %75 = tpu.memref_squeeze %74 : memref<1x128xf32, #tpu.memory_space<any>> -> memref<128xf32, #tpu.memory_space<any>>
      %c0_i32_65 = arith.constant 0 : i32
      %76 = tpu.memref_slice %arg8[%c0_i32_61, %c0_i32_62, %c0_i32_65] : memref<128x9x128xf32, #tpu.memory_space<vmem>> -> memref<1x1x128xf32, #tpu.memory_space<vmem>>
      %77 = tpu.memref_squeeze %76 : memref<1x1x128xf32, #tpu.memory_space<vmem>> -> memref<128xf32, #tpu.memory_space<vmem>>
      %78 = tpu.memref_slice %arg9[%c1_i32_63] : memref<2x!tpu.dma_semaphore, #tpu.memory_space<semaphore_mem>> -> memref<1x!tpu.dma_semaphore, #tpu.memory_space<semaphore_mem>>
      %79 = tpu.memref_squeeze %78 : memref<1x!tpu.dma_semaphore, #tpu.memory_space<semaphore_mem>> -> memref<!tpu.dma_semaphore, #tpu.memory_space<semaphore_mem>>
      tpu.wait_dma2 semaphore(%79 : memref<!tpu.dma_semaphore, #tpu.memory_space<semaphore_mem>>) src(%75 : memref<128xf32, #tpu.memory_space<any>>) dst(%77 : memref<128xf32, #tpu.memory_space<vmem>>)
      %c0_i32_66 = arith.constant 0 : i32
      %c0_i32_67 = arith.constant 0 : i32
      %c0_i32_68 = arith.constant 0 : i32
      %c1_i32_69 = arith.constant 1 : i32
      %c0_i32_70 = arith.constant 0 : i32
      %80 = tpu.memref_slice %arg5[%c0_i32_66, %c0_i32_70] : memref<64x128xf32, #tpu.memory_space<any>> -> memref<1x128xf32, #tpu.memory_space<any>>
      %81 = tpu.memref_squeeze %80 : memref<1x128xf32, #tpu.memory_space<any>> -> memref<128xf32, #tpu.memory_space<any>>
      %c0_i32_71 = arith.constant 0 : i32
      %82 = tpu.memref_slice %arg8[%c0_i32_67, %c0_i32_68, %c0_i32_71] : memref<128x9x128xf32, #tpu.memory_space<vmem>> -> memref<1x1x128xf32, #tpu.memory_space<vmem>>
      %83 = tpu.memref_squeeze %82 : memref<1x1x128xf32, #tpu.memory_space<vmem>> -> memref<128xf32, #tpu.memory_space<vmem>>
      %84 = tpu.memref_slice %arg9[%c1_i32_69] : memref<2x!tpu.dma_semaphore, #tpu.memory_space<semaphore_mem>> -> memref<1x!tpu.dma_semaphore, #tpu.memory_space<semaphore_mem>>
      %85 = tpu.memref_squeeze %84 : memref<1x!tpu.dma_semaphore, #tpu.memory_space<semaphore_mem>> -> memref<!tpu.dma_semaphore, #tpu.memory_space<semaphore_mem>>
      tpu.wait_dma2 semaphore(%85 : memref<!tpu.dma_semaphore, #tpu.memory_space<semaphore_mem>>) src(%81 : memref<128xf32, #tpu.memory_space<any>>) dst(%83 : memref<128xf32, #tpu.memory_space<vmem>>)
      %c0_i32_72 = arith.constant 0 : i32
      %c0_i32_73 = arith.constant 0 : i32
      %c0_i32_74 = arith.constant 0 : i32
      %c1_i32_75 = arith.constant 1 : i32
      %c0_i32_76 = arith.constant 0 : i32
      %86 = tpu.memref_slice %arg5[%c0_i32_72, %c0_i32_76] : memref<64x128xf32, #tpu.memory_space<any>> -> memref<1x128xf32, #tpu.memory_space<any>>
      %87 = tpu.memref_squeeze %86 : memref<1x128xf32, #tpu.memory_space<any>> -> memref<128xf32, #tpu.memory_space<any>>
      %c0_i32_77 = arith.constant 0 : i32
      %88 = tpu.memref_slice %arg8[%c0_i32_73, %c0_i32_74, %c0_i32_77] : memref<128x9x128xf32, #tpu.memory_space<vmem>> -> memref<1x1x128xf32, #tpu.memory_space<vmem>>
      %89 = tpu.memref_squeeze %88 : memref<1x1x128xf32, #tpu.memory_space<vmem>> -> memref<128xf32, #tpu.memory_space<vmem>>
      %90 = tpu.memref_slice %arg9[%c1_i32_75] : memref<2x!tpu.dma_semaphore, #tpu.memory_space<semaphore_mem>> -> memref<1x!tpu.dma_semaphore, #tpu.memory_space<semaphore_mem>>
      %91 = tpu.memref_squeeze %90 : memref<1x!tpu.dma_semaphore, #tpu.memory_space<semaphore_mem>> -> memref<!tpu.dma_semaphore, #tpu.memory_space<semaphore_mem>>
      tpu.wait_dma2 semaphore(%91 : memref<!tpu.dma_semaphore, #tpu.memory_space<semaphore_mem>>) src(%87 : memref<128xf32, #tpu.memory_space<any>>) dst(%89 : memref<128xf32, #tpu.memory_space<vmem>>)
    }
    %c0 = arith.constant 0 : index
    %c0_5 = arith.constant 0 : index
    %3 = vector.load %arg7[%c0, %c0_5] : memref<128x128xf32, #tpu.memory_space<vmem>>, vector<128x128xf32>
    %c0_6 = arith.constant 0 : index
    %c0_7 = arith.constant 0 : index
    %c0_8 = arith.constant 0 : index
    %4 = vector.load %arg8[%c0_6, %c0_7, %c0_8] : memref<128x9x128xf32, #tpu.memory_space<vmem>>, vector<128x9x128xf32>
    %5 = vector.shape_cast %3 : vector<128x128xf32> to vector<128x1x128xf32>
    %6 = vector.broadcast %5 : vector<128x1x128xf32> to vector<128x9x128xf32>
    %7 = arith.mulf %6, %4 : vector<128x9x128xf32>
    %cst = arith.constant dense<0.000000e+00> : vector<128x9xf32>
    %8 = vector.multi_reduction <add>, %7, %cst [2] : vector<128x9x128xf32> to vector<128x9xf32>
    %9 = tpu.iota {dimensions = array<i32: 1>} : vector<128x9xi32>
    %c0_i32_9 = arith.constant 0 : i32
    %10 = vector.broadcast %c0_i32_9 : i32 to vector<128x9xi32>
    %11 = arith.cmpi eq, %9, %10 : vector<128x9xi32>
    %cst_10 = arith.constant 0.000000e+00 : f32
    %12 = vector.broadcast %cst_10 : f32 to vector<128x9xf32>
    %13 = arith.subf %12, %8 : vector<128x9xf32>
    %14 = arith.select %11, %8, %13 : vector<128x9xi1>, vector<128x9xf32>
    %cst_11 = arith.constant -2.000000e+00 : f32
    %cst_12 = arith.constant 2.000000e+00 : f32
    %15 = vector.broadcast %cst_11 : f32 to vector<128x9xf32>
    %16 = arith.maximumf %15, %14 : vector<128x9xf32>
    %17 = vector.broadcast %cst_12 : f32 to vector<128x9xf32>
    %18 = arith.minimumf %17, %16 : vector<128x9xf32>
    %19 = math.absf %18 : vector<128x9xf32>
    %cst_13 = arith.constant 0.000000e+00 : f32
    %20 = vector.broadcast %cst_13 : f32 to vector<128x9xf32>
    %21 = arith.subf %20, %19 : vector<128x9xf32>
    %22 = math.exp %21 : vector<128x9xf32>
    %cst_14 = arith.constant 1.000000e+00 : f32
    %23 = vector.broadcast %cst_14 : f32 to vector<128x9xf32>
    %24 = arith.addf %23, %22 : vector<128x9xf32>
    %25 = math.log %24 : vector<128x9xf32>
    %cst_15 = arith.constant 0.000000e+00 : f32
    %26 = vector.broadcast %cst_15 : f32 to vector<128x9xf32>
    %27 = arith.minimumf %18, %26 : vector<128x9xf32>
    %28 = arith.subf %25, %27 : vector<128x9xf32>
    %cst_16 = arith.constant dense<0.000000e+00> : vector<128xf32>
    %29 = vector.multi_reduction <add>, %28, %cst_16 [1] : vector<128x9xf32> to vector<128xf32>
    %30 = vector.shape_cast %29 : vector<128xf32> to vector<1x128xf32>
    %c0_17 = arith.constant 0 : index
    %c0_18 = arith.constant 0 : index
    %31 = vector.load %arg6[%c0_17, %c0_18] : memref<1x128xf32, #tpu.memory_space<vmem>>, vector<1x128xf32>
    tpu.vector_store %arg6[%c0_17, %c0_18], %30 {strides = array<i32>} : memref<1x128xf32, #tpu.memory_space<vmem>>, vector<1x128xf32>,
    return
  }
  func.func @transform_2(%arg0: i32, %arg1: memref<256xi32, #tpu.memory_space<smem>>, %arg2: memref<256xi32, #tpu.memory_space<smem>>, %arg3: memref<2048xi32, #tpu.memory_space<smem>>) -> (i32, i32) {
    %c0_i32 = arith.constant 0 : i32
    %c0_i32_0 = arith.constant 0 : i32
    return %c0_i32, %arg0 : i32, i32
  }
}

</mosaic_0001>

<llo_original>
// kernel: tpu_custom_call.1
$region0: #{tpu_custom_call.1}
  #allocation0 [shape = 'u32[]', space=smem, size = 0x4, offset = 0x4, fixed_abs, tag = 'smem constant byte address 0x4 - core index']
  #allocation1 [shape = 'u32[144,128]{1,0:T(1,128)}', space=vmem, size = 0x12000, scoped, tag = 'internal scratch']
  #allocation2 [shape = 'f32[128,128]{1,0:T(8,128)}', space=vmem, size = 0x10000, scoped, tag = 'scratch operand']
  #allocation3 [shape = 'f32[128,9,128]{2,1,0:T(8,128)}', space=vmem, size = 0x100000, scoped, tag = 'scratch operand']
  #allocation4 [shape = 's32[2]{0}', space=sflag, size = 0x8, scoped, tag = 'scratch operand']
  #allocation5 [shape = 's32[1]{0}', space=sflag, size = 0x4, scoped, tag = 'scoped memory for tpu_custom_call.1']
  #allocation6 [shape = 'u8[1024]{0}', space=smem, size = 0x400, scoped, tag = 'prefetched SMEM operand 0']
  #allocation7 [shape = 'u8[1024]{0}', space=smem, size = 0x400, scoped, tag = 'prefetched SMEM operand 1']
  #allocation8 [shape = 'u8[8192]{0}', space=smem, size = 0x2000, scoped, tag = 'prefetched SMEM operand 2']
  #allocation11 [shape = 's32[]', space=sflag, size = 0x4, offset = 0, fixed_abs, tag = 'sflag constant byte address 0x0 - dummy sync flag']
  #allocation12 [shape = 's32[]', space=sflag, size = 0x4, offset = 0, fixed_abs, tag = 'sflag constant byte address 0x0 - dummy sync flag']
  #allocation13 [shape = 'u32[]', space=smem, size = 0x4, offset = 0x44, fixed_abs, tag = 'smem constant byte address 0x44 - assertion arg 0']
  #allocation14 [shape = 'u32[]', space=smem, size = 0x4, offset = 0x48, fixed_abs, tag = 'smem constant byte address 0x48 - assertion arg 1']
  #allocation15 [shape = 's32[]', space=sflag, size = 0x4, offset = 0, fixed_abs, tag = 'sflag constant byte address 0x0 - dummy sync flag']
  #allocation16 [shape = 's32[]', space=sflag, size = 0x4, offset = 0, fixed_abs, tag = 'sflag constant byte address 0x0 - dummy sync flag']
  #allocation17 [shape = 's32[]', space=sflag, size = 0x4, offset = 0, fixed_abs, tag = 'sflag constant byte address 0x0 - dummy sync flag']
  #allocation18 [shape = 's32[]', space=sflag, size = 0x4, offset = 0, fixed_abs, tag = 'sflag constant byte address 0x0 - dummy sync flag']
  #allocation19 [shape = 's32[]', space=sflag, size = 0x4, offset = 0, fixed_abs, tag = 'sflag constant byte address 0x0 - dummy sync flag']
  #allocation20 [shape = 's32[]', space=sflag, size = 0x4, offset = 0, fixed_abs, tag = 'sflag constant byte address 0x0 - dummy sync flag']
  #allocation21 [shape = 's32[]', space=sflag, size = 0x4, offset = 0, fixed_abs, tag = 'sflag constant byte address 0x0 - dummy sync flag']
  #allocation22 [shape = 's32[]', space=sflag, size = 0x4, offset = 0, fixed_abs, tag = 'sflag constant byte address 0x0 - dummy sync flag']
  #allocation23 [shape = 's32[]', space=sflag, size = 0x4, offset = 0, fixed_abs, tag = 'sflag constant byte address 0x0 - dummy sync flag']
  #allocation24 [shape = 's32[]', space=sflag, size = 0x4, offset = 0, fixed_abs, tag = 'sflag constant byte address 0x0 - dummy sync flag']
  #allocation25 [shape = 's32[]', space=sflag, size = 0x4, offset = 0, fixed_abs, tag = 'sflag constant byte address 0x0 - dummy sync flag']
  #allocation26 [shape = 's32[]', space=sflag, size = 0x4, offset = 0, fixed_abs, tag = 'sflag constant byte address 0x0 - dummy sync flag']
  #allocation27 [shape = 's32[]', space=sflag, size = 0x4, offset = 0, fixed_abs, tag = 'sflag constant byte address 0x0 - dummy sync flag']
  #allocation28 [shape = 's32[]', space=sflag, size = 0x4, offset = 0, fixed_abs, tag = 'sflag constant byte address 0x0 - dummy sync flag']
  #allocation29 [shape = 's32[]', space=sflag, size = 0x4, offset = 0, fixed_abs, tag = 'sflag constant byte address 0x0 - dummy sync flag']
  #allocation30 [shape = 's32[]', space=sflag, size = 0x4, offset = 0, fixed_abs, tag = 'sflag constant byte address 0x0 - dummy sync flag']
  #allocation31 [shape = 's32[]', space=sflag, size = 0x4, offset = 0, fixed_abs, tag = 'sflag constant byte address 0x0 - dummy sync flag']
  #allocation32 [shape = 's32[]', space=sflag, size = 0x4, offset = 0, fixed_abs, tag = 'sflag constant byte address 0x0 - dummy sync flag']
  %s0 = inlined_call_operand.hbm [shape: s32[256], index: 0, kind: input, shape index: {}]
  %s1 = inlined_call_operand.hbm [shape: s32[256], index: 1, kind: input, shape index: {}]
  %s2 = inlined_call_operand.hbm [shape: s32[2048], index: 2, kind: input, shape index: {}]
  %s3 = inlined_call_operand.hbm [shape: f32[64,128], index: 3, kind: input, shape index: {}]
  %s4 = inlined_call_operand.hbm [shape: f32[64,128], index: 4, kind: input, shape index: {}]
  %s5 = inlined_call_operand.hbm [shape: f32[1,256], index: 5, kind: output, shape index: {}]
  %s6 = sld [smem:[#allocation0]]
  $region79: #{tpu_custom_call.1} parent=0
    _
  %s8 = ssub.s32 1, %s6
  %s9 = scalar_select 0, %s8, %s6
  %11 = dma.hbm_to_smem %s0, 32, [#allocation6], [#allocation5]
  %13 = dma.hbm_to_smem %s1, 32, [#allocation7], [#allocation5]
  %15 = dma.hbm_to_smem %s2, 256, [#allocation8], [#allocation5]
  %16 = dma.done [#allocation5], 320
  %17 = sfence
  $region1: #{tpu_custom_call.1} parent=0
    #allocation9 [shape = 'u8[1024]{0}', space=vmem, size = 0x400, scoped, tag = 'output window, operand 0']
    #allocation10 [shape = 's32[2]{0}', space=sflag, size = 0x8, scoped, tag = 'scoped memory for tpu_custom_call.1']
    %18 = vsyncpa [#allocation10], 0
    %s19 = scalar_lea.sflag [#allocation10], 1
    %20 = vsyncpa %s19, 0
    loop: start=0, step=1, limit=3
    $region2: #{tpu_custom_call.1} parent=1 // loop_pre_header
      _
    $region3: #{tpu_custom_call.1} parent=1 // loop_header
      %s22 = sphi 0, %s26
      %p23 = scmp.ge.s32.totalorder %s22, 3
      %s31 = sphi 0, %s33
      %s34 = sphi 0, %s31
      %s44 = sphi 0, %s34
    $region4: #{tpu_custom_call.1} parent=1 // loop_header_branch
      %25 = sbr.rel (%p23) target = $region8
    $region5: #{tpu_custom_call.1} parent=1 // loop_body
      %s27 = ssub.s32 %s22, 1
      %s28 = sadd.s32 %s22, 1
      %s29 = ssub.s32 %s22, %s28
      %p30 = scmp.eq.s32.totalorder %s29, 0
      %s32 = sadd.s32 %s31, 1
      %s33 = scalar_select %p30, %s31, %s32
      %p35 = pneg %p30
      %p36 = scmp.eq.s32.totalorder %s22, 1
      %p37 = por %p35, %p36
      %p38 = scmp.ne.s32.totalorder %s31, %s34
      %p39 = scmp.eq.s32.totalorder %s22, 0
      %p40 = por %p38, %p39
      %p41 = scmp.ne.s32.totalorder %s31, %s34
      %p42 = scmp.eq.s32.totalorder %s27, 1
      %p43 = por %p41, %p42
      %p45 = scmp.ne.s32.totalorder %s34, %s44
      %p46 = scmp.eq.s32.totalorder %s27, 0
      %p47 = por %p45, %p46
      %p48 = scmp.lt.s32.totalorder %s22, 2
      // Predicated region
      $region9: #{tpu_custom_call.1} parent=5 // pred_check
        %p49 = pneg %p48
      $region10: #{tpu_custom_call.1} parent=5 // pred_check_branch
        %51 = sbr.rel (%p49) target = $region12
      $region11: #{tpu_custom_call.1} parent=5 // pred_region
        %p52 = pneg %p40
        %p53 = pneg %p37
        %s54 = sand.u32 %s31, 1
        %s55 = scalar_lea.sflag [#allocation10], %s54
        %s56 = sand.u32 %s31, 1
        %s57 = scalar_lea.vmem [#allocation9], %s56
        %s58 = smul.u32 %s22, 128
        loop: start=0, step=1, limit=128
        $region13: #{tpu_custom_call.1} parent=11 // loop_pre_header
          _
        $region14: #{tpu_custom_call.1} parent=11 // loop_header
          %s60 = sphi 0, %s64
          %p61 = scmp.ge.s32.totalorder %s60, 128
        $region15: #{tpu_custom_call.1} parent=11 // loop_header_branch
          %63 = sbr.rel (%p61) target = $region19
        $region16: #{tpu_custom_call.1} parent=11 // loop_body
          %s65 = sadd.s32 %s58, %s60
          %s66 = sld [smem:[#allocation6 + %s65]]
          %s67 = smul.addr %s66, 16
          %s68 = scalar_lea.hbm %s3, %s67
          %s69 = scalar_lea.vmem [#allocation2], %s60
          // Predicated region
          $region20: #{tpu_custom_call.1} parent=16 // pred_check
            _
          $region21: #{tpu_custom_call.1} parent=16 // pred_check_branch
            %71 = sbr.rel target = $region23
          $region22: #{tpu_custom_call.1} parent=16 // pred_region
            %72 = sst [smem:[#allocation13]] [#allocation12]
            %73 = sst [smem:[#allocation14]] [#allocation11]
          $region23: #{tpu_custom_call.1} parent=16 // pred_fallthru
            _
          %75 = shalt.err (0)
          %s77 = sshll.u32 %s69, 4
          %s78 = int_to_ptr.vmem [resolvable:$true] %s77
          %80 = dma.hbm_to_vmem [thread:$0]  %s68, 16, %s78, [#allocation4]
          %s81 = sld [smem:[#allocation7 + %s65]]
          %s82 = smul.addr %s81, 16
          %s83 = scalar_lea.hbm %s4, %s82
          %s84 = smul.u32 %s60, 16
          %s85 = scalar_lea.vmem [#allocation3], %s84
          %s86 = scalar_lea.sflag [#allocation4], 1
          // Predicated region
          $region24: #{tpu_custom_call.1} parent=16 // pred_check
            _
          $region25: #{tpu_custom_call.1} parent=16 // pred_check_branch
            %88 = sbr.rel target = $region27
          $region26: #{tpu_custom_call.1} parent=16 // pred_region
            %89 = sst [smem:[#allocation13]] [#allocation16]
            %90 = sst [smem:[#allocation14]] [#allocation15]
          $region27: #{tpu_custom_call.1} parent=16 // pred_fallthru
            _
          %92 = shalt.err (0)
          %s94 = sshll.u32 %s85, 4
          %s95 = int_to_ptr.vmem [resolvable:$true] %s94
          %97 = dma.hbm_to_vmem [thread:$0]  %s83, 16, %s95, %s86
          %s98 = smul.u32 %s65, 8
          %s99 = sld [smem:[#allocation8 + %s98]]
          %s100 = smul.addr %s99, 16
          %s101 = scalar_lea.hbm %s4, %s100
          %s102 = sadd.s32 1, %s84
          %s103 = scalar_lea.vmem [#allocation3], %s102
          // Predicated region
          $region28: #{tpu_custom_call.1} parent=16 // pred_check
            _
          $region29: #{tpu_custom_call.1} parent=16 // pred_check_branch
            %105 = sbr.rel target = $region31
          $region30: #{tpu_custom_call.1} parent=16 // pred_region
            %106 = sst [smem:[#allocation13]] [#allocation18]
            %107 = sst [smem:[#allocation14]] [#allocation17]
          $region31: #{tpu_custom_call.1} parent=16 // pred_fallthru
            _
          %109 = shalt.err (0)
          %s111 = sshll.u32 %s103, 4
          %s112 = int_to_ptr.vmem [resolvable:$true] %s111
          %114 = dma.hbm_to_vmem [thread:$0]  %s101, 16, %s112, %s86
          %s115 = sadd.s32 %s98, 1
          %s116 = sld [smem:[#allocation8 + %s115]]
          %s117 = smul.addr %s116, 16
          %s118 = scalar_lea.hbm %s4, %s117
          %s119 = sadd.s32 2, %s84
          %s120 = scalar_lea.vmem [#allocation3], %s119
          // Predicated region
          $region32: #{tpu_custom_call.1} parent=16 // pred_check
            _
          $region33: #{tpu_custom_call.1} parent=16 // pred_check_branch
            %122 = sbr.rel target = $region35
          $region34: #{tpu_custom_call.1} parent=16 // pred_region
            %123 = sst [smem:[#allocation13]] [#allocation20]
            %124 = sst [smem:[#allocation14]] [#allocation19]
          $region35: #{tpu_custom_call.1} parent=16 // pred_fallthru
            _
          %126 = shalt.err (0)
          %s128 = sshll.u32 %s120, 4
          %s129 = int_to_ptr.vmem [resolvable:$true] %s128
          %131 = dma.hbm_to_vmem [thread:$0]  %s118, 16, %s129, %s86
          %s132 = sadd.s32 %s98, 2
          %s133 = sld [smem:[#allocation8 + %s132]]
          %s134 = smul.addr %s133, 16
          %s135 = scalar_lea.hbm %s4, %s134
          %s136 = sadd.s32 3, %s84
          %s137 = scalar_lea.vmem [#allocation3], %s136
          // Predicated region
          $region36: #{tpu_custom_call.1} parent=16 // pred_check
            _
          $region37: #{tpu_custom_call.1} parent=16 // pred_check_branch
            %139 = sbr.rel target = $region39
          $region38: #{tpu_custom_call.1} parent=16 // pred_region
            %140 = sst [smem:[#allocation13]] [#allocation22]
            %141 = sst [smem:[#allocation14]] [#allocation21]
          $region39: #{tpu_custom_call.1} parent=16 // pred_fallthru
            _
          %143 = shalt.err (0)
          %s145 = sshll.u32 %s137, 4
          %s146 = int_to_ptr.vmem [resolvable:$true] %s145
          %148 = dma.hbm_to_vmem [thread:$0]  %s135, 16, %s146, %s86
          %s149 = sadd.s32 %s98, 3
          %s150 = sld [smem:[#allocation8 + %s149]]
          %s151 = smul.addr %s150, 16
          %s152 = scalar_lea.hbm %s4, %s151
          %s153 = sadd.s32 4, %s84
          %s154 = scalar_lea.vmem [#allocation3], %s153
          // Predicated region
          $region40: #{tpu_custom_call.1} parent=16 // pred_check
            _
          $region41: #{tpu_custom_call.1} parent=16 // pred_check_branch
            %156 = sbr.rel target = $region43
          $region42: #{tpu_custom_call.1} parent=16 // pred_region
            %157 = sst [smem:[#allocation13]] [#allocation24]
            %158 = sst [smem:[#allocation14]] [#allocation23]
          $region43: #{tpu_custom_call.1} parent=16 // pred_fallthru
            _
          %160 = shalt.err (0)
          %s162 = sshll.u32 %s154, 4
          %s163 = int_to_ptr.vmem [resolvable:$true] %s162
          %165 = dma.hbm_to_vmem [thread:$0]  %s152, 16, %s163, %s86
          %s166 = sadd.s32 %s98, 4
          %s167 = sld [smem:[#allocation8 + %s166]]
          %s168 = smul.addr %s167, 16
          %s169 = scalar_lea.hbm %s4, %s168
          %s170 = sadd.s32 5, %s84
          %s171 = scalar_lea.vmem [#allocation3], %s170
          // Predicated region
          $region44: #{tpu_custom_call.1} parent=16 // pred_check
            _
          $region45: #{tpu_custom_call.1} parent=16 // pred_check_branch
            %173 = sbr.rel target = $region47
          $region46: #{tpu_custom_call.1} parent=16 // pred_region
            %174 = sst [smem:[#allocation13]] [#allocation26]
            %175 = sst [smem:[#allocation14]] [#allocation25]
          $region47: #{tpu_custom_call.1} parent=16 // pred_fallthru
            _
          %177 = shalt.err (0)
          %s179 = sshll.u32 %s171, 4
          %s180 = int_to_ptr.vmem [resolvable:$true] %s179
          %182 = dma.hbm_to_vmem [thread:$0]  %s169, 16, %s180, %s86
          %s183 = sadd.s32 %s98, 5
          %s184 = sld [smem:[#allocation8 + %s183]]
          %s185 = smul.addr %s184, 16
          %s186 = scalar_lea.hbm %s4, %s185
          %s187 = sadd.s32 6, %s84
          %s188 = scalar_lea.vmem [#allocation3], %s187
          // Predicated region
          $region48: #{tpu_custom_call.1} parent=16 // pred_check
            _
          $region49: #{tpu_custom_call.1} parent=16 // pred_check_branch
            %190 = sbr.rel target = $region51
          $region50: #{tpu_custom_call.1} parent=16 // pred_region
            %191 = sst [smem:[#allocation13]] [#allocation28]
            %192 = sst [smem:[#allocation14]] [#allocation27]
          $region51: #{tpu_custom_call.1} parent=16 // pred_fallthru
            _
          %194 = shalt.err (0)
          %s196 = sshll.u32 %s188, 4
          %s197 = int_to_ptr.vmem [resolvable:$true] %s196
          %199 = dma.hbm_to_vmem [thread:$0]  %s186, 16, %s197, %s86
          %s200 = sadd.s32 %s98, 6
          %s201 = sld [smem:[#allocation8 + %s200]]
          %s202 = smul.addr %s201, 16
          %s203 = scalar_lea.hbm %s4, %s202
          %s204 = sadd.s32 7, %s84
          %s205 = scalar_lea.vmem [#allocation3], %s204
          // Predicated region
          $region52: #{tpu_custom_call.1} parent=16 // pred_check
            _
          $region53: #{tpu_custom_call.1} parent=16 // pred_check_branch
            %207 = sbr.rel target = $region55
          $region54: #{tpu_custom_call.1} parent=16 // pred_region
            %208 = sst [smem:[#allocation13]] [#allocation30]
            %209 = sst [smem:[#allocation14]] [#allocation29]
          $region55: #{tpu_custom_call.1} parent=16 // pred_fallthru
            _
          %211 = shalt.err (0)
          %s213 = sshll.u32 %s205, 4
          %s214 = int_to_ptr.vmem [resolvable:$true] %s213
          %216 = dma.hbm_to_vmem [thread:$0]  %s203, 16, %s214, %s86
          %s217 = sadd.s32 %s98, 7
          %s218 = sld [smem:[#allocation8 + %s217]]
          %s219 = smul.addr %s218, 16
          %s220 = scalar_lea.hbm %s4, %s219
          %s221 = sadd.s32 8, %s84
          %s222 = scalar_lea.vmem [#allocation3], %s221
          // Predicated region
          $region56: #{tpu_custom_call.1} parent=16 // pred_check
            _
          $region57: #{tpu_custom_call.1} parent=16 // pred_check_branch
            %224 = sbr.rel target = $region59
          $region58: #{tpu_custom_call.1} parent=16 // pred_region
            %225 = sst [smem:[#allocation13]] [#allocation32]
            %226 = sst [smem:[#allocation14]] [#allocation31]
          $region59: #{tpu_custom_call.1} parent=16 // pred_fallthru
            _
          %228 = shalt.err (0)
          %s230 = sshll.u32 %s222, 4
          %s231 = int_to_ptr.vmem [resolvable:$true] %s230
          %233 = dma.hbm_to_vmem [thread:$0]  %s220, 16, %s231, %s86
        $region17: #{tpu_custom_call.1} parent=11 // loop_footer
          %s64 = sadd.s32 1, %s60
        $region18: #{tpu_custom_call.1} parent=11 // loop_footer_branch
          %59 = sbr.rel target = $region14
        $region19: #{tpu_custom_call.1} parent=11 // loop_exit
          _
        loop: start=0, step=1, limit=128
        $region60: #{tpu_custom_call.1} parent=11 // loop_pre_header
          _
        $region61: #{tpu_custom_call.1} parent=11 // loop_header
          %s235 = sphi 0, %s239
          %p236 = scmp.ge.s32.totalorder %s235, 128
        $region62: #{tpu_custom_call.1} parent=11 // loop_header_branch
          %238 = sbr.rel (%p236) target = $region66
        $region63: #{tpu_custom_call.1} parent=11 // loop_body
          %241 = dma.done [#allocation4], 16
          %s242 = scalar_lea.sflag [#allocation4], 1
          %244 = dma.done %s242, 16
          %246 = dma.done %s242, 16
          %248 = dma.done %s242, 16
          %250 = dma.done %s242, 16
          %252 = dma.done %s242, 16
          %254 = dma.done %s242, 16
          %256 = dma.done %s242, 16
          %258 = dma.done %s242, 16
          %260 = dma.done %s242, 16
        $region64: #{tpu_custom_call.1} parent=11 // loop_footer
          %s239 = sadd.s32 1, %s235
        $region65: #{tpu_custom_call.1} parent=11 // loop_footer_branch
          %234 = sbr.rel target = $region61
        $region66: #{tpu_custom_call.1} parent=11 // loop_exit
          _
        %v261 = vld [vmem:[#allocation2] sm:$0xff]
        %v262 = vld [vmem:[#allocation2 + $0x8] sm:$0xff]
        %v263 = vld [vmem:[#allocation2 + $0x10] sm:$0xff]
        %v264 = vld [vmem:[#allocation2 + $0x18] sm:$0xff]
        %v265 = vld [vmem:[#allocation2 + $0x20] sm:$0xff]
        %v266 = vld [vmem:[#allocation2 + $0x28] sm:$0xff]
        %v267 = vld [vmem:[#allocation2 + $0x30] sm:$0xff]
        %v268 = vld [vmem:[#allocation2 + $0x38] sm:$0xff]
        %v269 = vld [vmem:[#allocation2 + $0x40] sm:$0xff]
        %v270 = vld [vmem:[#allocation2 + $0x48] sm:$0xff]
        %v271 = vld [vmem:[#allocation2 + $0x50] sm:$0xff]
        %v272 = vld [vmem:[#allocation2 + $0x58] sm:$0xff]
        %v273 = vld [vmem:[#allocation2 + $0x60] sm:$0xff]
        %v274 = vld [vmem:[#allocation2 + $0x68] sm:$0xff]
        %v275 = vld [vmem:[#allocation2 + $0x70] sm:$0xff]
        %v276 = vld [vmem:[#allocation2 + $0x78] sm:$0xff]
        %v277 = vld [vmem:[#allocation3] sm:$0xff]
        %v278 = vld [vmem:[#allocation3 + $0x8] sm:$0x1]
        %v279 = vld [vmem:[#allocation3 + $0x10] sm:$0xff]
        %v280 = vld [vmem:[#allocation3 + $0x18] sm:$0x1]
        %v281 = vld [vmem:[#allocation3 + $0x20] sm:$0xff]
        %v282 = vld [vmem:[#allocation3 + $0x28] sm:$0x1]
        %v283 = vld [vmem:[#allocation3 + $0x30] sm:$0xff]
        %v284 = vld [vmem:[#allocation3 + $0x38] sm:$0x1]
        %v285 = vld [vmem:[#allocation3 + $0x40] sm:$0xff]
        %v286 = vld [vmem:[#allocation3 + $0x48] sm:$0x1]
        %v287 = vld [vmem:[#allocation3 + $0x50] sm:$0xff]
        %v288 = vld [vmem:[#allocation3 + $0x58] sm:$0x1]
        %v289 = vld [vmem:[#allocation3 + $0x60] sm:$0xff]
        %v290 = vld [vmem:[#allocation3 + $0x68] sm:$0x1]
        %v291 = vld [vmem:[#allocation3 + $0x70] sm:$0xff]
        %v292 = vld [vmem:[#allocation3 + $0x78] sm:$0x1]
        %v293 = vld [vmem:[#allocation3 + $0x80] sm:$0xff]
        %v294 = vld [vmem:[#allocation3 + $0x88] sm:$0x1]
        %v295 = vld [vmem:[#allocation3 + $0x90] sm:$0xff]
        %v296 = vld [vmem:[#allocation3 + $0x98] sm:$0x1]
        %v297 = vld [vmem:[#allocation3 + $0xa0] sm:$0xff]
        %v298 = vld [vmem:[#allocation3 + $0xa8] sm:$0x1]
        %v299 = vld [vmem:[#allocation3 + $0xb0] sm:$0xff]
        %v300 = vld [vmem:[#allocation3 + $0xb8] sm:$0x1]
        %v301 = vld [vmem:[#allocation3 + $0xc0] sm:$0xff]
        %v302 = vld [vmem:[#allocation3 + $0xc8] sm:$0x1]
        %v303 = vld [vmem:[#allocation3 + $0xd0] sm:$0xff]
        %v304 = vld [vmem:[#allocation3 + $0xd8] sm:$0x1]
        %v305 = vld [vmem:[#allocation3 + $0xe0] sm:$0xff]
        %v306 = vld [vmem:[#allocation3 + $0xe8] sm:$0x1]
        %v307 = vld [vmem:[#allocation3 + $0xf0] sm:$0xff]
        %v308 = vld [vmem:[#allocation3 + $0xf8] sm:$0x1]
        %v309 = vld [vmem:[#allocation3 + $0x100] sm:$0xff]
        %v310 = vld [vmem:[#allocation3 + $0x108] sm:$0x1]
        %v311 = vld [vmem:[#allocation3 + $0x110] sm:$0xff]
        %v312 = vld [vmem:[#allocation3 + $0x118] sm:$0x1]
        %v313 = vld [vmem:[#allocation3 + $0x120] sm:$0xff]
        %v314 = vld [vmem:[#allocation3 + $0x128] sm:$0x1]
        %v315 = vld [vmem:[#allocation3 + $0x130] sm:$0xff]
        %v316 = vld [vmem:[#allocation3 + $0x138] sm:$0x1]
        %v317 = vld [vmem:[#allocation3 + $0x140] sm:$0xff]
        %v318 = vld [vmem:[#allocation3 + $0x148] sm:$0x1]
        %v319 = vld [vmem:[#allocation3 + $0x150] sm:$0xff]
        %v320 = vld [vmem:[#allocation3 + $0x158] sm:$0x1]
        %v321 = vld [vmem:[#allocation3 + $0x160] sm:$0xff]
        %v322 = vld [vmem:[#allocation3 + $0x168] sm:$0x1]
        %v323 = vld [vmem:[#allocation3 + $0x170] sm:$0xff]
        %v324 = vld [vmem:[#allocation3 + $0x178] sm:$0x1]
        %v325 = vld [vmem:[#allocation3 + $0x180] sm:$0xff]
        %v326 = vld [vmem:[#allocation3 + $0x188] sm:$0x1]
        %v327 = vld [vmem:[#allocation3 + $0x190] sm:$0xff]
        %v328 = vld [vmem:[#allocation3 + $0x198] sm:$0x1]
        %v329 = vld [vmem:[#allocation3 + $0x1a0] sm:$0xff]
        %v330 = vld [vmem:[#allocation3 + $0x1a8] sm:$0x1]
        %v331 = vld [vmem:[#allocation3 + $0x1b0] sm:$0xff]
        %v332 = vld [vmem:[#allocation3 + $0x1b8] sm:$0x1]
        %v333 = vld [vmem:[#allocation3 + $0x1c0] sm:$0xff]
        %v334 = vld [vmem:[#allocation3 + $0x1c8] sm:$0x1]
        %v335 = vld [vmem:[#allocation3 + $0x1d0] sm:$0xff]
        %v336 = vld [vmem:[#allocation3 + $0x1d8] sm:$0x1]
        %v337 = vld [vmem:[#allocation3 + $0x1e0] sm:$0xff]
        %v338 = vld [vmem:[#allocation3 + $0x1e8] sm:$0x1]
        %v339 = vld [vmem:[#allocation3 + $0x1f0] sm:$0xff]
        %v340 = vld [vmem:[#allocation3 + $0x1f8] sm:$0x1]
        %v341 = vld [vmem:[#allocation3 + $0x200] sm:$0xff]
        %v342 = vld [vmem:[#allocation3 + $0x208] sm:$0x1]
        %v343 = vld [vmem:[#allocation3 + $0x210] sm:$0xff]
        %v344 = vld [vmem:[#allocation3 + $0x218] sm:$0x1]
        %v345 = vld [vmem:[#allocation3 + $0x220] sm:$0xff]
        %v346 = vld [vmem:[#allocation3 + $0x228] sm:$0x1]
        %v347 = vld [vmem:[#allocation3 + $0x230] sm:$0xff]
        %v348 = vld [vmem:[#allocation3 + $0x238] sm:$0x1]
        %v349 = vld [vmem:[#allocation3 + $0x240] sm:$0xff]
        %v350 = vld [vmem:[#allocation3 + $0x248] sm:$0x1]
        %v351 = vld [vmem:[#allocation3 + $0x250] sm:$0xff]
        %v352 = vld [vmem:[#allocation3 + $0x258] sm:$0x1]
        %v353 = vld [vmem:[#allocation3 + $0x260] sm:$0xff]
        %v354 = vld [vmem:[#allocation3 + $0x268] sm:$0x1]
        %v355 = vld [vmem:[#allocation3 + $0x270] sm:$0xff]
        %v356 = vld [vmem:[#allocation3 + $0x278] sm:$0x1]
        %v357 = vld [vmem:[#allocation3 + $0x280] sm:$0xff]
        %v358 = vld [vmem:[#allocation3 + $0x288] sm:$0x1]
        %v359 = vld [vmem:[#allocation3 + $0x290] sm:$0xff]
        %v360 = vld [vmem:[#allocation3 + $0x298] sm:$0x1]
        %v361 = vld [vmem:[#allocation3 + $0x2a0] sm:$0xff]
        %v362 = vld [vmem:[#allocation3 + $0x2a8] sm:$0x1]
        %v363 = vld [vmem:[#allocation3 + $0x2b0] sm:$0xff]
        %v364 = vld [vmem:[#allocation3 + $0x2b8] sm:$0x1]
        %v365 = vld [vmem:[#allocation3 + $0x2c0] sm:$0xff]
        %v366 = vld [vmem:[#allocation3 + $0x2c8] sm:$0x1]
        %v367 = vld [vmem:[#allocation3 + $0x2d0] sm:$0xff]
        %v368 = vld [vmem:[#allocation3 + $0x2d8] sm:$0x1]
        %v369 = vld [vmem:[#allocation3 + $0x2e0] sm:$0xff]
        %v370 = vld [vmem:[#allocation3 + $0x2e8] sm:$0x1]
        %v371 = vld [vmem:[#allocation3 + $0x2f0] sm:$0xff]
        %v372 = vld [vmem:[#allocation3 + $0x2f8] sm:$0x1]
        %v373 = vld [vmem:[#allocation3 + $0x300] sm:$0xff]
        %v374 = vld [vmem:[#allocation3 + $0x308] sm:$0x1]
        %v375 = vld [vmem:[#allocation3 + $0x310] sm:$0xff]
        %v376 = vld [vmem:[#allocation3 + $0x318] sm:$0x1]
        %v377 = vld [vmem:[#allocation3 + $0x320] sm:$0xff]
        %v378 = vld [vmem:[#allocation3 + $0x328] sm:$0x1]
        %v379 = vld [vmem:[#allocation3 + $0x330] sm:$0xff]
        %v380 = vld [vmem:[#allocation3 + $0x338] sm:$0x1]
        %v381 = vld [vmem:[#allocation3 + $0x340] sm:$0xff]
        %v382 = vld [vmem:[#allocation3 + $0x348] sm:$0x1]
        %v383 = vld [vmem:[#allocation3 + $0x350] sm:$0xff]
        %v384 = vld [vmem:[#allocation3 + $0x358] sm:$0x1]
        %v385 = vld [vmem:[#allocation3 + $0x360] sm:$0xff]
        %v386 = vld [vmem:[#allocation3 + $0x368] sm:$0x1]
        %v387 = vld [vmem:[#allocation3 + $0x370] sm:$0xff]
        %v388 = vld [vmem:[#allocation3 + $0x378] sm:$0x1]
        %v389 = vld [vmem:[#allocation3 + $0x380] sm:$0xff]
        %v390 = vld [vmem:[#allocation3 + $0x388] sm:$0x1]
        %v391 = vld [vmem:[#allocation3 + $0x390] sm:$0xff]
        %v392 = vld [vmem:[#allocation3 + $0x398] sm:$0x1]
        %v393 = vld [vmem:[#allocation3 + $0x3a0] sm:$0xff]
        %v394 = vld [vmem:[#allocation3 + $0x3a8] sm:$0x1]
        %v395 = vld [vmem:[#allocation3 + $0x3b0] sm:$0xff]
        %v396 = vld [vmem:[#allocation3 + $0x3b8] sm:$0x1]
        %v397 = vld [vmem:[#allocation3 + $0x3c0] sm:$0xff]
        %v398 = vld [vmem:[#allocation3 + $0x3c8] sm:$0x1]
        %v399 = vld [vmem:[#allocation3 + $0x3d0] sm:$0xff]
        %v400 = vld [vmem:[#allocation3 + $0x3d8] sm:$0x1]
        %v401 = vld [vmem:[#allocation3 + $0x3e0] sm:$0xff]
        %v402 = vld [vmem:[#allocation3 + $0x3e8] sm:$0x1]
        %v403 = vld [vmem:[#allocation3 + $0x3f0] sm:$0xff]
        %v404 = vld [vmem:[#allocation3 + $0x3f8] sm:$0x1]
        %v405 = vld [vmem:[#allocation3 + $0x400] sm:$0xff]
        %v406 = vld [vmem:[#allocation3 + $0x408] sm:$0x1]
        %v407 = vld [vmem:[#allocation3 + $0x410] sm:$0xff]
        %v408 = vld [vmem:[#allocation3 + $0x418] sm:$0x1]
        %v409 = vld [vmem:[#allocation3 + $0x420] sm:$0xff]
        %v410 = vld [vmem:[#allocation3 + $0x428] sm:$0x1]
        %v411 = vld [vmem:[#allocation3 + $0x430] sm:$0xff]
        %v412 = vld [vmem:[#allocation3 + $0x438] sm:$0x1]
        %v413 = vld [vmem:[#allocation3 + $0x440] sm:$0xff]
        %v414 = vld [vmem:[#allocation3 + $0x448] sm:$0x1]
        %v415 = vld [vmem:[#allocation3 + $0x450] sm:$0xff]
        %v416 = vld [vmem:[#allocation3 + $0x458] sm:$0x1]
        %v417 = vld [vmem:[#allocation3 + $0x460] sm:$0xff]
        %v418 = vld [vmem:[#allocation3 + $0x468] sm:$0x1]
        %v419 = vld [vmem:[#allocation3 + $0x470] sm:$0xff]
        %v420 = vld [vmem:[#allocation3 + $0x478] sm:$0x1]
        %v421 = vld [vmem:[#allocation3 + $0x480] sm:$0xff]
        %v422 = vld [vmem:[#allocation3 + $0x488] sm:$0x1]
        %v423 = vld [vmem:[#allocation3 + $0x490] sm:$0xff]
        %v424 = vld [vmem:[#allocation3 + $0x498] sm:$0x1]
        %v425 = vld [vmem:[#allocation3 + $0x4a0] sm:$0xff]
        %v426 = vld [vmem:[#allocation3 + $0x4a8] sm:$0x1]
        %v427 = vld [vmem:[#allocation3 + $0x4b0] sm:$0xff]
        %v428 = vld [vmem:[#allocation3 + $0x4b8] sm:$0x1]
        %v429 = vld [vmem:[#allocation3 + $0x4c0] sm:$0xff]
        %v430 = vld [vmem:[#allocation3 + $0x4c8] sm:$0x1]
        %v431 = vld [vmem:[#allocation3 + $0x4d0] sm:$0xff]
        %v432 = vld [vmem:[#allocation3 + $0x4d8] sm:$0x1]
        %v433 = vld [vmem:[#allocation3 + $0x4e0] sm:$0xff]
        %v434 = vld [vmem:[#allocation3 + $0x4e8] sm:$0x1]
        %v435 = vld [vmem:[#allocation3 + $0x4f0] sm:$0xff]
        %v436 = vld [vmem:[#allocation3 + $0x4f8] sm:$0x1]
        %v437 = vld [vmem:[#allocation3 + $0x500] sm:$0xff]
        %v438 = vld [vmem:[#allocation3 + $0x508] sm:$0x1]
        %v439 = vld [vmem:[#allocation3 + $0x510] sm:$0xff]
        %v440 = vld [vmem:[#allocation3 + $0x518] sm:$0x1]
        %v441 = vld [vmem:[#allocation3 + $0x520] sm:$0xff]
        %v442 = vld [vmem:[#allocation3 + $0x528] sm:$0x1]
        %v443 = vld [vmem:[#allocation3 + $0x530] sm:$0xff]
        %v444 = vld [vmem:[#allocation3 + $0x538] sm:$0x1]
        %v445 = vld [vmem:[#allocation3 + $0x540] sm:$0xff]
        %v446 = vld [vmem:[#allocation3 + $0x548] sm:$0x1]
        %v447 = vld [vmem:[#allocation3 + $0x550] sm:$0xff]
        %v448 = vld [vmem:[#allocation3 + $0x558] sm:$0x1]
        %v449 = vld [vmem:[#allocation3 + $0x560] sm:$0xff]
        %v450 = vld [vmem:[#allocation3 + $0x568] sm:$0x1]
        %v451 = vld [vmem:[#allocation3 + $0x570] sm:$0xff]
        %v452 = vld [vmem:[#allocation3 + $0x578] sm:$0x1]
        %v453 = vld [vmem:[#allocation3 + $0x580] sm:$0xff]
        %v454 = vld [vmem:[#allocation3 + $0x588] sm:$0x1]
        %v455 = vld [vmem:[#allocation3 + $0x590] sm:$0xff]
        %v456 = vld [vmem:[#allocation3 + $0x598] sm:$0x1]
        %v457 = vld [vmem:[#allocation3 + $0x5a0] sm:$0xff]
        %v458 = vld [vmem:[#allocation3 + $0x5a8] sm:$0x1]
        %v459 = vld [vmem:[#allocation3 + $0x5b0] sm:$0xff]
        %v460 = vld [vmem:[#allocation3 + $0x5b8] sm:$0x1]
        %v461 = vld [vmem:[#allocation3 + $0x5c0] sm:$0xff]
        %v462 = vld [vmem:[#allocation3 + $0x5c8] sm:$0x1]
        %v463 = vld [vmem:[#allocation3 + $0x5d0] sm:$0xff]
        %v464 = vld [vmem:[#allocation3 + $0x5d8] sm:$0x1]
        %v465 = vld [vmem:[#allocation3 + $0x5e0] sm:$0xff]
        %v466 = vld [vmem:[#allocation3 + $0x5e8] sm:$0x1]
        %v467 = vld [vmem:[#allocation3 + $0x5f0] sm:$0xff]
        %v468 = vld [vmem:[#allocation3 + $0x5f8] sm:$0x1]
        %v469 = vld [vmem:[#allocation3 + $0x600] sm:$0xff]
        %v470 = vld [vmem:[#allocation3 + $0x608] sm:$0x1]
        %v471 = vld [vmem:[#allocation3 + $0x610] sm:$0xff]
        %v472 = vld [vmem:[#allocation3 + $0x618] sm:$0x1]
        %v473 = vld [vmem:[#allocation3 + $0x620] sm:$0xff]
        %v474 = vld [vmem:[#allocation3 + $0x628] sm:$0x1]
        %v475 = vld [vmem:[#allocation3 + $0x630] sm:$0xff]
        %v476 = vld [vmem:[#allocation3 + $0x638] sm:$0x1]
        %v477 = vld [vmem:[#allocation3 + $0x640] sm:$0xff]
        %v478 = vld [vmem:[#allocation3 + $0x648] sm:$0x1]
        %v479 = vld [vmem:[#allocation3 + $0x650] sm:$0xff]
        %v480 = vld [vmem:[#allocation3 + $0x658] sm:$0x1]
        %v481 = vld [vmem:[#allocation3 + $0x660] sm:$0xff]
        %v482 = vld [vmem:[#allocation3 + $0x668] sm:$0x1]
        %v483 = vld [vmem:[#allocation3 + $0x670] sm:$0xff]
        %v484 = vld [vmem:[#allocation3 + $0x678] sm:$0x1]
        %v485 = vld [vmem:[#allocation3 + $0x680] sm:$0xff]
        %v486 = vld [vmem:[#allocation3 + $0x688] sm:$0x1]
        %v487 = vld [vmem:[#allocation3 + $0x690] sm:$0xff]
        %v488 = vld [vmem:[#allocation3 + $0x698] sm:$0x1]
        %v489 = vld [vmem:[#allocation3 + $0x6a0] sm:$0xff]
        %v490 = vld [vmem:[#allocation3 + $0x6a8] sm:$0x1]
        %v491 = vld [vmem:[#allocation3 + $0x6b0] sm:$0xff]
        %v492 = vld [vmem:[#allocation3 + $0x6b8] sm:$0x1]
        %v493 = vld [vmem:[#allocation3 + $0x6c0] sm:$0xff]
        %v494 = vld [vmem:[#allocation3 + $0x6c8] sm:$0x1]
        %v495 = vld [vmem:[#allocation3 + $0x6d0] sm:$0xff]
        %v496 = vld [vmem:[#allocation3 + $0x6d8] sm:$0x1]
        %v497 = vld [vmem:[#allocation3 + $0x6e0] sm:$0xff]
        %v498 = vld [vmem:[#allocation3 + $0x6e8] sm:$0x1]
        %v499 = vld [vmem:[#allocation3 + $0x6f0] sm:$0xff]
        %v500 = vld [vmem:[#allocation3 + $0x6f8] sm:$0x1]
        %v501 = vld [vmem:[#allocation3 + $0x700] sm:$0xff]
        %v502 = vld [vmem:[#allocation3 + $0x708] sm:$0x1]
        %v503 = vld [vmem:[#allocation3 + $0x710] sm:$0xff]
        %v504 = vld [vmem:[#allocation3 + $0x718] sm:$0x1]
        %v505 = vld [vmem:[#allocation3 + $0x720] sm:$0xff]
        %v506 = vld [vmem:[#allocation3 + $0x728] sm:$0x1]
        %v507 = vld [vmem:[#allocation3 + $0x730] sm:$0xff]
        %v508 = vld [vmem:[#allocation3 + $0x738] sm:$0x1]
        %v509 = vld [vmem:[#allocation3 + $0x740] sm:$0xff]
        %v510 = vld [vmem:[#allocation3 + $0x748] sm:$0x1]
        %v511 = vld [vmem:[#allocation3 + $0x750] sm:$0xff]
        %v512 = vld [vmem:[#allocation3 + $0x758] sm:$0x1]
        %v513 = vld [vmem:[#allocation3 + $0x760] sm:$0xff]
        %v514 = vld [vmem:[#allocation3 + $0x768] sm:$0x1]
        %v515 = vld [vmem:[#allocation3 + $0x770] sm:$0xff]
        %v516 = vld [vmem:[#allocation3 + $0x778] sm:$0x1]
        %v517 = vld [vmem:[#allocation3 + $0x780] sm:$0xff]
        %v518 = vld [vmem:[#allocation3 + $0x788] sm:$0x1]
        %v519 = vld [vmem:[#allocation3 + $0x790] sm:$0xff]
        %v520 = vld [vmem:[#allocation3 + $0x798] sm:$0x1]
        %v521 = vld [vmem:[#allocation3 + $0x7a0] sm:$0xff]
        %v522 = vld [vmem:[#allocation3 + $0x7a8] sm:$0x1]
        %v523 = vld [vmem:[#allocation3 + $0x7b0] sm:$0xff]
        %v524 = vld [vmem:[#allocation3 + $0x7b8] sm:$0x1]
        %v525 = vld [vmem:[#allocation3 + $0x7c0] sm:$0xff]
        %v526 = vld [vmem:[#allocation3 + $0x7c8] sm:$0x1]
        %v527 = vld [vmem:[#allocation3 + $0x7d0] sm:$0xff]
        %v528 = vld [vmem:[#allocation3 + $0x7d8] sm:$0x1]
        %v529 = vld [vmem:[#allocation3 + $0x7e0] sm:$0xff]
        %v530 = vld [vmem:[#allocation3 + $0x7e8] sm:$0x1]
        %v531 = vld [vmem:[#allocation3 + $0x7f0] sm:$0xff]
        %v532 = vld [vmem:[#allocation3 + $0x7f8] sm:$0x1]
        %v549 = vcombine.high %v261, %v261
        %v551 = vunpack.c.l.s4 1966171168
        %v552 = vunpack.c.0.s8 %v551
        %v553 = vlaneseq
        %v554 = vshrl.u32 %v553, 7
        %v555 = vsub.s32 %v552, %v554
        %v556 = vrot.slane %v261, %v555
        %v558 = vunpack.c.l.s4 1966171168
        %v559 = vunpack.c.0.s8 %v558
        %v560 = vlaneseq
        %v561 = vshrl.u32 %v560, 7
        %v562 = vsub.s32 %v559, %v561
        %v563 = vrot.slane %v549, %v562
        %v564 = vcombine.high %v556, %v556
        %v565 = vcombine.high %v563, %v563
        %v567 = vunpack.c.l.s4 1966171168
        %v568 = vunpack.c.0.s8 %v567
        %v569 = vlaneseq
        %v570 = vshrl.u32 %v569, 7
        %v571 = vsub.s32 %v568, %v570
        %v572 = vrot.slane %v556, %v571
        %v574 = vunpack.c.l.s4 1966171168
        %v575 = vunpack.c.0.s8 %v574
        %v576 = vlaneseq
        %v577 = vshrl.u32 %v576, 7
        %v578 = vsub.s32 %v575, %v577
        %v579 = vrot.slane %v563, %v578
        %v581 = vunpack.c.l.s4 1966171168
        %v582 = vunpack.c.0.s8 %v581
        %v583 = vlaneseq
        %v584 = vshrl.u32 %v583, 7
        %v585 = vsub.s32 %v582, %v584
        %v586 = vrot.slane %v564, %v585
        %v588 = vunpack.c.l.s4 1966171168
        %v589 = vunpack.c.0.s8 %v588
        %v590 = vlaneseq
        %v591 = vshrl.u32 %v590, 7
        %v592 = vsub.s32 %v589, %v591
        %v593 = vrot.slane %v565, %v592
        %v594 = vcombine.high %v572, %v572
        %v595 = vcombine.high %v579, %v579
        %v596 = vcombine.high %v586, %v586
        %v597 = vcombine.high %v593, %v593
        %v598 = vcombine.high %v262, %v262
        %v600 = vunpack.c.l.s4 1966171168
        %v601 = vunpack.c.0.s8 %v600
        %v602 = vlaneseq
        %v603 = vshrl.u32 %v602, 7
        %v604 = vsub.s32 %v601, %v603
        %v605 = vrot.slane %v262, %v604
        %v607 = vunpack.c.l.s4 1966171168
        %v608 = vunpack.c.0.s8 %v607
        %v609 = vlaneseq
        %v610 = vshrl.u32 %v609, 7
        %v611 = vsub.s32 %v608, %v610
        %v612 = vrot.slane %v598, %v611
        %v613 = vcombine.high %v605, %v605
        %v614 = vcombine.high %v612, %v612
        %v616 = vunpack.c.l.s4 1966171168
        %v617 = vunpack.c.0.s8 %v616
        %v618 = vlaneseq
        %v619 = vshrl.u32 %v618, 7
        %v620 = vsub.s32 %v617, %v619
        %v621 = vrot.slane %v605, %v620
        %v623 = vunpack.c.l.s4 1966171168
        %v624 = vunpack.c.0.s8 %v623
        %v625 = vlaneseq
        %v626 = vshrl.u32 %v625, 7
        %v627 = vsub.s32 %v624, %v626
        %v628 = vrot.slane %v612, %v627
        %v630 = vunpack.c.l.s4 1966171168
        %v631 = vunpack.c.0.s8 %v630
        %v632 = vlaneseq
        %v633 = vshrl.u32 %v632, 7
        %v634 = vsub.s32 %v631, %v633
        %v635 = vrot.slane %v613, %v634
        %v637 = vunpack.c.l.s4 1966171168
        %v638 = vunpack.c.0.s8 %v637
        %v639 = vlaneseq
        %v640 = vshrl.u32 %v639, 7
        %v641 = vsub.s32 %v638, %v640
        %v642 = vrot.slane %v614, %v641
        %v643 = vcombine.high %v621, %v621
        %v644 = vcombine.high %v628, %v628
        %v645 = vcombine.high %v635, %v635
        %v646 = vcombine.high %v642, %v642
        %v647 = vcombine.high %v263, %v263
        %v649 = vunpack.c.l.s4 1966171168
        %v650 = vunpack.c.0.s8 %v649
        %v651 = vlaneseq
        %v652 = vshrl.u32 %v651, 7
        %v653 = vsub.s32 %v650, %v652
        %v654 = vrot.slane %v263, %v653
        %v656 = vunpack.c.l.s4 1966171168
        %v657 = vunpack.c.0.s8 %v656
        %v658 = vlaneseq
        %v659 = vshrl.u32 %v658, 7
        %v660 = vsub.s32 %v657, %v659
        %v661 = vrot.slane %v647, %v660
        %v662 = vcombine.high %v654, %v654
        %v663 = vcombine.high %v661, %v661
        %v665 = vunpack.c.l.s4 1966171168
        %v666 = vunpack.c.0.s8 %v665
        %v667 = vlaneseq
        %v668 = vshrl.u32 %v667, 7
        %v669 = vsub.s32 %v666, %v668
        %v670 = vrot.slane %v654, %v669
        %v672 = vunpack.c.l.s4 1966171168
        %v673 = vunpack.c.0.s8 %v672
        %v674 = vlaneseq
        %v675 = vshrl.u32 %v674, 7
        %v676 = vsub.s32 %v673, %v675
        %v677 = vrot.slane %v661, %v676
        %v679 = vunpack.c.l.s4 1966171168
        %v680 = vunpack.c.0.s8 %v679
        %v681 = vlaneseq
        %v682 = vshrl.u32 %v681, 7
        %v683 = vsub.s32 %v680, %v682
        %v684 = vrot.slane %v662, %v683
        %v686 = vunpack.c.l.s4 1966171168
        %v687 = vunpack.c.0.s8 %v686
        %v688 = vlaneseq
        %v689 = vshrl.u32 %v688, 7
        %v690 = vsub.s32 %v687, %v689
        %v691 = vrot.slane %v663, %v690
        %v692 = vcombine.high %v670, %v670
        %v693 = vcombine.high %v677, %v677
        %v694 = vcombine.high %v684, %v684
        %v695 = vcombine.high %v691, %v691
        %v696 = vcombine.high %v264, %v264
        %v698 = vunpack.c.l.s4 1966171168
        %v699 = vunpack.c.0.s8 %v698
        %v700 = vlaneseq
        %v701 = vshrl.u32 %v700, 7
        %v702 = vsub.s32 %v699, %v701
        %v703 = vrot.slane %v264, %v702
        %v705 = vunpack.c.l.s4 1966171168
        %v706 = vunpack.c.0.s8 %v705
        %v707 = vlaneseq
        %v708 = vshrl.u32 %v707, 7
        %v709 = vsub.s32 %v706, %v708
        %v710 = vrot.slane %v696, %v709
        %v711 = vcombine.high %v703, %v703
        %v712 = vcombine.high %v710, %v710
        %v714 = vunpack.c.l.s4 1966171168
        %v715 = vunpack.c.0.s8 %v714
        %v716 = vlaneseq
        %v717 = vshrl.u32 %v716, 7
        %v718 = vsub.s32 %v715, %v717
        %v719 = vrot.slane %v703, %v718
        %v721 = vunpack.c.l.s4 1966171168
        %v722 = vunpack.c.0.s8 %v721
        %v723 = vlaneseq
        %v724 = vshrl.u32 %v723, 7
        %v725 = vsub.s32 %v722, %v724
        %v726 = vrot.slane %v710, %v725
        %v728 = vunpack.c.l.s4 1966171168
        %v729 = vunpack.c.0.s8 %v728
        %v730 = vlaneseq
        %v731 = vshrl.u32 %v730, 7
        %v732 = vsub.s32 %v729, %v731
        %v733 = vrot.slane %v711, %v732
        %v735 = vunpack.c.l.s4 1966171168
        %v736 = vunpack.c.0.s8 %v735
        %v737 = vlaneseq
        %v738 = vshrl.u32 %v737, 7
        %v739 = vsub.s32 %v736, %v738
        %v740 = vrot.slane %v712, %v739
        %v741 = vcombine.high %v719, %v719
        %v742 = vcombine.high %v726, %v726
        %v743 = vcombine.high %v733, %v733
        %v744 = vcombine.high %v740, %v740
        %v745 = vcombine.high %v265, %v265
        %v747 = vunpack.c.l.s4 1966171168
        %v748 = vunpack.c.0.s8 %v747
        %v749 = vlaneseq
        %v750 = vshrl.u32 %v749, 7
        %v751 = vsub.s32 %v748, %v750
        %v752 = vrot.slane %v265, %v751
        %v754 = vunpack.c.l.s4 1966171168
        %v755 = vunpack.c.0.s8 %v754
        %v756 = vlaneseq
        %v757 = vshrl.u32 %v756, 7
        %v758 = vsub.s32 %v755, %v757
        %v759 = vrot.slane %v745, %v758
        %v760 = vcombine.high %v752, %v752
        %v761 = vcombine.high %v759, %v759
        %v763 = vunpack.c.l.s4 1966171168
        %v764 = vunpack.c.0.s8 %v763
        %v765 = vlaneseq
        %v766 = vshrl.u32 %v765, 7
        %v767 = vsub.s32 %v764, %v766
        %v768 = vrot.slane %v752, %v767
        %v770 = vunpack.c.l.s4 1966171168
        %v771 = vunpack.c.0.s8 %v770
        %v772 = vlaneseq
        %v773 = vshrl.u32 %v772, 7
        %v774 = vsub.s32 %v771, %v773
        %v775 = vrot.slane %v759, %v774
        %v777 = vunpack.c.l.s4 1966171168
        %v778 = vunpack.c.0.s8 %v777
        %v779 = vlaneseq
        %v780 = vshrl.u32 %v779, 7
        %v781 = vsub.s32 %v778, %v780
        %v782 = vrot.slane %v760, %v781
        %v784 = vunpack.c.l.s4 1966171168
        %v785 = vunpack.c.0.s8 %v784
        %v786 = vlaneseq
        %v787 = vshrl.u32 %v786, 7
        %v788 = vsub.s32 %v785, %v787
        %v789 = vrot.slane %v761, %v788
        %v790 = vcombine.high %v768, %v768
        %v791 = vcombine.high %v775, %v775
        %v792 = vcombine.high %v782, %v782
        %v793 = vcombine.high %v789, %v789
        %v794 = vcombine.high %v266, %v266
        %v796 = vunpack.c.l.s4 1966171168
        %v797 = vunpack.c.0.s8 %v796
        %v798 = vlaneseq
        %v799 = vshrl.u32 %v798, 7
        %v800 = vsub.s32 %v797, %v799
        %v801 = vrot.slane %v266, %v800
        %v803 = vunpack.c.l.s4 1966171168
        %v804 = vunpack.c.0.s8 %v803
        %v805 = vlaneseq
        %v806 = vshrl.u32 %v805, 7
        %v807 = vsub.s32 %v804, %v806
        %v808 = vrot.slane %v794, %v807
        %v809 = vcombine.high %v801, %v801
        %v810 = vcombine.high %v808, %v808
        %v812 = vunpack.c.l.s4 1966171168
        %v813 = vunpack.c.0.s8 %v812
        %v814 = vlaneseq
        %v815 = vshrl.u32 %v814, 7
        %v816 = vsub.s32 %v813, %v815
        %v817 = vrot.slane %v801, %v816
        %v819 = vunpack.c.l.s4 1966171168
        %v820 = vunpack.c.0.s8 %v819
        %v821 = vlaneseq
        %v822 = vshrl.u32 %v821, 7
        %v823 = vsub.s32 %v820, %v822
        %v824 = vrot.slane %v808, %v823
        %v826 = vunpack.c.l.s4 1966171168
        %v827 = vunpack.c.0.s8 %v826
        %v828 = vlaneseq
        %v829 = vshrl.u32 %v828, 7
        %v830 = vsub.s32 %v827, %v829
        %v831 = vrot.slane %v809, %v830
        %v833 = vunpack.c.l.s4 1966171168
        %v834 = vunpack.c.0.s8 %v833
        %v835 = vlaneseq
        %v836 = vshrl.u32 %v835, 7
        %v837 = vsub.s32 %v834, %v836
        %v838 = vrot.slane %v810, %v837
        %v839 = vcombine.high %v817, %v817
        %v840 = vcombine.high %v824, %v824
        %v841 = vcombine.high %v831, %v831
        %v842 = vcombine.high %v838, %v838
        %v843 = vcombine.high %v267, %v267
        %v845 = vunpack.c.l.s4 1966171168
        %v846 = vunpack.c.0.s8 %v845
        %v847 = vlaneseq
        %v848 = vshrl.u32 %v847, 7
        %v849 = vsub.s32 %v846, %v848
        %v850 = vrot.slane %v267, %v849
        %v852 = vunpack.c.l.s4 1966171168
        %v853 = vunpack.c.0.s8 %v852
        %v854 = vlaneseq
        %v855 = vshrl.u32 %v854, 7
        %v856 = vsub.s32 %v853, %v855
        %v857 = vrot.slane %v843, %v856
        %v858 = vcombine.high %v850, %v850
        %v859 = vcombine.high %v857, %v857
        %v861 = vunpack.c.l.s4 1966171168
        %v862 = vunpack.c.0.s8 %v861
        %v863 = vlaneseq
        %v864 = vshrl.u32 %v863, 7
        %v865 = vsub.s32 %v862, %v864
        %v866 = vrot.slane %v850, %v865
        %v868 = vunpack.c.l.s4 1966171168
        %v869 = vunpack.c.0.s8 %v868
        %v870 = vlaneseq
        %v871 = vshrl.u32 %v870, 7
        %v872 = vsub.s32 %v869, %v871
        %v873 = vrot.slane %v857, %v872
        %v875 = vunpack.c.l.s4 1966171168
        %v876 = vunpack.c.0.s8 %v875
        %v877 = vlaneseq
        %v878 = vshrl.u32 %v877, 7
        %v879 = vsub.s32 %v876, %v878
        %v880 = vrot.slane %v858, %v879
        %v882 = vunpack.c.l.s4 1966171168
        %v883 = vunpack.c.0.s8 %v882
        %v884 = vlaneseq
        %v885 = vshrl.u32 %v884, 7
        %v886 = vsub.s32 %v883, %v885
        %v887 = vrot.slane %v859, %v886
        %v888 = vcombine.high %v866, %v866
        %v889 = vcombine.high %v873, %v873
        %v890 = vcombine.high %v880, %v880
        %v891 = vcombine.high %v887, %v887
        %v892 = vcombine.high %v268, %v268
        %v894 = vunpack.c.l.s4 1966171168
        %v895 = vunpack.c.0.s8 %v894
        %v896 = vlaneseq
        %v897 = vshrl.u32 %v896, 7
        %v898 = vsub.s32 %v895, %v897
        %v899 = vrot.slane %v268, %v898
        %v901 = vunpack.c.l.s4 1966171168
        %v902 = vunpack.c.0.s8 %v901
        %v903 = vlaneseq
        %v904 = vshrl.u32 %v903, 7
        %v905 = vsub.s32 %v902, %v904
        %v906 = vrot.slane %v892, %v905
        %v907 = vcombine.high %v899, %v899
        %v908 = vcombine.high %v906, %v906
        %v910 = vunpack.c.l.s4 1966171168
        %v911 = vunpack.c.0.s8 %v910
        %v912 = vlaneseq
        %v913 = vshrl.u32 %v912, 7
        %v914 = vsub.s32 %v911, %v913
        %v915 = vrot.slane %v899, %v914
        %v917 = vunpack.c.l.s4 1966171168
        %v918 = vunpack.c.0.s8 %v917
        %v919 = vlaneseq
        %v920 = vshrl.u32 %v919, 7
        %v921 = vsub.s32 %v918, %v920
        %v922 = vrot.slane %v906, %v921
        %v924 = vunpack.c.l.s4 1966171168
        %v925 = vunpack.c.0.s8 %v924
        %v926 = vlaneseq
        %v927 = vshrl.u32 %v926, 7
        %v928 = vsub.s32 %v925, %v927
        %v929 = vrot.slane %v907, %v928
        %v931 = vunpack.c.l.s4 1966171168
        %v932 = vunpack.c.0.s8 %v931
        %v933 = vlaneseq
        %v934 = vshrl.u32 %v933, 7
        %v935 = vsub.s32 %v932, %v934
        %v936 = vrot.slane %v908, %v935
        %v937 = vcombine.high %v915, %v915
        %v938 = vcombine.high %v922, %v922
        %v939 = vcombine.high %v929, %v929
        %v940 = vcombine.high %v936, %v936
        %v941 = vcombine.high %v269, %v269
        %v943 = vunpack.c.l.s4 1966171168
        %v944 = vunpack.c.0.s8 %v943
        %v945 = vlaneseq
        %v946 = vshrl.u32 %v945, 7
        %v947 = vsub.s32 %v944, %v946
        %v948 = vrot.slane %v269, %v947
        %v950 = vunpack.c.l.s4 1966171168
        %v951 = vunpack.c.0.s8 %v950
        %v952 = vlaneseq
        %v953 = vshrl.u32 %v952, 7
        %v954 = vsub.s32 %v951, %v953
        %v955 = vrot.slane %v941, %v954
        %v956 = vcombine.high %v948, %v948
        %v957 = vcombine.high %v955, %v955
        %v959 = vunpack.c.l.s4 1966171168
        %v960 = vunpack.c.0.s8 %v959
        %v961 = vlaneseq
        %v962 = vshrl.u32 %v961, 7
        %v963 = vsub.s32 %v960, %v962
        %v964 = vrot.slane %v948, %v963
        %v966 = vunpack.c.l.s4 1966171168
        %v967 = vunpack.c.0.s8 %v966
        %v968 = vlaneseq
        %v969 = vshrl.u32 %v968, 7
        %v970 = vsub.s32 %v967, %v969
        %v971 = vrot.slane %v955, %v970
        %v973 = vunpack.c.l.s4 1966171168
        %v974 = vunpack.c.0.s8 %v973
        %v975 = vlaneseq
        %v976 = vshrl.u32 %v975, 7
        %v977 = vsub.s32 %v974, %v976
        %v978 = vrot.slane %v956, %v977
        %v980 = vunpack.c.l.s4 1966171168
        %v981 = vunpack.c.0.s8 %v980
        %v982 = vlaneseq
        %v983 = vshrl.u32 %v982, 7
        %v984 = vsub.s32 %v981, %v983
        %v985 = vrot.slane %v957, %v984
        %v986 = vcombine.high %v964, %v964
        %v987 = vcombine.high %v971, %v971
        %v988 = vcombine.high %v978, %v978
        %v989 = vcombine.high %v985, %v985
        %v990 = vcombine.high %v270, %v270
        %v992 = vunpack.c.l.s4 1966171168
        %v993 = vunpack.c.0.s8 %v992
        %v994 = vlaneseq
        %v995 = vshrl.u32 %v994, 7
        %v996 = vsub.s32 %v993, %v995
        %v997 = vrot.slane %v270, %v996
        %v999 = vunpack.c.l.s4 1966171168
        %v1000 = vunpack.c.0.s8 %v999
        %v1001 = vlaneseq
        %v1002 = vshrl.u32 %v1001, 7
        %v1003 = vsub.s32 %v1000, %v1002
        %v1004 = vrot.slane %v990, %v1003
        %v1005 = vcombine.high %v997, %v997
        %v1006 = vcombine.high %v1004, %v1004
        %v1008 = vunpack.c.l.s4 1966171168
        %v1009 = vunpack.c.0.s8 %v1008
        %v1010 = vlaneseq
        %v1011 = vshrl.u32 %v1010, 7
        %v1012 = vsub.s32 %v1009, %v1011
        %v1013 = vrot.slane %v997, %v1012
        %v1015 = vunpack.c.l.s4 1966171168
        %v1016 = vunpack.c.0.s8 %v1015
        %v1017 = vlaneseq
        %v1018 = vshrl.u32 %v1017, 7
        %v1019 = vsub.s32 %v1016, %v1018
        %v1020 = vrot.slane %v1004, %v1019
        %v1022 = vunpack.c.l.s4 1966171168
        %v1023 = vunpack.c.0.s8 %v1022
        %v1024 = vlaneseq
        %v1025 = vshrl.u32 %v1024, 7
        %v1026 = vsub.s32 %v1023, %v1025
        %v1027 = vrot.slane %v1005, %v1026
        %v1029 = vunpack.c.l.s4 1966171168
        %v1030 = vunpack.c.0.s8 %v1029
        %v1031 = vlaneseq
        %v1032 = vshrl.u32 %v1031, 7
        %v1033 = vsub.s32 %v1030, %v1032
        %v1034 = vrot.slane %v1006, %v1033
        %v1035 = vcombine.high %v1013, %v1013
        %v1036 = vcombine.high %v1020, %v1020
        %v1037 = vcombine.high %v1027, %v1027
        %v1038 = vcombine.high %v1034, %v1034
        %v1039 = vcombine.high %v271, %v271
        %v1041 = vunpack.c.l.s4 1966171168
        %v1042 = vunpack.c.0.s8 %v1041
        %v1043 = vlaneseq
        %v1044 = vshrl.u32 %v1043, 7
        %v1045 = vsub.s32 %v1042, %v1044
        %v1046 = vrot.slane %v271, %v1045
        %v1048 = vunpack.c.l.s4 1966171168
        %v1049 = vunpack.c.0.s8 %v1048
        %v1050 = vlaneseq
        %v1051 = vshrl.u32 %v1050, 7
        %v1052 = vsub.s32 %v1049, %v1051
        %v1053 = vrot.slane %v1039, %v1052
        %v1054 = vcombine.high %v1046, %v1046
        %v1055 = vcombine.high %v1053, %v1053
        %v1057 = vunpack.c.l.s4 1966171168
        %v1058 = vunpack.c.0.s8 %v1057
        %v1059 = vlaneseq
        %v1060 = vshrl.u32 %v1059, 7
        %v1061 = vsub.s32 %v1058, %v1060
        %v1062 = vrot.slane %v1046, %v1061
        %v1064 = vunpack.c.l.s4 1966171168
        %v1065 = vunpack.c.0.s8 %v1064
        %v1066 = vlaneseq
        %v1067 = vshrl.u32 %v1066, 7
        %v1068 = vsub.s32 %v1065, %v1067
        %v1069 = vrot.slane %v1053, %v1068
        %v1071 = vunpack.c.l.s4 1966171168
        %v1072 = vunpack.c.0.s8 %v1071
        %v1073 = vlaneseq
        %v1074 = vshrl.u32 %v1073, 7
        %v1075 = vsub.s32 %v1072, %v1074
        %v1076 = vrot.slane %v1054, %v1075
        %v1078 = vunpack.c.l.s4 1966171168
        %v1079 = vunpack.c.0.s8 %v1078
        %v1080 = vlaneseq
        %v1081 = vshrl.u32 %v1080, 7
        %v1082 = vsub.s32 %v1079, %v1081
        %v1083 = vrot.slane %v1055, %v1082
        %v1084 = vcombine.high %v1062, %v1062
        %v1085 = vcombine.high %v1069, %v1069
        %v1086 = vcombine.high %v1076, %v1076
        %v1087 = vcombine.high %v1083, %v1083
        %v1088 = vcombine.high %v272, %v272
        %v1090 = vunpack.c.l.s4 1966171168
        %v1091 = vunpack.c.0.s8 %v1090
        %v1092 = vlaneseq
        %v1093 = vshrl.u32 %v1092, 7
        %v1094 = vsub.s32 %v1091, %v1093
        %v1095 = vrot.slane %v272, %v1094
        %v1097 = vunpack.c.l.s4 1966171168
        %v1098 = vunpack.c.0.s8 %v1097
        %v1099 = vlaneseq
        %v1100 = vshrl.u32 %v1099, 7
        %v1101 = vsub.s32 %v1098, %v1100
        %v1102 = vrot.slane %v1088, %v1101
        %v1103 = vcombine.high %v1095, %v1095
        %v1104 = vcombine.high %v1102, %v1102
        %v1106 = vunpack.c.l.s4 1966171168
        %v1107 = vunpack.c.0.s8 %v1106
        %v1108 = vlaneseq
        %v1109 = vshrl.u32 %v1108, 7
        %v1110 = vsub.s32 %v1107, %v1109
        %v1111 = vrot.slane %v1095, %v1110
        %v1113 = vunpack.c.l.s4 1966171168
        %v1114 = vunpack.c.0.s8 %v1113
        %v1115 = vlaneseq
        %v1116 = vshrl.u32 %v1115, 7
        %v1117 = vsub.s32 %v1114, %v1116
        %v1118 = vrot.slane %v1102, %v1117
        %v1120 = vunpack.c.l.s4 1966171168
        %v1121 = vunpack.c.0.s8 %v1120
        %v1122 = vlaneseq
        %v1123 = vshrl.u32 %v1122, 7
        %v1124 = vsub.s32 %v1121, %v1123
        %v1125 = vrot.slane %v1103, %v1124
        %v1127 = vunpack.c.l.s4 1966171168
        %v1128 = vunpack.c.0.s8 %v1127
        %v1129 = vlaneseq
        %v1130 = vshrl.u32 %v1129, 7
        %v1131 = vsub.s32 %v1128, %v1130
        %v1132 = vrot.slane %v1104, %v1131
        %v1133 = vcombine.high %v1111, %v1111
        %v1134 = vcombine.high %v1118, %v1118
        %v1135 = vcombine.high %v1125, %v1125
        %v1136 = vcombine.high %v1132, %v1132
        %v1137 = vcombine.high %v273, %v273
        %v1139 = vunpack.c.l.s4 1966171168
        %v1140 = vunpack.c.0.s8 %v1139
        %v1141 = vlaneseq
        %v1142 = vshrl.u32 %v1141, 7
        %v1143 = vsub.s32 %v1140, %v1142
        %v1144 = vrot.slane %v273, %v1143
        %v1146 = vunpack.c.l.s4 1966171168
        %v1147 = vunpack.c.0.s8 %v1146
        %v1148 = vlaneseq
        %v1149 = vshrl.u32 %v1148, 7
        %v1150 = vsub.s32 %v1147, %v1149
        %v1151 = vrot.slane %v1137, %v1150
        %v1152 = vcombine.high %v1144, %v1144
        %v1153 = vcombine.high %v1151, %v1151
        %v1155 = vunpack.c.l.s4 1966171168
        %v1156 = vunpack.c.0.s8 %v1155
        %v1157 = vlaneseq
        %v1158 = vshrl.u32 %v1157, 7
        %v1159 = vsub.s32 %v1156, %v1158
        %v1160 = vrot.slane %v1144, %v1159
        %v1162 = vunpack.c.l.s4 1966171168
        %v1163 = vunpack.c.0.s8 %v1162
        %v1164 = vlaneseq
        %v1165 = vshrl.u32 %v1164, 7
        %v1166 = vsub.s32 %v1163, %v1165
        %v1167 = vrot.slane %v1151, %v1166
        %v1169 = vunpack.c.l.s4 1966171168
        %v1170 = vunpack.c.0.s8 %v1169
        %v1171 = vlaneseq
        %v1172 = vshrl.u32 %v1171, 7
        %v1173 = vsub.s32 %v1170, %v1172
        %v1174 = vrot.slane %v1152, %v1173
        %v1176 = vunpack.c.l.s4 1966171168
        %v1177 = vunpack.c.0.s8 %v1176
        %v1178 = vlaneseq
        %v1179 = vshrl.u32 %v1178, 7
        %v1180 = vsub.s32 %v1177, %v1179
        %v1181 = vrot.slane %v1153, %v1180
        %v1182 = vcombine.high %v1160, %v1160
        %v1183 = vcombine.high %v1167, %v1167
        %v1184 = vcombine.high %v1174, %v1174
        %v1185 = vcombine.high %v1181, %v1181
        %v1186 = vcombine.high %v274, %v274
        %v1188 = vunpack.c.l.s4 1966171168
        %v1189 = vunpack.c.0.s8 %v1188
        %v1190 = vlaneseq
        %v1191 = vshrl.u32 %v1190, 7
        %v1192 = vsub.s32 %v1189, %v1191
        %v1193 = vrot.slane %v274, %v1192
        %v1195 = vunpack.c.l.s4 1966171168
        %v1196 = vunpack.c.0.s8 %v1195
        %v1197 = vlaneseq
        %v1198 = vshrl.u32 %v1197, 7
        %v1199 = vsub.s32 %v1196, %v1198
        %v1200 = vrot.slane %v1186, %v1199
        %v1201 = vcombine.high %v1193, %v1193
        %v1202 = vcombine.high %v1200, %v1200
        %v1204 = vunpack.c.l.s4 1966171168
        %v1205 = vunpack.c.0.s8 %v1204
        %v1206 = vlaneseq
        %v1207 = vshrl.u32 %v1206, 7
        %v1208 = vsub.s32 %v1205, %v1207
        %v1209 = vrot.slane %v1193, %v1208
        %v1211 = vunpack.c.l.s4 1966171168
        %v1212 = vunpack.c.0.s8 %v1211
        %v1213 = vlaneseq
        %v1214 = vshrl.u32 %v1213, 7
        %v1215 = vsub.s32 %v1212, %v1214
        %v1216 = vrot.slane %v1200, %v1215
        %v1218 = vunpack.c.l.s4 1966171168
        %v1219 = vunpack.c.0.s8 %v1218
        %v1220 = vlaneseq
        %v1221 = vshrl.u32 %v1220, 7
        %v1222 = vsub.s32 %v1219, %v1221
        %v1223 = vrot.slane %v1201, %v1222
        %v1225 = vunpack.c.l.s4 1966171168
        %v1226 = vunpack.c.0.s8 %v1225
        %v1227 = vlaneseq
        %v1228 = vshrl.u32 %v1227, 7
        %v1229 = vsub.s32 %v1226, %v1228
        %v1230 = vrot.slane %v1202, %v1229
        %v1231 = vcombine.high %v1209, %v1209
        %v1232 = vcombine.high %v1216, %v1216
        %v1233 = vcombine.high %v1223, %v1223
        %v1234 = vcombine.high %v1230, %v1230
        %v1235 = vcombine.high %v275, %v275
        %v1237 = vunpack.c.l.s4 1966171168
        %v1238 = vunpack.c.0.s8 %v1237
        %v1239 = vlaneseq
        %v1240 = vshrl.u32 %v1239, 7
        %v1241 = vsub.s32 %v1238, %v1240
        %v1242 = vrot.slane %v275, %v1241
        %v1244 = vunpack.c.l.s4 1966171168
        %v1245 = vunpack.c.0.s8 %v1244
        %v1246 = vlaneseq
        %v1247 = vshrl.u32 %v1246, 7
        %v1248 = vsub.s32 %v1245, %v1247
        %v1249 = vrot.slane %v1235, %v1248
        %v1250 = vcombine.high %v1242, %v1242
        %v1251 = vcombine.high %v1249, %v1249
        %v1253 = vunpack.c.l.s4 1966171168
        %v1254 = vunpack.c.0.s8 %v1253
        %v1255 = vlaneseq
        %v1256 = vshrl.u32 %v1255, 7
        %v1257 = vsub.s32 %v1254, %v1256
        %v1258 = vrot.slane %v1242, %v1257
        %v1260 = vunpack.c.l.s4 1966171168
        %v1261 = vunpack.c.0.s8 %v1260
        %v1262 = vlaneseq
        %v1263 = vshrl.u32 %v1262, 7
        %v1264 = vsub.s32 %v1261, %v1263
        %v1265 = vrot.slane %v1249, %v1264
        %v1267 = vunpack.c.l.s4 1966171168
        %v1268 = vunpack.c.0.s8 %v1267
        %v1269 = vlaneseq
        %v1270 = vshrl.u32 %v1269, 7
        %v1271 = vsub.s32 %v1268, %v1270
        %v1272 = vrot.slane %v1250, %v1271
        %v1274 = vunpack.c.l.s4 1966171168
        %v1275 = vunpack.c.0.s8 %v1274
        %v1276 = vlaneseq
        %v1277 = vshrl.u32 %v1276, 7
        %v1278 = vsub.s32 %v1275, %v1277
        %v1279 = vrot.slane %v1251, %v1278
        %v1280 = vcombine.high %v1258, %v1258
        %v1281 = vcombine.high %v1265, %v1265
        %v1282 = vcombine.high %v1272, %v1272
        %v1283 = vcombine.high %v1279, %v1279
        %v1284 = vcombine.high %v276, %v276
        %v1286 = vunpack.c.l.s4 1966171168
        %v1287 = vunpack.c.0.s8 %v1286
        %v1288 = vlaneseq
        %v1289 = vshrl.u32 %v1288, 7
        %v1290 = vsub.s32 %v1287, %v1289
        %v1291 = vrot.slane %v276, %v1290
        %v1293 = vunpack.c.l.s4 1966171168
        %v1294 = vunpack.c.0.s8 %v1293
        %v1295 = vlaneseq
        %v1296 = vshrl.u32 %v1295, 7
        %v1297 = vsub.s32 %v1294, %v1296
        %v1298 = vrot.slane %v1284, %v1297
        %v1299 = vcombine.high %v1291, %v1291
        %v1300 = vcombine.high %v1298, %v1298
        %v1302 = vunpack.c.l.s4 1966171168
        %v1303 = vunpack.c.0.s8 %v1302
        %v1304 = vlaneseq
        %v1305 = vshrl.u32 %v1304, 7
        %v1306 = vsub.s32 %v1303, %v1305
        %v1307 = vrot.slane %v1291, %v1306
        %v1309 = vunpack.c.l.s4 1966171168
        %v1310 = vunpack.c.0.s8 %v1309
        %v1311 = vlaneseq
        %v1312 = vshrl.u32 %v1311, 7
        %v1313 = vsub.s32 %v1310, %v1312
        %v1314 = vrot.slane %v1298, %v1313
        %v1316 = vunpack.c.l.s4 1966171168
        %v1317 = vunpack.c.0.s8 %v1316
        %v1318 = vlaneseq
        %v1319 = vshrl.u32 %v1318, 7
        %v1320 = vsub.s32 %v1317, %v1319
        %v1321 = vrot.slane %v1299, %v1320
        %v1323 = vunpack.c.l.s4 1966171168
        %v1324 = vunpack.c.0.s8 %v1323
        %v1325 = vlaneseq
        %v1326 = vshrl.u32 %v1325, 7
        %v1327 = vsub.s32 %v1324, %v1326
        %v1328 = vrot.slane %v1300, %v1327
        %v1329 = vcombine.high %v1307, %v1307
        %v1330 = vcombine.high %v1314, %v1314
        %v1331 = vcombine.high %v1321, %v1321
        %v1332 = vcombine.high %v1328, %v1328
        %v1333 = vlaneseq
        %v1334 = vshrl.u32 %v1333, 7
        %v1335 = vsub.s32 0, %v1334
        %v1336 = vrot.slane %v572, %v1335
        %v1337 = vlaneseq
        %v1338 = vshrl.u32 %v1337, 7
        %v1339 = vsub.s32 0, %v1338
        %v1340 = vrot.slane %v586, %v1339
        %v1341 = vlaneseq
        %v1342 = vshrl.u32 %v1341, 7
        %v1343 = vsub.s32 0, %v1342
        %v1344 = vrot.slane %v594, %v1343
        %v1345 = vlaneseq
        %v1346 = vshrl.u32 %v1345, 7
        %v1347 = vsub.s32 0, %v1346
        %v1348 = vrot.slane %v596, %v1347
        %v1349 = vlaneseq
        %v1350 = vshrl.u32 %v1349, 7
        %v1351 = vsub.s32 0, %v1350
        %v1352 = vrot.slane %v579, %v1351
        %v1353 = vlaneseq
        %v1354 = vshrl.u32 %v1353, 7
        %v1355 = vsub.s32 0, %v1354
        %v1356 = vrot.slane %v593, %v1355
        %v1357 = vlaneseq
        %v1358 = vshrl.u32 %v1357, 7
        %v1359 = vsub.s32 0, %v1358
        %v1360 = vrot.slane %v595, %v1359
        %v1361 = vlaneseq
        %v1362 = vshrl.u32 %v1361, 7
        %v1363 = vsub.s32 0, %v1362
        %v1364 = vrot.slane %v597, %v1363
        %v1365 = vlaneseq
        %v1366 = vshrl.u32 %v1365, 7
        %v1367 = vsub.s32 0, %v1366
        %v1368 = vrot.slane %v621, %v1367
        %v1369 = vlaneseq
        %v1370 = vshrl.u32 %v1369, 7
        %v1371 = vsub.s32 0, %v1370
        %v1372 = vrot.slane %v635, %v1371
        %v1373 = vlaneseq
        %v1374 = vshrl.u32 %v1373, 7
        %v1375 = vsub.s32 0, %v1374
        %v1376 = vrot.slane %v643, %v1375
        %v1377 = vlaneseq
        %v1378 = vshrl.u32 %v1377, 7
        %v1379 = vsub.s32 0, %v1378
        %v1380 = vrot.slane %v645, %v1379
        %v1381 = vlaneseq
        %v1382 = vshrl.u32 %v1381, 7
        %v1383 = vsub.s32 0, %v1382
        %v1384 = vrot.slane %v628, %v1383
        %v1385 = vlaneseq
        %v1386 = vshrl.u32 %v1385, 7
        %v1387 = vsub.s32 0, %v1386
        %v1388 = vrot.slane %v642, %v1387
        %v1389 = vlaneseq
        %v1390 = vshrl.u32 %v1389, 7
        %v1391 = vsub.s32 0, %v1390
        %v1392 = vrot.slane %v644, %v1391
        %v1393 = vlaneseq
        %v1394 = vshrl.u32 %v1393, 7
        %v1395 = vsub.s32 0, %v1394
        %v1396 = vrot.slane %v646, %v1395
        %v1397 = vlaneseq
        %v1398 = vshrl.u32 %v1397, 7
        %v1399 = vsub.s32 0, %v1398
        %v1400 = vrot.slane %v670, %v1399
        %v1401 = vlaneseq
        %v1402 = vshrl.u32 %v1401, 7
        %v1403 = vsub.s32 0, %v1402
        %v1404 = vrot.slane %v684, %v1403
        %v1405 = vlaneseq
        %v1406 = vshrl.u32 %v1405, 7
        %v1407 = vsub.s32 0, %v1406
        %v1408 = vrot.slane %v692, %v1407
        %v1409 = vlaneseq
        %v1410 = vshrl.u32 %v1409, 7
        %v1411 = vsub.s32 0, %v1410
        %v1412 = vrot.slane %v694, %v1411
        %v1413 = vlaneseq
        %v1414 = vshrl.u32 %v1413, 7
        %v1415 = vsub.s32 0, %v1414
        %v1416 = vrot.slane %v677, %v1415
        %v1417 = vlaneseq
        %v1418 = vshrl.u32 %v1417, 7
        %v1419 = vsub.s32 0, %v1418
        %v1420 = vrot.slane %v691, %v1419
        %v1421 = vlaneseq
        %v1422 = vshrl.u32 %v1421, 7
        %v1423 = vsub.s32 0, %v1422
        %v1424 = vrot.slane %v693, %v1423
        %v1425 = vlaneseq
        %v1426 = vshrl.u32 %v1425, 7
        %v1427 = vsub.s32 0, %v1426
        %v1428 = vrot.slane %v695, %v1427
        %v1429 = vlaneseq
        %v1430 = vshrl.u32 %v1429, 7
        %v1431 = vsub.s32 0, %v1430
        %v1432 = vrot.slane %v719, %v1431
        %v1433 = vlaneseq
        %v1434 = vshrl.u32 %v1433, 7
        %v1435 = vsub.s32 0, %v1434
        %v1436 = vrot.slane %v733, %v1435
        %v1437 = vlaneseq
        %v1438 = vshrl.u32 %v1437, 7
        %v1439 = vsub.s32 0, %v1438
        %v1440 = vrot.slane %v741, %v1439
        %v1441 = vlaneseq
        %v1442 = vshrl.u32 %v1441, 7
        %v1443 = vsub.s32 0, %v1442
        %v1444 = vrot.slane %v743, %v1443
        %v1445 = vlaneseq
        %v1446 = vshrl.u32 %v1445, 7
        %v1447 = vsub.s32 0, %v1446
        %v1448 = vrot.slane %v726, %v1447
        %v1449 = vlaneseq
        %v1450 = vshrl.u32 %v1449, 7
        %v1451 = vsub.s32 0, %v1450
        %v1452 = vrot.slane %v740, %v1451
        %v1453 = vlaneseq
        %v1454 = vshrl.u32 %v1453, 7
        %v1455 = vsub.s32 0, %v1454
        %v1456 = vrot.slane %v742, %v1455
        %v1457 = vlaneseq
        %v1458 = vshrl.u32 %v1457, 7
        %v1459 = vsub.s32 0, %v1458
        %v1460 = vrot.slane %v744, %v1459
        %v1461 = vlaneseq
        %v1462 = vshrl.u32 %v1461, 7
        %v1463 = vsub.s32 0, %v1462
        %v1464 = vrot.slane %v768, %v1463
        %v1465 = vlaneseq
        %v1466 = vshrl.u32 %v1465, 7
        %v1467 = vsub.s32 0, %v1466
        %v1468 = vrot.slane %v782, %v1467
        %v1469 = vlaneseq
        %v1470 = vshrl.u32 %v1469, 7
        %v1471 = vsub.s32 0, %v1470
        %v1472 = vrot.slane %v790, %v1471
        %v1473 = vlaneseq
        %v1474 = vshrl.u32 %v1473, 7
        %v1475 = vsub.s32 0, %v1474
        %v1476 = vrot.slane %v792, %v1475
        %v1477 = vlaneseq
        %v1478 = vshrl.u32 %v1477, 7
        %v1479 = vsub.s32 0, %v1478
        %v1480 = vrot.slane %v775, %v1479
        %v1481 = vlaneseq
        %v1482 = vshrl.u32 %v1481, 7
        %v1483 = vsub.s32 0, %v1482
        %v1484 = vrot.slane %v789, %v1483
        %v1485 = vlaneseq
        %v1486 = vshrl.u32 %v1485, 7
        %v1487 = vsub.s32 0, %v1486
        %v1488 = vrot.slane %v791, %v1487
        %v1489 = vlaneseq
        %v1490 = vshrl.u32 %v1489, 7
        %v1491 = vsub.s32 0, %v1490
        %v1492 = vrot.slane %v793, %v1491
        %v1493 = vlaneseq
        %v1494 = vshrl.u32 %v1493, 7
        %v1495 = vsub.s32 0, %v1494
        %v1496 = vrot.slane %v817, %v1495
        %v1497 = vlaneseq
        %v1498 = vshrl.u32 %v1497, 7
        %v1499 = vsub.s32 0, %v1498
        %v1500 = vrot.slane %v831, %v1499
        %v1501 = vlaneseq
        %v1502 = vshrl.u32 %v1501, 7
        %v1503 = vsub.s32 0, %v1502
        %v1504 = vrot.slane %v839, %v1503
        %v1505 = vlaneseq
        %v1506 = vshrl.u32 %v1505, 7
        %v1507 = vsub.s32 0, %v1506
        %v1508 = vrot.slane %v841, %v1507
        %v1509 = vlaneseq
        %v1510 = vshrl.u32 %v1509, 7
        %v1511 = vsub.s32 0, %v1510
        %v1512 = vrot.slane %v824, %v1511
        %v1513 = vlaneseq
        %v1514 = vshrl.u32 %v1513, 7
        %v1515 = vsub.s32 0, %v1514
        %v1516 = vrot.slane %v838, %v1515
        %v1517 = vlaneseq
        %v1518 = vshrl.u32 %v1517, 7
        %v1519 = vsub.s32 0, %v1518
        %v1520 = vrot.slane %v840, %v1519
        %v1521 = vlaneseq
        %v1522 = vshrl.u32 %v1521, 7
        %v1523 = vsub.s32 0, %v1522
        %v1524 = vrot.slane %v842, %v1523
        %v1525 = vlaneseq
        %v1526 = vshrl.u32 %v1525, 7
        %v1527 = vsub.s32 0, %v1526
        %v1528 = vrot.slane %v866, %v1527
        %v1529 = vlaneseq
        %v1530 = vshrl.u32 %v1529, 7
        %v1531 = vsub.s32 0, %v1530
        %v1532 = vrot.slane %v880, %v1531
        %v1533 = vlaneseq
        %v1534 = vshrl.u32 %v1533, 7
        %v1535 = vsub.s32 0, %v1534
        %v1536 = vrot.slane %v888, %v1535
        %v1537 = vlaneseq
        %v1538 = vshrl.u32 %v1537, 7
        %v1539 = vsub.s32 0, %v1538
        %v1540 = vrot.slane %v890, %v1539
        %v1541 = vlaneseq
        %v1542 = vshrl.u32 %v1541, 7
        %v1543 = vsub.s32 0, %v1542
        %v1544 = vrot.slane %v873, %v1543
        %v1545 = vlaneseq
        %v1546 = vshrl.u32 %v1545, 7
        %v1547 = vsub.s32 0, %v1546
        %v1548 = vrot.slane %v887, %v1547
        %v1549 = vlaneseq
        %v1550 = vshrl.u32 %v1549, 7
        %v1551 = vsub.s32 0, %v1550
        %v1552 = vrot.slane %v889, %v1551
        %v1553 = vlaneseq
        %v1554 = vshrl.u32 %v1553, 7
        %v1555 = vsub.s32 0, %v1554
        %v1556 = vrot.slane %v891, %v1555
        %v1557 = vlaneseq
        %v1558 = vshrl.u32 %v1557, 7
        %v1559 = vsub.s32 0, %v1558
        %v1560 = vrot.slane %v915, %v1559
        %v1561 = vlaneseq
        %v1562 = vshrl.u32 %v1561, 7
        %v1563 = vsub.s32 0, %v1562
        %v1564 = vrot.slane %v929, %v1563
        %v1565 = vlaneseq
        %v1566 = vshrl.u32 %v1565, 7
        %v1567 = vsub.s32 0, %v1566
        %v1568 = vrot.slane %v937, %v1567
        %v1569 = vlaneseq
        %v1570 = vshrl.u32 %v1569, 7
        %v1571 = vsub.s32 0, %v1570
        %v1572 = vrot.slane %v939, %v1571
        %v1573 = vlaneseq
        %v1574 = vshrl.u32 %v1573, 7
        %v1575 = vsub.s32 0, %v1574
        %v1576 = vrot.slane %v922, %v1575
        %v1577 = vlaneseq
        %v1578 = vshrl.u32 %v1577, 7
        %v1579 = vsub.s32 0, %v1578
        %v1580 = vrot.slane %v936, %v1579
        %v1581 = vlaneseq
        %v1582 = vshrl.u32 %v1581, 7
        %v1583 = vsub.s32 0, %v1582
        %v1584 = vrot.slane %v938, %v1583
        %v1585 = vlaneseq
        %v1586 = vshrl.u32 %v1585, 7
        %v1587 = vsub.s32 0, %v1586
        %v1588 = vrot.slane %v940, %v1587
        %v1589 = vlaneseq
        %v1590 = vshrl.u32 %v1589, 7
        %v1591 = vsub.s32 0, %v1590
        %v1592 = vrot.slane %v964, %v1591
        %v1593 = vlaneseq
        %v1594 = vshrl.u32 %v1593, 7
        %v1595 = vsub.s32 0, %v1594
        %v1596 = vrot.slane %v978, %v1595
        %v1597 = vlaneseq
        %v1598 = vshrl.u32 %v1597, 7
        %v1599 = vsub.s32 0, %v1598
        %v1600 = vrot.slane %v986, %v1599
        %v1601 = vlaneseq
        %v1602 = vshrl.u32 %v1601, 7
        %v1603 = vsub.s32 0, %v1602
        %v1604 = vrot.slane %v988, %v1603
        %v1605 = vlaneseq
        %v1606 = vshrl.u32 %v1605, 7
        %v1607 = vsub.s32 0, %v1606
        %v1608 = vrot.slane %v971, %v1607
        %v1609 = vlaneseq
        %v1610 = vshrl.u32 %v1609, 7
        %v1611 = vsub.s32 0, %v1610
        %v1612 = vrot.slane %v985, %v1611
        %v1613 = vlaneseq
        %v1614 = vshrl.u32 %v1613, 7
        %v1615 = vsub.s32 0, %v1614
        %v1616 = vrot.slane %v987, %v1615
        %v1617 = vlaneseq
        %v1618 = vshrl.u32 %v1617, 7
        %v1619 = vsub.s32 0, %v1618
        %v1620 = vrot.slane %v989, %v1619
        %v1621 = vlaneseq
        %v1622 = vshrl.u32 %v1621, 7
        %v1623 = vsub.s32 0, %v1622
        %v1624 = vrot.slane %v1013, %v1623
        %v1625 = vlaneseq
        %v1626 = vshrl.u32 %v1625, 7
        %v1627 = vsub.s32 0, %v1626
        %v1628 = vrot.slane %v1027, %v1627
        %v1629 = vlaneseq
        %v1630 = vshrl.u32 %v1629, 7
        %v1631 = vsub.s32 0, %v1630
        %v1632 = vrot.slane %v1035, %v1631
        %v1633 = vlaneseq
        %v1634 = vshrl.u32 %v1633, 7
        %v1635 = vsub.s32 0, %v1634
        %v1636 = vrot.slane %v1037, %v1635
        %v1637 = vlaneseq
        %v1638 = vshrl.u32 %v1637, 7
        %v1639 = vsub.s32 0, %v1638
        %v1640 = vrot.slane %v1020, %v1639
        %v1641 = vlaneseq
        %v1642 = vshrl.u32 %v1641, 7
        %v1643 = vsub.s32 0, %v1642
        %v1644 = vrot.slane %v1034, %v1643
        %v1645 = vlaneseq
        %v1646 = vshrl.u32 %v1645, 7
        %v1647 = vsub.s32 0, %v1646
        %v1648 = vrot.slane %v1036, %v1647
        %v1649 = vlaneseq
        %v1650 = vshrl.u32 %v1649, 7
        %v1651 = vsub.s32 0, %v1650
        %v1652 = vrot.slane %v1038, %v1651
        %v1653 = vlaneseq
        %v1654 = vshrl.u32 %v1653, 7
        %v1655 = vsub.s32 0, %v1654
        %v1656 = vrot.slane %v1062, %v1655
        %v1657 = vlaneseq
        %v1658 = vshrl.u32 %v1657, 7
        %v1659 = vsub.s32 0, %v1658
        %v1660 = vrot.slane %v1076, %v1659
        %v1661 = vlaneseq
        %v1662 = vshrl.u32 %v1661, 7
        %v1663 = vsub.s32 0, %v1662
        %v1664 = vrot.slane %v1084, %v1663
        %v1665 = vlaneseq
        %v1666 = vshrl.u32 %v1665, 7
        %v1667 = vsub.s32 0, %v1666
        %v1668 = vrot.slane %v1086, %v1667
        %v1669 = vlaneseq
        %v1670 = vshrl.u32 %v1669, 7
        %v1671 = vsub.s32 0, %v1670
        %v1672 = vrot.slane %v1069, %v1671
        %v1673 = vlaneseq
        %v1674 = vshrl.u32 %v1673, 7
        %v1675 = vsub.s32 0, %v1674
        %v1676 = vrot.slane %v1083, %v1675
        %v1677 = vlaneseq
        %v1678 = vshrl.u32 %v1677, 7
        %v1679 = vsub.s32 0, %v1678
        %v1680 = vrot.slane %v1085, %v1679
        %v1681 = vlaneseq
        %v1682 = vshrl.u32 %v1681, 7
        %v1683 = vsub.s32 0, %v1682
        %v1684 = vrot.slane %v1087, %v1683
        %v1685 = vlaneseq
        %v1686 = vshrl.u32 %v1685, 7
        %v1687 = vsub.s32 0, %v1686
        %v1688 = vrot.slane %v1111, %v1687
        %v1689 = vlaneseq
        %v1690 = vshrl.u32 %v1689, 7
        %v1691 = vsub.s32 0, %v1690
        %v1692 = vrot.slane %v1125, %v1691
        %v1693 = vlaneseq
        %v1694 = vshrl.u32 %v1693, 7
        %v1695 = vsub.s32 0, %v1694
        %v1696 = vrot.slane %v1133, %v1695
        %v1697 = vlaneseq
        %v1698 = vshrl.u32 %v1697, 7
        %v1699 = vsub.s32 0, %v1698
        %v1700 = vrot.slane %v1135, %v1699
        %v1701 = vlaneseq
        %v1702 = vshrl.u32 %v1701, 7
        %v1703 = vsub.s32 0, %v1702
        %v1704 = vrot.slane %v1118, %v1703
        %v1705 = vlaneseq
        %v1706 = vshrl.u32 %v1705, 7
        %v1707 = vsub.s32 0, %v1706
        %v1708 = vrot.slane %v1132, %v1707
        %v1709 = vlaneseq
        %v1710 = vshrl.u32 %v1709, 7
        %v1711 = vsub.s32 0, %v1710
        %v1712 = vrot.slane %v1134, %v1711
        %v1713 = vlaneseq
        %v1714 = vshrl.u32 %v1713, 7
        %v1715 = vsub.s32 0, %v1714
        %v1716 = vrot.slane %v1136, %v1715
        %v1717 = vlaneseq
        %v1718 = vshrl.u32 %v1717, 7
        %v1719 = vsub.s32 0, %v1718
        %v1720 = vrot.slane %v1160, %v1719
        %v1721 = vlaneseq
        %v1722 = vshrl.u32 %v1721, 7
        %v1723 = vsub.s32 0, %v1722
        %v1724 = vrot.slane %v1174, %v1723
        %v1725 = vlaneseq
        %v1726 = vshrl.u32 %v1725, 7
        %v1727 = vsub.s32 0, %v1726
        %v1728 = vrot.slane %v1182, %v1727
        %v1729 = vlaneseq
        %v1730 = vshrl.u32 %v1729, 7
        %v1731 = vsub.s32 0, %v1730
        %v1732 = vrot.slane %v1184, %v1731
        %v1733 = vlaneseq
        %v1734 = vshrl.u32 %v1733, 7
        %v1735 = vsub.s32 0, %v1734
        %v1736 = vrot.slane %v1167, %v1735
        %v1737 = vlaneseq
        %v1738 = vshrl.u32 %v1737, 7
        %v1739 = vsub.s32 0, %v1738
        %v1740 = vrot.slane %v1181, %v1739
        %v1741 = vlaneseq
        %v1742 = vshrl.u32 %v1741, 7
        %v1743 = vsub.s32 0, %v1742
        %v1744 = vrot.slane %v1183, %v1743
        %v1745 = vlaneseq
        %v1746 = vshrl.u32 %v1745, 7
        %v1747 = vsub.s32 0, %v1746
        %v1748 = vrot.slane %v1185, %v1747
        %v1749 = vlaneseq
        %v1750 = vshrl.u32 %v1749, 7
        %v1751 = vsub.s32 0, %v1750
        %v1752 = vrot.slane %v1209, %v1751
        %v1753 = vlaneseq
        %v1754 = vshrl.u32 %v1753, 7
        %v1755 = vsub.s32 0, %v1754
        %v1756 = vrot.slane %v1223, %v1755
        %v1757 = vlaneseq
        %v1758 = vshrl.u32 %v1757, 7
        %v1759 = vsub.s32 0, %v1758
        %v1760 = vrot.slane %v1231, %v1759
        %v1761 = vlaneseq
        %v1762 = vshrl.u32 %v1761, 7
        %v1763 = vsub.s32 0, %v1762
        %v1764 = vrot.slane %v1233, %v1763
        %v1765 = vlaneseq
        %v1766 = vshrl.u32 %v1765, 7
        %v1767 = vsub.s32 0, %v1766
        %v1768 = vrot.slane %v1216, %v1767
        %v1769 = vlaneseq
        %v1770 = vshrl.u32 %v1769, 7
        %v1771 = vsub.s32 0, %v1770
        %v1772 = vrot.slane %v1230, %v1771
        %v1773 = vlaneseq
        %v1774 = vshrl.u32 %v1773, 7
        %v1775 = vsub.s32 0, %v1774
        %v1776 = vrot.slane %v1232, %v1775
        %v1777 = vlaneseq
        %v1778 = vshrl.u32 %v1777, 7
        %v1779 = vsub.s32 0, %v1778
        %v1780 = vrot.slane %v1234, %v1779
        %v1781 = vlaneseq
        %v1782 = vshrl.u32 %v1781, 7
        %v1783 = vsub.s32 0, %v1782
        %v1784 = vrot.slane %v1258, %v1783
        %v1785 = vlaneseq
        %v1786 = vshrl.u32 %v1785, 7
        %v1787 = vsub.s32 0, %v1786
        %v1788 = vrot.slane %v1272, %v1787
        %v1789 = vlaneseq
        %v1790 = vshrl.u32 %v1789, 7
        %v1791 = vsub.s32 0, %v1790
        %v1792 = vrot.slane %v1280, %v1791
        %v1793 = vlaneseq
        %v1794 = vshrl.u32 %v1793, 7
        %v1795 = vsub.s32 0, %v1794
        %v1796 = vrot.slane %v1282, %v1795
        %v1797 = vlaneseq
        %v1798 = vshrl.u32 %v1797, 7
        %v1799 = vsub.s32 0, %v1798
        %v1800 = vrot.slane %v1265, %v1799
        %v1801 = vlaneseq
        %v1802 = vshrl.u32 %v1801, 7
        %v1803 = vsub.s32 0, %v1802
        %v1804 = vrot.slane %v1279, %v1803
        %v1805 = vlaneseq
        %v1806 = vshrl.u32 %v1805, 7
        %v1807 = vsub.s32 0, %v1806
        %v1808 = vrot.slane %v1281, %v1807
        %v1809 = vlaneseq
        %v1810 = vshrl.u32 %v1809, 7
        %v1811 = vsub.s32 0, %v1810
        %v1812 = vrot.slane %v1283, %v1811
        %v1813 = vlaneseq
        %v1814 = vshrl.u32 %v1813, 7
        %v1815 = vsub.s32 0, %v1814
        %v1816 = vrot.slane %v1307, %v1815
        %v1817 = vlaneseq
        %v1818 = vshrl.u32 %v1817, 7
        %v1819 = vsub.s32 0, %v1818
        %v1820 = vrot.slane %v1321, %v1819
        %v1821 = vlaneseq
        %v1822 = vshrl.u32 %v1821, 7
        %v1823 = vsub.s32 0, %v1822
        %v1824 = vrot.slane %v1329, %v1823
        %v1825 = vlaneseq
        %v1826 = vshrl.u32 %v1825, 7
        %v1827 = vsub.s32 0, %v1826
        %v1828 = vrot.slane %v1331, %v1827
        %v1829 = vlaneseq
        %v1830 = vshrl.u32 %v1829, 7
        %v1831 = vsub.s32 0, %v1830
        %v1832 = vrot.slane %v1314, %v1831
        %v1833 = vlaneseq
        %v1834 = vshrl.u32 %v1833, 7
        %v1835 = vsub.s32 0, %v1834
        %v1836 = vrot.slane %v1328, %v1835
        %v1837 = vlaneseq
        %v1838 = vshrl.u32 %v1837, 7
        %v1839 = vsub.s32 0, %v1838
        %v1840 = vrot.slane %v1330, %v1839
        %v1841 = vlaneseq
        %v1842 = vshrl.u32 %v1841, 7
        %v1843 = vsub.s32 0, %v1842
        %v1844 = vrot.slane %v1332, %v1843
        %v1973 = vmul.f32 %v1336, %v277
        %v1974 = vmul.f32 %v1336, %v278
        %v1975 = vmul.f32 %v1340, %v279
        %v1976 = vmul.f32 %v1340, %v280
        %v1977 = vmul.f32 %v1344, %v281
        %v1978 = vmul.f32 %v1344, %v282
        %v1979 = vmul.f32 %v1348, %v283
        %v1980 = vmul.f32 %v1348, %v284
        %v1981 = vmul.f32 %v1352, %v285
        %v1982 = vmul.f32 %v1352, %v286
        %v1983 = vmul.f32 %v1356, %v287
        %v1984 = vmul.f32 %v1356, %v288
        %v1985 = vmul.f32 %v1360, %v289
        %v1986 = vmul.f32 %v1360, %v290
        %v1987 = vmul.f32 %v1364, %v291
        %v1988 = vmul.f32 %v1364, %v292
        %v1989 = vmul.f32 %v1368, %v293
        %v1990 = vmul.f32 %v1368, %v294
        %v1991 = vmul.f32 %v1372, %v295
        %v1992 = vmul.f32 %v1372, %v296
        %v1993 = vmul.f32 %v1376, %v297
        %v1994 = vmul.f32 %v1376, %v298
        %v1995 = vmul.f32 %v1380, %v299
        %v1996 = vmul.f32 %v1380, %v300
        %v1997 = vmul.f32 %v1384, %v301
        %v1998 = vmul.f32 %v1384, %v302
        %v1999 = vmul.f32 %v1388, %v303
        %v2000 = vmul.f32 %v1388, %v304
        %v2001 = vmul.f32 %v1392, %v305
        %v2002 = vmul.f32 %v1392, %v306
        %v2003 = vmul.f32 %v1396, %v307
        %v2004 = vmul.f32 %v1396, %v308
        %v2005 = vmul.f32 %v1400, %v309
        %v2006 = vmul.f32 %v1400, %v310
        %v2007 = vmul.f32 %v1404, %v311
        %v2008 = vmul.f32 %v1404, %v312
        %v2009 = vmul.f32 %v1408, %v313
        %v2010 = vmul.f32 %v1408, %v314
        %v2011 = vmul.f32 %v1412, %v315
        %v2012 = vmul.f32 %v1412, %v316
        %v2013 = vmul.f32 %v1416, %v317
        %v2014 = vmul.f32 %v1416, %v318
        %v2015 = vmul.f32 %v1420, %v319
        %v2016 = vmul.f32 %v1420, %v320
        %v2017 = vmul.f32 %v1424, %v321
        %v2018 = vmul.f32 %v1424, %v322
        %v2019 = vmul.f32 %v1428, %v323
        %v2020 = vmul.f32 %v1428, %v324
        %v2021 = vmul.f32 %v1432, %v325
        %v2022 = vmul.f32 %v1432, %v326
        %v2023 = vmul.f32 %v1436, %v327
        %v2024 = vmul.f32 %v1436, %v328
        %v2025 = vmul.f32 %v1440, %v329
        %v2026 = vmul.f32 %v1440, %v330
        %v2027 = vmul.f32 %v1444, %v331
        %v2028 = vmul.f32 %v1444, %v332
        %v2029 = vmul.f32 %v1448, %v333
        %v2030 = vmul.f32 %v1448, %v334
        %v2031 = vmul.f32 %v1452, %v335
        %v2032 = vmul.f32 %v1452, %v336
        %v2033 = vmul.f32 %v1456, %v337
        %v2034 = vmul.f32 %v1456, %v338
        %v2035 = vmul.f32 %v1460, %v339
        %v2036 = vmul.f32 %v1460, %v340
        %v2037 = vmul.f32 %v1464, %v341
        %v2038 = vmul.f32 %v1464, %v342
        %v2039 = vmul.f32 %v1468, %v343
        %v2040 = vmul.f32 %v1468, %v344
        %v2041 = vmul.f32 %v1472, %v345
        %v2042 = vmul.f32 %v1472, %v346
        %v2043 = vmul.f32 %v1476, %v347
        %v2044 = vmul.f32 %v1476, %v348
        %v2045 = vmul.f32 %v1480, %v349
        %v2046 = vmul.f32 %v1480, %v350
        %v2047 = vmul.f32 %v1484, %v351
        %v2048 = vmul.f32 %v1484, %v352
        %v2049 = vmul.f32 %v1488, %v353
        %v2050 = vmul.f32 %v1488, %v354
        %v2051 = vmul.f32 %v1492, %v355
        %v2052 = vmul.f32 %v1492, %v356
        %v2053 = vmul.f32 %v1496, %v357
        %v2054 = vmul.f32 %v1496, %v358
        %v2055 = vmul.f32 %v1500, %v359
        %v2056 = vmul.f32 %v1500, %v360
        %v2057 = vmul.f32 %v1504, %v361
        %v2058 = vmul.f32 %v1504, %v362
        %v2059 = vmul.f32 %v1508, %v363
        %v2060 = vmul.f32 %v1508, %v364
        %v2061 = vmul.f32 %v1512, %v365
        %v2062 = vmul.f32 %v1512, %v366
        %v2063 = vmul.f32 %v1516, %v367
        %v2064 = vmul.f32 %v1516, %v368
        %v2065 = vmul.f32 %v1520, %v369
        %v2066 = vmul.f32 %v1520, %v370
        %v2067 = vmul.f32 %v1524, %v371
        %v2068 = vmul.f32 %v1524, %v372
        %v2069 = vmul.f32 %v1528, %v373
        %v2070 = vmul.f32 %v1528, %v374
        %v2071 = vmul.f32 %v1532, %v375
        %v2072 = vmul.f32 %v1532, %v376
        %v2073 = vmul.f32 %v1536, %v377
        %v2074 = vmul.f32 %v1536, %v378
        %v2075 = vmul.f32 %v1540, %v379
        %v2076 = vmul.f32 %v1540, %v380
        %v2077 = vmul.f32 %v1544, %v381
        %v2078 = vmul.f32 %v1544, %v382
        %v2079 = vmul.f32 %v1548, %v383
        %v2080 = vmul.f32 %v1548, %v384
        %v2081 = vmul.f32 %v1552, %v385
        %v2082 = vmul.f32 %v1552, %v386
        %v2083 = vmul.f32 %v1556, %v387
        %v2084 = vmul.f32 %v1556, %v388
        %v2085 = vmul.f32 %v1560, %v389
        %v2086 = vmul.f32 %v1560, %v390
        %v2087 = vmul.f32 %v1564, %v391
        %v2088 = vmul.f32 %v1564, %v392
        %v2089 = vmul.f32 %v1568, %v393
        %v2090 = vmul.f32 %v1568, %v394
        %v2091 = vmul.f32 %v1572, %v395
        %v2092 = vmul.f32 %v1572, %v396
        %v2093 = vmul.f32 %v1576, %v397
        %v2094 = vmul.f32 %v1576, %v398
        %v2095 = vmul.f32 %v1580, %v399
        %v2096 = vmul.f32 %v1580, %v400
        %v2097 = vmul.f32 %v1584, %v401
        %v2098 = vmul.f32 %v1584, %v402
        %v2099 = vmul.f32 %v1588, %v403
        %v2100 = vmul.f32 %v1588, %v404
        %v2101 = vmul.f32 %v1592, %v405
        %v2102 = vmul.f32 %v1592, %v406
        %v2103 = vmul.f32 %v1596, %v407
        %v2104 = vmul.f32 %v1596, %v408
        %v2105 = vmul.f32 %v1600, %v409
        %v2106 = vmul.f32 %v1600, %v410
        %v2107 = vmul.f32 %v1604, %v411
        %v2108 = vmul.f32 %v1604, %v412
        %v2109 = vmul.f32 %v1608, %v413
        %v2110 = vmul.f32 %v1608, %v414
        %v2111 = vmul.f32 %v1612, %v415
        %v2112 = vmul.f32 %v1612, %v416
        %v2113 = vmul.f32 %v1616, %v417
        %v2114 = vmul.f32 %v1616, %v418
        %v2115 = vmul.f32 %v1620, %v419
        %v2116 = vmul.f32 %v1620, %v420
        %v2117 = vmul.f32 %v1624, %v421
        %v2118 = vmul.f32 %v1624, %v422
        %v2119 = vmul.f32 %v1628, %v423
        %v2120 = vmul.f32 %v1628, %v424
        %v2121 = vmul.f32 %v1632, %v425
        %v2122 = vmul.f32 %v1632, %v426
        %v2123 = vmul.f32 %v1636, %v427
        %v2124 = vmul.f32 %v1636, %v428
        %v2125 = vmul.f32 %v1640, %v429
        %v2126 = vmul.f32 %v1640, %v430
        %v2127 = vmul.f32 %v1644, %v431
        %v2128 = vmul.f32 %v1644, %v432
        %v2129 = vmul.f32 %v1648, %v433
        %v2130 = vmul.f32 %v1648, %v434
        %v2131 = vmul.f32 %v1652, %v435
        %v2132 = vmul.f32 %v1652, %v436
        %v2133 = vmul.f32 %v1656, %v437
        %v2134 = vmul.f32 %v1656, %v438
        %v2135 = vmul.f32 %v1660, %v439
        %v2136 = vmul.f32 %v1660, %v440
        %v2137 = vmul.f32 %v1664, %v441
        %v2138 = vmul.f32 %v1664, %v442
        %v2139 = vmul.f32 %v1668, %v443
        %v2140 = vmul.f32 %v1668, %v444
        %v2141 = vmul.f32 %v1672, %v445
        %v2142 = vmul.f32 %v1672, %v446
        %v2143 = vmul.f32 %v1676, %v447
        %v2144 = vmul.f32 %v1676, %v448
        %v2145 = vmul.f32 %v1680, %v449
        %v2146 = vmul.f32 %v1680, %v450
        %v2147 = vmul.f32 %v1684, %v451
        %v2148 = vmul.f32 %v1684, %v452
        %v2149 = vmul.f32 %v1688, %v453
        %v2150 = vmul.f32 %v1688, %v454
        %v2151 = vmul.f32 %v1692, %v455
        %v2152 = vmul.f32 %v1692, %v456
        %v2153 = vmul.f32 %v1696, %v457
        %v2154 = vmul.f32 %v1696, %v458
        %v2155 = vmul.f32 %v1700, %v459
        %v2156 = vmul.f32 %v1700, %v460
        %v2157 = vmul.f32 %v1704, %v461
        %v2158 = vmul.f32 %v1704, %v462
        %v2159 = vmul.f32 %v1708, %v463
        %v2160 = vmul.f32 %v1708, %v464
        %v2161 = vmul.f32 %v1712, %v465
        %v2162 = vmul.f32 %v1712, %v466
        %v2163 = vmul.f32 %v1716, %v467
        %v2164 = vmul.f32 %v1716, %v468
        %v2165 = vmul.f32 %v1720, %v469
        %v2166 = vmul.f32 %v1720, %v470
        %v2167 = vmul.f32 %v1724, %v471
        %v2168 = vmul.f32 %v1724, %v472
        %v2169 = vmul.f32 %v1728, %v473
        %v2170 = vmul.f32 %v1728, %v474
        %v2171 = vmul.f32 %v1732, %v475
        %v2172 = vmul.f32 %v1732, %v476
        %v2173 = vmul.f32 %v1736, %v477
        %v2174 = vmul.f32 %v1736, %v478
        %v2175 = vmul.f32 %v1740, %v479
        %v2176 = vmul.f32 %v1740, %v480
        %v2177 = vmul.f32 %v1744, %v481
        %v2178 = vmul.f32 %v1744, %v482
        %v2179 = vmul.f32 %v1748, %v483
        %v2180 = vmul.f32 %v1748, %v484
        %v2181 = vmul.f32 %v1752, %v485
        %v2182 = vmul.f32 %v1752, %v486
        %v2183 = vmul.f32 %v1756, %v487
        %v2184 = vmul.f32 %v1756, %v488
        %v2185 = vmul.f32 %v1760, %v489
        %v2186 = vmul.f32 %v1760, %v490
        %v2187 = vmul.f32 %v1764, %v491
        %v2188 = vmul.f32 %v1764, %v492
        %v2189 = vmul.f32 %v1768, %v493
        %v2190 = vmul.f32 %v1768, %v494
        %v2191 = vmul.f32 %v1772, %v495
        %v2192 = vmul.f32 %v1772, %v496
        %v2193 = vmul.f32 %v1776, %v497
        %v2194 = vmul.f32 %v1776, %v498
        %v2195 = vmul.f32 %v1780, %v499
        %v2196 = vmul.f32 %v1780, %v500
        %v2197 = vmul.f32 %v1784, %v501
        %v2198 = vmul.f32 %v1784, %v502
        %v2199 = vmul.f32 %v1788, %v503
        %v2200 = vmul.f32 %v1788, %v504
        %v2201 = vmul.f32 %v1792, %v505
        %v2202 = vmul.f32 %v1792, %v506
        %v2203 = vmul.f32 %v1796, %v507
        %v2204 = vmul.f32 %v1796, %v508
        %v2205 = vmul.f32 %v1800, %v509
        %v2206 = vmul.f32 %v1800, %v510
        %v2207 = vmul.f32 %v1804, %v511
        %v2208 = vmul.f32 %v1804, %v512
        %v2209 = vmul.f32 %v1808, %v513
        %v2210 = vmul.f32 %v1808, %v514
        %v2211 = vmul.f32 %v1812, %v515
        %v2212 = vmul.f32 %v1812, %v516
        %v2213 = vmul.f32 %v1816, %v517
        %v2214 = vmul.f32 %v1816, %v518
        %v2215 = vmul.f32 %v1820, %v519
        %v2216 = vmul.f32 %v1820, %v520
        %v2217 = vmul.f32 %v1824, %v521
        %v2218 = vmul.f32 %v1824, %v522
        %v2219 = vmul.f32 %v1828, %v523
        %v2220 = vmul.f32 %v1828, %v524
        %v2221 = vmul.f32 %v1832, %v525
        %v2222 = vmul.f32 %v1832, %v526
        %v2223 = vmul.f32 %v1836, %v527
        %v2224 = vmul.f32 %v1836, %v528
        %v2225 = vmul.f32 %v1840, %v529
        %v2226 = vmul.f32 %v1840, %v530
        %v2227 = vmul.f32 %v1844, %v531
        %v2228 = vmul.f32 %v1844, %v532
        %2229 = vadd.xlane.f32.xlu0 %v1973
        %v2230 = vpop.xlane.xlu0 %2229
        %vm2231 = vcmask 1040384
        %v2232 = vsel %vm2231, %v1974, 0.0
        %2233 = vadd.xlane.f32.xlu0 %v2232
        %v2234 = vpop.xlane.xlu0 %2233
        %2235 = vadd.xlane.f32.xlu0 %v1975
        %v2236 = vpop.xlane.xlu0 %2235
        %v2237 = vsel %vm2231, %v1976, 0.0
        %2238 = vadd.xlane.f32.xlu0 %v2237
        %v2239 = vpop.xlane.xlu0 %2238
        %2240 = vadd.xlane.f32.xlu0 %v1977
        %v2241 = vpop.xlane.xlu0 %2240
        %v2242 = vsel %vm2231, %v1978, 0.0
        %2243 = vadd.xlane.f32.xlu0 %v2242
        %v2244 = vpop.xlane.xlu0 %2243
        %2245 = vadd.xlane.f32.xlu0 %v1979
        %v2246 = vpop.xlane.xlu0 %2245
        %v2247 = vsel %vm2231, %v1980, 0.0
        %2248 = vadd.xlane.f32.xlu0 %v2247
        %v2249 = vpop.xlane.xlu0 %2248
        %2250 = vadd.xlane.f32.xlu0 %v1981
        %v2251 = vpop.xlane.xlu0 %2250
        %v2252 = vsel %vm2231, %v1982, 0.0
        %2253 = vadd.xlane.f32.xlu0 %v2252
        %v2254 = vpop.xlane.xlu0 %2253
        %2255 = vadd.xlane.f32.xlu0 %v1983
        %v2256 = vpop.xlane.xlu0 %2255
        %v2257 = vsel %vm2231, %v1984, 0.0
        %2258 = vadd.xlane.f32.xlu0 %v2257
        %v2259 = vpop.xlane.xlu0 %2258
        %2260 = vadd.xlane.f32.xlu0 %v1985
        %v2261 = vpop.xlane.xlu0 %2260
        %v2262 = vsel %vm2231, %v1986, 0.0
        %2263 = vadd.xlane.f32.xlu0 %v2262
        %v2264 = vpop.xlane.xlu0 %2263
        %2265 = vadd.xlane.f32.xlu0 %v1987
        %v2266 = vpop.xlane.xlu0 %2265
        %v2267 = vsel %vm2231, %v1988, 0.0
        %2268 = vadd.xlane.f32.xlu0 %v2267
        %v2269 = vpop.xlane.xlu0 %2268
        %2270 = vadd.xlane.f32.xlu0 %v1989
        %v2271 = vpop.xlane.xlu0 %2270
        %v2272 = vsel %vm2231, %v1990, 0.0
        %2273 = vadd.xlane.f32.xlu0 %v2272
        %v2274 = vpop.xlane.xlu0 %2273
        %2275 = vadd.xlane.f32.xlu0 %v1991
        %v2276 = vpop.xlane.xlu0 %2275
        %v2277 = vsel %vm2231, %v1992, 0.0
        %2278 = vadd.xlane.f32.xlu0 %v2277
        %v2279 = vpop.xlane.xlu0 %2278
        %2280 = vadd.xlane.f32.xlu0 %v1993
        %v2281 = vpop.xlane.xlu0 %2280
        %v2282 = vsel %vm2231, %v1994, 0.0
        %2283 = vadd.xlane.f32.xlu0 %v2282
        %v2284 = vpop.xlane.xlu0 %2283
        %2285 = vadd.xlane.f32.xlu0 %v1995
        %v2286 = vpop.xlane.xlu0 %2285
        %v2287 = vsel %vm2231, %v1996, 0.0
        %2288 = vadd.xlane.f32.xlu0 %v2287
        %v2289 = vpop.xlane.xlu0 %2288
        %2290 = vadd.xlane.f32.xlu0 %v1997
        %v2291 = vpop.xlane.xlu0 %2290
        %v2292 = vsel %vm2231, %v1998, 0.0
        %2293 = vadd.xlane.f32.xlu0 %v2292
        %v2294 = vpop.xlane.xlu0 %2293
        %2295 = vadd.xlane.f32.xlu0 %v1999
        %v2296 = vpop.xlane.xlu0 %2295
        %v2297 = vsel %vm2231, %v2000, 0.0
        %2298 = vadd.xlane.f32.xlu0 %v2297
        %v2299 = vpop.xlane.xlu0 %2298
        %2300 = vadd.xlane.f32.xlu0 %v2001
        %v2301 = vpop.xlane.xlu0 %2300
        %v2302 = vsel %vm2231, %v2002, 0.0
        %2303 = vadd.xlane.f32.xlu0 %v2302
        %v2304 = vpop.xlane.xlu0 %2303
        %2305 = vadd.xlane.f32.xlu0 %v2003
        %v2306 = vpop.xlane.xlu0 %2305
        %v2307 = vsel %vm2231, %v2004, 0.0
        %2308 = vadd.xlane.f32.xlu0 %v2307
        %v2309 = vpop.xlane.xlu0 %2308
        %2310 = vadd.xlane.f32.xlu0 %v2005
        %v2311 = vpop.xlane.xlu0 %2310
        %v2312 = vsel %vm2231, %v2006, 0.0
        %2313 = vadd.xlane.f32.xlu0 %v2312
        %v2314 = vpop.xlane.xlu0 %2313
        %2315 = vadd.xlane.f32.xlu0 %v2007
        %v2316 = vpop.xlane.xlu0 %2315
        %v2317 = vsel %vm2231, %v2008, 0.0
        %2318 = vadd.xlane.f32.xlu0 %v2317
        %v2319 = vpop.xlane.xlu0 %2318
        %2320 = vadd.xlane.f32.xlu0 %v2009
        %v2321 = vpop.xlane.xlu0 %2320
        %v2322 = vsel %vm2231, %v2010, 0.0
        %2323 = vadd.xlane.f32.xlu0 %v2322
        %v2324 = vpop.xlane.xlu0 %2323
        %2325 = vadd.xlane.f32.xlu0 %v2011
        %v2326 = vpop.xlane.xlu0 %2325
        %v2327 = vsel %vm2231, %v2012, 0.0
        %2328 = vadd.xlane.f32.xlu0 %v2327
        %v2329 = vpop.xlane.xlu0 %2328
        %2330 = vadd.xlane.f32.xlu0 %v2013
        %v2331 = vpop.xlane.xlu0 %2330
        %v2332 = vsel %vm2231, %v2014, 0.0
        %2333 = vadd.xlane.f32.xlu0 %v2332
        %v2334 = vpop.xlane.xlu0 %2333
        %2335 = vadd.xlane.f32.xlu0 %v2015
        %v2336 = vpop.xlane.xlu0 %2335
        %v2337 = vsel %vm2231, %v2016, 0.0
        %2338 = vadd.xlane.f32.xlu0 %v2337
        %v2339 = vpop.xlane.xlu0 %2338
        %2340 = vadd.xlane.f32.xlu0 %v2017
        %v2341 = vpop.xlane.xlu0 %2340
        %v2342 = vsel %vm2231, %v2018, 0.0
        %2343 = vadd.xlane.f32.xlu0 %v2342
        %v2344 = vpop.xlane.xlu0 %2343
        %2345 = vadd.xlane.f32.xlu0 %v2019
        %v2346 = vpop.xlane.xlu0 %2345
        %v2347 = vsel %vm2231, %v2020, 0.0
        %2348 = vadd.xlane.f32.xlu0 %v2347
        %v2349 = vpop.xlane.xlu0 %2348
        %2350 = vadd.xlane.f32.xlu0 %v2021
        %v2351 = vpop.xlane.xlu0 %2350
        %v2352 = vsel %vm2231, %v2022, 0.0
        %2353 = vadd.xlane.f32.xlu0 %v2352
        %v2354 = vpop.xlane.xlu0 %2353
        %2355 = vadd.xlane.f32.xlu0 %v2023
        %v2356 = vpop.xlane.xlu0 %2355
        %v2357 = vsel %vm2231, %v2024, 0.0
        %2358 = vadd.xlane.f32.xlu0 %v2357
        %v2359 = vpop.xlane.xlu0 %2358
        %2360 = vadd.xlane.f32.xlu0 %v2025
        %v2361 = vpop.xlane.xlu0 %2360
        %v2362 = vsel %vm2231, %v2026, 0.0
        %2363 = vadd.xlane.f32.xlu0 %v2362
        %v2364 = vpop.xlane.xlu0 %2363
        %2365 = vadd.xlane.f32.xlu0 %v2027
        %v2366 = vpop.xlane.xlu0 %2365
        %v2367 = vsel %vm2231, %v2028, 0.0
        %2368 = vadd.xlane.f32.xlu0 %v2367
        %v2369 = vpop.xlane.xlu0 %2368
        %2370 = vadd.xlane.f32.xlu0 %v2029
        %v2371 = vpop.xlane.xlu0 %2370
        %v2372 = vsel %vm2231, %v2030, 0.0
        %2373 = vadd.xlane.f32.xlu0 %v2372
        %v2374 = vpop.xlane.xlu0 %2373
        %2375 = vadd.xlane.f32.xlu0 %v2031
        %v2376 = vpop.xlane.xlu0 %2375
        %v2377 = vsel %vm2231, %v2032, 0.0
        %2378 = vadd.xlane.f32.xlu0 %v2377
        %v2379 = vpop.xlane.xlu0 %2378
        %2380 = vadd.xlane.f32.xlu0 %v2033
        %v2381 = vpop.xlane.xlu0 %2380
        %v2382 = vsel %vm2231, %v2034, 0.0
        %2383 = vadd.xlane.f32.xlu0 %v2382
        %v2384 = vpop.xlane.xlu0 %2383
        %2385 = vadd.xlane.f32.xlu0 %v2035
        %v2386 = vpop.xlane.xlu0 %2385
        %v2387 = vsel %vm2231, %v2036, 0.0
        %2388 = vadd.xlane.f32.xlu0 %v2387
        %v2389 = vpop.xlane.xlu0 %2388
        %2390 = vadd.xlane.f32.xlu0 %v2037
        %v2391 = vpop.xlane.xlu0 %2390
        %v2392 = vsel %vm2231, %v2038, 0.0
        %2393 = vadd.xlane.f32.xlu0 %v2392
        %v2394 = vpop.xlane.xlu0 %2393
        %2395 = vadd.xlane.f32.xlu0 %v2039
        %v2396 = vpop.xlane.xlu0 %2395
        %v2397 = vsel %vm2231, %v2040, 0.0
        %2398 = vadd.xlane.f32.xlu0 %v2397
        %v2399 = vpop.xlane.xlu0 %2398
        %2400 = vadd.xlane.f32.xlu0 %v2041
        %v2401 = vpop.xlane.xlu0 %2400
        %v2402 = vsel %vm2231, %v2042, 0.0
        %2403 = vadd.xlane.f32.xlu0 %v2402
        %v2404 = vpop.xlane.xlu0 %2403
        %2405 = vadd.xlane.f32.xlu0 %v2043
        %v2406 = vpop.xlane.xlu0 %2405
        %v2407 = vsel %vm2231, %v2044, 0.0
        %2408 = vadd.xlane.f32.xlu0 %v2407
        %v2409 = vpop.xlane.xlu0 %2408
        %2410 = vadd.xlane.f32.xlu0 %v2045
        %v2411 = vpop.xlane.xlu0 %2410
        %v2412 = vsel %vm2231, %v2046, 0.0
        %2413 = vadd.xlane.f32.xlu0 %v2412
        %v2414 = vpop.xlane.xlu0 %2413
        %2415 = vadd.xlane.f32.xlu0 %v2047
        %v2416 = vpop.xlane.xlu0 %2415
        %v2417 = vsel %vm2231, %v2048, 0.0
        %2418 = vadd.xlane.f32.xlu0 %v2417
        %v2419 = vpop.xlane.xlu0 %2418
        %2420 = vadd.xlane.f32.xlu0 %v2049
        %v2421 = vpop.xlane.xlu0 %2420
        %v2422 = vsel %vm2231, %v2050, 0.0
        %2423 = vadd.xlane.f32.xlu0 %v2422
        %v2424 = vpop.xlane.xlu0 %2423
        %2425 = vadd.xlane.f32.xlu0 %v2051
        %v2426 = vpop.xlane.xlu0 %2425
        %v2427 = vsel %vm2231, %v2052, 0.0
        %2428 = vadd.xlane.f32.xlu0 %v2427
        %v2429 = vpop.xlane.xlu0 %2428
        %2430 = vadd.xlane.f32.xlu0 %v2053
        %v2431 = vpop.xlane.xlu0 %2430
        %v2432 = vsel %vm2231, %v2054, 0.0
        %2433 = vadd.xlane.f32.xlu0 %v2432
        %v2434 = vpop.xlane.xlu0 %2433
        %2435 = vadd.xlane.f32.xlu0 %v2055
        %v2436 = vpop.xlane.xlu0 %2435
        %v2437 = vsel %vm2231, %v2056, 0.0
        %2438 = vadd.xlane.f32.xlu0 %v2437
        %v2439 = vpop.xlane.xlu0 %2438
        %2440 = vadd.xlane.f32.xlu0 %v2057
        %v2441 = vpop.xlane.xlu0 %2440
        %v2442 = vsel %vm2231, %v2058, 0.0
        %2443 = vadd.xlane.f32.xlu0 %v2442
        %v2444 = vpop.xlane.xlu0 %2443
        %2445 = vadd.xlane.f32.xlu0 %v2059
        %v2446 = vpop.xlane.xlu0 %2445
        %v2447 = vsel %vm2231, %v2060, 0.0
        %2448 = vadd.xlane.f32.xlu0 %v2447
        %v2449 = vpop.xlane.xlu0 %2448
        %2450 = vadd.xlane.f32.xlu0 %v2061
        %v2451 = vpop.xlane.xlu0 %2450
        %v2452 = vsel %vm2231, %v2062, 0.0
        %2453 = vadd.xlane.f32.xlu0 %v2452
        %v2454 = vpop.xlane.xlu0 %2453
        %2455 = vadd.xlane.f32.xlu0 %v2063
        %v2456 = vpop.xlane.xlu0 %2455
        %v2457 = vsel %vm2231, %v2064, 0.0
        %2458 = vadd.xlane.f32.xlu0 %v2457
        %v2459 = vpop.xlane.xlu0 %2458
        %2460 = vadd.xlane.f32.xlu0 %v2065
        %v2461 = vpop.xlane.xlu0 %2460
        %v2462 = vsel %vm2231, %v2066, 0.0
        %2463 = vadd.xlane.f32.xlu0 %v2462
        %v2464 = vpop.xlane.xlu0 %2463
        %2465 = vadd.xlane.f32.xlu0 %v2067
        %v2466 = vpop.xlane.xlu0 %2465
        %v2467 = vsel %vm2231, %v2068, 0.0
        %2468 = vadd.xlane.f32.xlu0 %v2467
        %v2469 = vpop.xlane.xlu0 %2468
        %2470 = vadd.xlane.f32.xlu0 %v2069
        %v2471 = vpop.xlane.xlu0 %2470
        %v2472 = vsel %vm2231, %v2070, 0.0
        %2473 = vadd.xlane.f32.xlu0 %v2472
        %v2474 = vpop.xlane.xlu0 %2473
        %2475 = vadd.xlane.f32.xlu0 %v2071
        %v2476 = vpop.xlane.xlu0 %2475
        %v2477 = vsel %vm2231, %v2072, 0.0
        %2478 = vadd.xlane.f32.xlu0 %v2477
        %v2479 = vpop.xlane.xlu0 %2478
        %2480 = vadd.xlane.f32.xlu0 %v2073
        %v2481 = vpop.xlane.xlu0 %2480
        %v2482 = vsel %vm2231, %v2074, 0.0
        %2483 = vadd.xlane.f32.xlu0 %v2482
        %v2484 = vpop.xlane.xlu0 %2483
        %2485 = vadd.xlane.f32.xlu0 %v2075
        %v2486 = vpop.xlane.xlu0 %2485
        %v2487 = vsel %vm2231, %v2076, 0.0
        %2488 = vadd.xlane.f32.xlu0 %v2487
        %v2489 = vpop.xlane.xlu0 %2488
        %2490 = vadd.xlane.f32.xlu0 %v2077
        %v2491 = vpop.xlane.xlu0 %2490
        %v2492 = vsel %vm2231, %v2078, 0.0
        %2493 = vadd.xlane.f32.xlu0 %v2492
        %v2494 = vpop.xlane.xlu0 %2493
        %2495 = vadd.xlane.f32.xlu0 %v2079
        %v2496 = vpop.xlane.xlu0 %2495
        %v2497 = vsel %vm2231, %v2080, 0.0
        %2498 = vadd.xlane.f32.xlu0 %v2497
        %v2499 = vpop.xlane.xlu0 %2498
        %2500 = vadd.xlane.f32.xlu0 %v2081
        %v2501 = vpop.xlane.xlu0 %2500
        %v2502 = vsel %vm2231, %v2082, 0.0
        %2503 = vadd.xlane.f32.xlu0 %v2502
        %v2504 = vpop.xlane.xlu0 %2503
        %2505 = vadd.xlane.f32.xlu0 %v2083
        %v2506 = vpop.xlane.xlu0 %2505
        %v2507 = vsel %vm2231, %v2084, 0.0
        %2508 = vadd.xlane.f32.xlu0 %v2507
        %v2509 = vpop.xlane.xlu0 %2508
        %2510 = vadd.xlane.f32.xlu0 %v2085
        %v2511 = vpop.xlane.xlu0 %2510
        %v2512 = vsel %vm2231, %v2086, 0.0
        %2513 = vadd.xlane.f32.xlu0 %v2512
        %v2514 = vpop.xlane.xlu0 %2513
        %2515 = vadd.xlane.f32.xlu0 %v2087
        %v2516 = vpop.xlane.xlu0 %2515
        %v2517 = vsel %vm2231, %v2088, 0.0
        %2518 = vadd.xlane.f32.xlu0 %v2517
        %v2519 = vpop.xlane.xlu0 %2518
        %2520 = vadd.xlane.f32.xlu0 %v2089
        %v2521 = vpop.xlane.xlu0 %2520
        %v2522 = vsel %vm2231, %v2090, 0.0
        %2523 = vadd.xlane.f32.xlu0 %v2522
        %v2524 = vpop.xlane.xlu0 %2523
        %2525 = vadd.xlane.f32.xlu0 %v2091
        %v2526 = vpop.xlane.xlu0 %2525
        %v2527 = vsel %vm2231, %v2092, 0.0
        %2528 = vadd.xlane.f32.xlu0 %v2527
        %v2529 = vpop.xlane.xlu0 %2528
        %2530 = vadd.xlane.f32.xlu0 %v2093
        %v2531 = vpop.xlane.xlu0 %2530
        %v2532 = vsel %vm2231, %v2094, 0.0
        %2533 = vadd.xlane.f32.xlu0 %v2532
        %v2534 = vpop.xlane.xlu0 %2533
        %2535 = vadd.xlane.f32.xlu0 %v2095
        %v2536 = vpop.xlane.xlu0 %2535
        %v2537 = vsel %vm2231, %v2096, 0.0
        %2538 = vadd.xlane.f32.xlu0 %v2537
        %v2539 = vpop.xlane.xlu0 %2538
        %2540 = vadd.xlane.f32.xlu0 %v2097
        %v2541 = vpop.xlane.xlu0 %2540
        %v2542 = vsel %vm2231, %v2098, 0.0
        %2543 = vadd.xlane.f32.xlu0 %v2542
        %v2544 = vpop.xlane.xlu0 %2543
        %2545 = vadd.xlane.f32.xlu0 %v2099
        %v2546 = vpop.xlane.xlu0 %2545
        %v2547 = vsel %vm2231, %v2100, 0.0
        %2548 = vadd.xlane.f32.xlu0 %v2547
        %v2549 = vpop.xlane.xlu0 %2548
        %2550 = vadd.xlane.f32.xlu0 %v2101
        %v2551 = vpop.xlane.xlu0 %2550
        %v2552 = vsel %vm2231, %v2102, 0.0
        %2553 = vadd.xlane.f32.xlu0 %v2552
        %v2554 = vpop.xlane.xlu0 %2553
        %2555 = vadd.xlane.f32.xlu0 %v2103
        %v2556 = vpop.xlane.xlu0 %2555
        %v2557 = vsel %vm2231, %v2104, 0.0
        %2558 = vadd.xlane.f32.xlu0 %v2557
        %v2559 = vpop.xlane.xlu0 %2558
        %2560 = vadd.xlane.f32.xlu0 %v2105
        %v2561 = vpop.xlane.xlu0 %2560
        %v2562 = vsel %vm2231, %v2106, 0.0
        %2563 = vadd.xlane.f32.xlu0 %v2562
        %v2564 = vpop.xlane.xlu0 %2563
        %2565 = vadd.xlane.f32.xlu0 %v2107
        %v2566 = vpop.xlane.xlu0 %2565
        %v2567 = vsel %vm2231, %v2108, 0.0
        %2568 = vadd.xlane.f32.xlu0 %v2567
        %v2569 = vpop.xlane.xlu0 %2568
        %2570 = vadd.xlane.f32.xlu0 %v2109
        %v2571 = vpop.xlane.xlu0 %2570
        %v2572 = vsel %vm2231, %v2110, 0.0
        %2573 = vadd.xlane.f32.xlu0 %v2572
        %v2574 = vpop.xlane.xlu0 %2573
        %2575 = vadd.xlane.f32.xlu0 %v2111
        %v2576 = vpop.xlane.xlu0 %2575
        %v2577 = vsel %vm2231, %v2112, 0.0
        %2578 = vadd.xlane.f32.xlu0 %v2577
        %v2579 = vpop.xlane.xlu0 %2578
        %2580 = vadd.xlane.f32.xlu0 %v2113
        %v2581 = vpop.xlane.xlu0 %2580
        %v2582 = vsel %vm2231, %v2114, 0.0
        %2583 = vadd.xlane.f32.xlu0 %v2582
        %v2584 = vpop.xlane.xlu0 %2583
        %2585 = vadd.xlane.f32.xlu0 %v2115
        %v2586 = vpop.xlane.xlu0 %2585
        %v2587 = vsel %vm2231, %v2116, 0.0
        %2588 = vadd.xlane.f32.xlu0 %v2587
        %v2589 = vpop.xlane.xlu0 %2588
        %2590 = vadd.xlane.f32.xlu0 %v2117
        %v2591 = vpop.xlane.xlu0 %2590
        %v2592 = vsel %vm2231, %v2118, 0.0
        %2593 = vadd.xlane.f32.xlu0 %v2592
        %v2594 = vpop.xlane.xlu0 %2593
        %2595 = vadd.xlane.f32.xlu0 %v2119
        %v2596 = vpop.xlane.xlu0 %2595
        %v2597 = vsel %vm2231, %v2120, 0.0
        %2598 = vadd.xlane.f32.xlu0 %v2597
        %v2599 = vpop.xlane.xlu0 %2598
        %2600 = vadd.xlane.f32.xlu0 %v2121
        %v2601 = vpop.xlane.xlu0 %2600
        %v2602 = vsel %vm2231, %v2122, 0.0
        %2603 = vadd.xlane.f32.xlu0 %v2602
        %v2604 = vpop.xlane.xlu0 %2603
        %2605 = vadd.xlane.f32.xlu0 %v2123
        %v2606 = vpop.xlane.xlu0 %2605
        %v2607 = vsel %vm2231, %v2124, 0.0
        %2608 = vadd.xlane.f32.xlu0 %v2607
        %v2609 = vpop.xlane.xlu0 %2608
        %2610 = vadd.xlane.f32.xlu0 %v2125
        %v2611 = vpop.xlane.xlu0 %2610
        %v2612 = vsel %vm2231, %v2126, 0.0
        %2613 = vadd.xlane.f32.xlu0 %v2612
        %v2614 = vpop.xlane.xlu0 %2613
        %2615 = vadd.xlane.f32.xlu0 %v2127
        %v2616 = vpop.xlane.xlu0 %2615
        %v2617 = vsel %vm2231, %v2128, 0.0
        %2618 = vadd.xlane.f32.xlu0 %v2617
        %v2619 = vpop.xlane.xlu0 %2618
        %2620 = vadd.xlane.f32.xlu0 %v2129
        %v2621 = vpop.xlane.xlu0 %2620
        %v2622 = vsel %vm2231, %v2130, 0.0
        %2623 = vadd.xlane.f32.xlu0 %v2622
        %v2624 = vpop.xlane.xlu0 %2623
        %2625 = vadd.xlane.f32.xlu0 %v2131
        %v2626 = vpop.xlane.xlu0 %2625
        %v2627 = vsel %vm2231, %v2132, 0.0
        %2628 = vadd.xlane.f32.xlu0 %v2627
        %v2629 = vpop.xlane.xlu0 %2628
        %2630 = vadd.xlane.f32.xlu0 %v2133
        %v2631 = vpop.xlane.xlu0 %2630
        %v2632 = vsel %vm2231, %v2134, 0.0
        %2633 = vadd.xlane.f32.xlu0 %v2632
        %v2634 = vpop.xlane.xlu0 %2633
        %2635 = vadd.xlane.f32.xlu0 %v2135
        %v2636 = vpop.xlane.xlu0 %2635
        %v2637 = vsel %vm2231, %v2136, 0.0
        %2638 = vadd.xlane.f32.xlu0 %v2637
        %v2639 = vpop.xlane.xlu0 %2638
        %2640 = vadd.xlane.f32.xlu0 %v2137
        %v2641 = vpop.xlane.xlu0 %2640
        %v2642 = vsel %vm2231, %v2138, 0.0
        %2643 = vadd.xlane.f32.xlu0 %v2642
        %v2644 = vpop.xlane.xlu0 %2643
        %2645 = vadd.xlane.f32.xlu0 %v2139
        %v2646 = vpop.xlane.xlu0 %2645
        %v2647 = vsel %vm2231, %v2140, 0.0
        %2648 = vadd.xlane.f32.xlu0 %v2647
        %v2649 = vpop.xlane.xlu0 %2648
        %2650 = vadd.xlane.f32.xlu0 %v2141
        %v2651 = vpop.xlane.xlu0 %2650
        %v2652 = vsel %vm2231, %v2142, 0.0
        %2653 = vadd.xlane.f32.xlu0 %v2652
        %v2654 = vpop.xlane.xlu0 %2653
        %2655 = vadd.xlane.f32.xlu0 %v2143
        %v2656 = vpop.xlane.xlu0 %2655
        %v2657 = vsel %vm2231, %v2144, 0.0
        %2658 = vadd.xlane.f32.xlu0 %v2657
        %v2659 = vpop.xlane.xlu0 %2658
        %2660 = vadd.xlane.f32.xlu0 %v2145
        %v2661 = vpop.xlane.xlu0 %2660
        %v2662 = vsel %vm2231, %v2146, 0.0
        %2663 = vadd.xlane.f32.xlu0 %v2662
        %v2664 = vpop.xlane.xlu0 %2663
        %2665 = vadd.xlane.f32.xlu0 %v2147
        %v2666 = vpop.xlane.xlu0 %2665
        %v2667 = vsel %vm2231, %v2148, 0.0
        %2668 = vadd.xlane.f32.xlu0 %v2667
        %v2669 = vpop.xlane.xlu0 %2668
        %2670 = vadd.xlane.f32.xlu0 %v2149
        %v2671 = vpop.xlane.xlu0 %2670
        %v2672 = vsel %vm2231, %v2150, 0.0
        %2673 = vadd.xlane.f32.xlu0 %v2672
        %v2674 = vpop.xlane.xlu0 %2673
        %2675 = vadd.xlane.f32.xlu0 %v2151
        %v2676 = vpop.xlane.xlu0 %2675
        %v2677 = vsel %vm2231, %v2152, 0.0
        %2678 = vadd.xlane.f32.xlu0 %v2677
        %v2679 = vpop.xlane.xlu0 %2678
        %2680 = vadd.xlane.f32.xlu0 %v2153
        %v2681 = vpop.xlane.xlu0 %2680
        %v2682 = vsel %vm2231, %v2154, 0.0
        %2683 = vadd.xlane.f32.xlu0 %v2682
        %v2684 = vpop.xlane.xlu0 %2683
        %2685 = vadd.xlane.f32.xlu0 %v2155
        %v2686 = vpop.xlane.xlu0 %2685
        %v2687 = vsel %vm2231, %v2156, 0.0
        %2688 = vadd.xlane.f32.xlu0 %v2687
        %v2689 = vpop.xlane.xlu0 %2688
        %2690 = vadd.xlane.f32.xlu0 %v2157
        %v2691 = vpop.xlane.xlu0 %2690
        %v2692 = vsel %vm2231, %v2158, 0.0
        %2693 = vadd.xlane.f32.xlu0 %v2692
        %v2694 = vpop.xlane.xlu0 %2693
        %2695 = vadd.xlane.f32.xlu0 %v2159
        %v2696 = vpop.xlane.xlu0 %2695
        %v2697 = vsel %vm2231, %v2160, 0.0
        %2698 = vadd.xlane.f32.xlu0 %v2697
        %v2699 = vpop.xlane.xlu0 %2698
        %2700 = vadd.xlane.f32.xlu0 %v2161
        %v2701 = vpop.xlane.xlu0 %2700
        %v2702 = vsel %vm2231, %v2162, 0.0
        %2703 = vadd.xlane.f32.xlu0 %v2702
        %v2704 = vpop.xlane.xlu0 %2703
        %2705 = vadd.xlane.f32.xlu0 %v2163
        %v2706 = vpop.xlane.xlu0 %2705
        %v2707 = vsel %vm2231, %v2164, 0.0
        %2708 = vadd.xlane.f32.xlu0 %v2707
        %v2709 = vpop.xlane.xlu0 %2708
        %2710 = vadd.xlane.f32.xlu0 %v2165
        %v2711 = vpop.xlane.xlu0 %2710
        %v2712 = vsel %vm2231, %v2166, 0.0
        %2713 = vadd.xlane.f32.xlu0 %v2712
        %v2714 = vpop.xlane.xlu0 %2713
        %2715 = vadd.xlane.f32.xlu0 %v2167
        %v2716 = vpop.xlane.xlu0 %2715
        %v2717 = vsel %vm2231, %v2168, 0.0
        %2718 = vadd.xlane.f32.xlu0 %v2717
        %v2719 = vpop.xlane.xlu0 %2718
        %2720 = vadd.xlane.f32.xlu0 %v2169
        %v2721 = vpop.xlane.xlu0 %2720
        %v2722 = vsel %vm2231, %v2170, 0.0
        %2723 = vadd.xlane.f32.xlu0 %v2722
        %v2724 = vpop.xlane.xlu0 %2723
        %2725 = vadd.xlane.f32.xlu0 %v2171
        %v2726 = vpop.xlane.xlu0 %2725
        %v2727 = vsel %vm2231, %v2172, 0.0
        %2728 = vadd.xlane.f32.xlu0 %v2727
        %v2729 = vpop.xlane.xlu0 %2728
        %2730 = vadd.xlane.f32.xlu0 %v2173
        %v2731 = vpop.xlane.xlu0 %2730
        %v2732 = vsel %vm2231, %v2174, 0.0
        %2733 = vadd.xlane.f32.xlu0 %v2732
        %v2734 = vpop.xlane.xlu0 %2733
        %2735 = vadd.xlane.f32.xlu0 %v2175
        %v2736 = vpop.xlane.xlu0 %2735
        %v2737 = vsel %vm2231, %v2176, 0.0
        %2738 = vadd.xlane.f32.xlu0 %v2737
        %v2739 = vpop.xlane.xlu0 %2738
        %2740 = vadd.xlane.f32.xlu0 %v2177
        %v2741 = vpop.xlane.xlu0 %2740
        %v2742 = vsel %vm2231, %v2178, 0.0
        %2743 = vadd.xlane.f32.xlu0 %v2742
        %v2744 = vpop.xlane.xlu0 %2743
        %2745 = vadd.xlane.f32.xlu0 %v2179
        %v2746 = vpop.xlane.xlu0 %2745
        %v2747 = vsel %vm2231, %v2180, 0.0
        %2748 = vadd.xlane.f32.xlu0 %v2747
        %v2749 = vpop.xlane.xlu0 %2748
        %2750 = vadd.xlane.f32.xlu0 %v2181
        %v2751 = vpop.xlane.xlu0 %2750
        %v2752 = vsel %vm2231, %v2182, 0.0
        %2753 = vadd.xlane.f32.xlu0 %v2752
        %v2754 = vpop.xlane.xlu0 %2753
        %2755 = vadd.xlane.f32.xlu0 %v2183
        %v2756 = vpop.xlane.xlu0 %2755
        %v2757 = vsel %vm2231, %v2184, 0.0
        %2758 = vadd.xlane.f32.xlu0 %v2757
        %v2759 = vpop.xlane.xlu0 %2758
        %2760 = vadd.xlane.f32.xlu0 %v2185
        %v2761 = vpop.xlane.xlu0 %2760
        %v2762 = vsel %vm2231, %v2186, 0.0
        %2763 = vadd.xlane.f32.xlu0 %v2762
        %v2764 = vpop.xlane.xlu0 %2763
        %2765 = vadd.xlane.f32.xlu0 %v2187
        %v2766 = vpop.xlane.xlu0 %2765
        %v2767 = vsel %vm2231, %v2188, 0.0
        %2768 = vadd.xlane.f32.xlu0 %v2767
        %v2769 = vpop.xlane.xlu0 %2768
        %2770 = vadd.xlane.f32.xlu0 %v2189
        %v2771 = vpop.xlane.xlu0 %2770
        %v2772 = vsel %vm2231, %v2190, 0.0
        %2773 = vadd.xlane.f32.xlu0 %v2772
        %v2774 = vpop.xlane.xlu0 %2773
        %2775 = vadd.xlane.f32.xlu0 %v2191
        %v2776 = vpop.xlane.xlu0 %2775
        %v2777 = vsel %vm2231, %v2192, 0.0
        %2778 = vadd.xlane.f32.xlu0 %v2777
        %v2779 = vpop.xlane.xlu0 %2778
        %2780 = vadd.xlane.f32.xlu0 %v2193
        %v2781 = vpop.xlane.xlu0 %2780
        %v2782 = vsel %vm2231, %v2194, 0.0
        %2783 = vadd.xlane.f32.xlu0 %v2782
        %v2784 = vpop.xlane.xlu0 %2783
        %2785 = vadd.xlane.f32.xlu0 %v2195
        %v2786 = vpop.xlane.xlu0 %2785
        %v2787 = vsel %vm2231, %v2196, 0.0
        %2788 = vadd.xlane.f32.xlu0 %v2787
        %v2789 = vpop.xlane.xlu0 %2788
        %2790 = vadd.xlane.f32.xlu0 %v2197
        %v2791 = vpop.xlane.xlu0 %2790
        %v2792 = vsel %vm2231, %v2198, 0.0
        %2793 = vadd.xlane.f32.xlu0 %v2792
        %v2794 = vpop.xlane.xlu0 %2793
        %2795 = vadd.xlane.f32.xlu0 %v2199
        %v2796 = vpop.xlane.xlu0 %2795
        %v2797 = vsel %vm2231, %v2200, 0.0
        %2798 = vadd.xlane.f32.xlu0 %v2797
        %v2799 = vpop.xlane.xlu0 %2798
        %2800 = vadd.xlane.f32.xlu0 %v2201
        %v2801 = vpop.xlane.xlu0 %2800
        %v2802 = vsel %vm2231, %v2202, 0.0
        %2803 = vadd.xlane.f32.xlu0 %v2802
        %v2804 = vpop.xlane.xlu0 %2803
        %2805 = vadd.xlane.f32.xlu0 %v2203
        %v2806 = vpop.xlane.xlu0 %2805
        %v2807 = vsel %vm2231, %v2204, 0.0
        %2808 = vadd.xlane.f32.xlu0 %v2807
        %v2809 = vpop.xlane.xlu0 %2808
        %2810 = vadd.xlane.f32.xlu0 %v2205
        %v2811 = vpop.xlane.xlu0 %2810
        %v2812 = vsel %vm2231, %v2206, 0.0
        %2813 = vadd.xlane.f32.xlu0 %v2812
        %v2814 = vpop.xlane.xlu0 %2813
        %2815 = vadd.xlane.f32.xlu0 %v2207
        %v2816 = vpop.xlane.xlu0 %2815
        %v2817 = vsel %vm2231, %v2208, 0.0
        %2818 = vadd.xlane.f32.xlu0 %v2817
        %v2819 = vpop.xlane.xlu0 %2818
        %2820 = vadd.xlane.f32.xlu0 %v2209
        %v2821 = vpop.xlane.xlu0 %2820
        %v2822 = vsel %vm2231, %v2210, 0.0
        %2823 = vadd.xlane.f32.xlu0 %v2822
        %v2824 = vpop.xlane.xlu0 %2823
        %2825 = vadd.xlane.f32.xlu0 %v2211
        %v2826 = vpop.xlane.xlu0 %2825
        %v2827 = vsel %vm2231, %v2212, 0.0
        %2828 = vadd.xlane.f32.xlu0 %v2827
        %v2829 = vpop.xlane.xlu0 %2828
        %2830 = vadd.xlane.f32.xlu0 %v2213
        %v2831 = vpop.xlane.xlu0 %2830
        %v2832 = vsel %vm2231, %v2214, 0.0
        %2833 = vadd.xlane.f32.xlu0 %v2832
        %v2834 = vpop.xlane.xlu0 %2833
        %2835 = vadd.xlane.f32.xlu0 %v2215
        %v2836 = vpop.xlane.xlu0 %2835
        %v2837 = vsel %vm2231, %v2216, 0.0
        %2838 = vadd.xlane.f32.xlu0 %v2837
        %v2839 = vpop.xlane.xlu0 %2838
        %2840 = vadd.xlane.f32.xlu0 %v2217
        %v2841 = vpop.xlane.xlu0 %2840
        %v2842 = vsel %vm2231, %v2218, 0.0
        %2843 = vadd.xlane.f32.xlu0 %v2842
        %v2844 = vpop.xlane.xlu0 %2843
        %2845 = vadd.xlane.f32.xlu0 %v2219
        %v2846 = vpop.xlane.xlu0 %2845
        %v2847 = vsel %vm2231, %v2220, 0.0
        %2848 = vadd.xlane.f32.xlu0 %v2847
        %v2849 = vpop.xlane.xlu0 %2848
        %2850 = vadd.xlane.f32.xlu0 %v2221
        %v2851 = vpop.xlane.xlu0 %2850
        %v2852 = vsel %vm2231, %v2222, 0.0
        %2853 = vadd.xlane.f32.xlu0 %v2852
        %v2854 = vpop.xlane.xlu0 %2853
        %2855 = vadd.xlane.f32.xlu0 %v2223
        %v2856 = vpop.xlane.xlu0 %2855
        %v2857 = vsel %vm2231, %v2224, 0.0
        %2858 = vadd.xlane.f32.xlu0 %v2857
        %v2859 = vpop.xlane.xlu0 %2858
        %2860 = vadd.xlane.f32.xlu0 %v2225
        %v2861 = vpop.xlane.xlu0 %2860
        %v2862 = vsel %vm2231, %v2226, 0.0
        %2863 = vadd.xlane.f32.xlu0 %v2862
        %v2864 = vpop.xlane.xlu0 %2863
        %2865 = vadd.xlane.f32.xlu0 %v2227
        %v2866 = vpop.xlane.xlu0 %2865
        %v2867 = vsel %vm2231, %v2228, 0.0
        %2868 = vadd.xlane.f32.xlu0 %v2867
        %v2869 = vpop.xlane.xlu0 %2868
        %v2870 = vlaneseq
        %v2871 = vand.u32 %v2870, 127
        %vm2872 = vcmp.eq.s32.totalorder %v2871, 0
        %v2873 = vsub.f32 0.0, %v2230
        %v2874 = vsub.f32 0.0, %v2234
        %v2875 = vsub.f32 0.0, %v2236
        %v2876 = vsub.f32 0.0, %v2239
        %v2877 = vsub.f32 0.0, %v2241
        %v2878 = vsub.f32 0.0, %v2244
        %v2879 = vsub.f32 0.0, %v2246
        %v2880 = vsub.f32 0.0, %v2249
        %v2881 = vsub.f32 0.0, %v2251
        %v2882 = vsub.f32 0.0, %v2254
        %v2883 = vsub.f32 0.0, %v2256
        %v2884 = vsub.f32 0.0, %v2259
        %v2885 = vsub.f32 0.0, %v2261
        %v2886 = vsub.f32 0.0, %v2264
        %v2887 = vsub.f32 0.0, %v2266
        %v2888 = vsub.f32 0.0, %v2269
        %v2889 = vsub.f32 0.0, %v2271
        %v2890 = vsub.f32 0.0, %v2274
        %v2891 = vsub.f32 0.0, %v2276
        %v2892 = vsub.f32 0.0, %v2279
        %v2893 = vsub.f32 0.0, %v2281
        %v2894 = vsub.f32 0.0, %v2284
        %v2895 = vsub.f32 0.0, %v2286
        %v2896 = vsub.f32 0.0, %v2289
        %v2897 = vsub.f32 0.0, %v2291
        %v2898 = vsub.f32 0.0, %v2294
        %v2899 = vsub.f32 0.0, %v2296
        %v2900 = vsub.f32 0.0, %v2299
        %v2901 = vsub.f32 0.0, %v2301
        %v2902 = vsub.f32 0.0, %v2304
        %v2903 = vsub.f32 0.0, %v2306
        %v2904 = vsub.f32 0.0, %v2309
        %v2905 = vsub.f32 0.0, %v2311
        %v2906 = vsub.f32 0.0, %v2314
        %v2907 = vsub.f32 0.0, %v2316
        %v2908 = vsub.f32 0.0, %v2319
        %v2909 = vsub.f32 0.0, %v2321
        %v2910 = vsub.f32 0.0, %v2324
        %v2911 = vsub.f32 0.0, %v2326
        %v2912 = vsub.f32 0.0, %v2329
        %v2913 = vsub.f32 0.0, %v2331
        %v2914 = vsub.f32 0.0, %v2334
        %v2915 = vsub.f32 0.0, %v2336
        %v2916 = vsub.f32 0.0, %v2339
        %v2917 = vsub.f32 0.0, %v2341
        %v2918 = vsub.f32 0.0, %v2344
        %v2919 = vsub.f32 0.0, %v2346
        %v2920 = vsub.f32 0.0, %v2349
        %v2921 = vsub.f32 0.0, %v2351
        %v2922 = vsub.f32 0.0, %v2354
        %v2923 = vsub.f32 0.0, %v2356
        %v2924 = vsub.f32 0.0, %v2359
        %v2925 = vsub.f32 0.0, %v2361
        %v2926 = vsub.f32 0.0, %v2364
        %v2927 = vsub.f32 0.0, %v2366
        %v2928 = vsub.f32 0.0, %v2369
        %v2929 = vsub.f32 0.0, %v2371
        %v2930 = vsub.f32 0.0, %v2374
        %v2931 = vsub.f32 0.0, %v2376
        %v2932 = vsub.f32 0.0, %v2379
        %v2933 = vsub.f32 0.0, %v2381
        %v2934 = vsub.f32 0.0, %v2384
        %v2935 = vsub.f32 0.0, %v2386
        %v2936 = vsub.f32 0.0, %v2389
        %v2937 = vsub.f32 0.0, %v2391
        %v2938 = vsub.f32 0.0, %v2394
        %v2939 = vsub.f32 0.0, %v2396
        %v2940 = vsub.f32 0.0, %v2399
        %v2941 = vsub.f32 0.0, %v2401
        %v2942 = vsub.f32 0.0, %v2404
        %v2943 = vsub.f32 0.0, %v2406
        %v2944 = vsub.f32 0.0, %v2409
        %v2945 = vsub.f32 0.0, %v2411
        %v2946 = vsub.f32 0.0, %v2414
        %v2947 = vsub.f32 0.0, %v2416
        %v2948 = vsub.f32 0.0, %v2419
        %v2949 = vsub.f32 0.0, %v2421
        %v2950 = vsub.f32 0.0, %v2424
        %v2951 = vsub.f32 0.0, %v2426
        %v2952 = vsub.f32 0.0, %v2429
        %v2953 = vsub.f32 0.0, %v2431
        %v2954 = vsub.f32 0.0, %v2434
        %v2955 = vsub.f32 0.0, %v2436
        %v2956 = vsub.f32 0.0, %v2439
        %v2957 = vsub.f32 0.0, %v2441
        %v2958 = vsub.f32 0.0, %v2444
        %v2959 = vsub.f32 0.0, %v2446
        %v2960 = vsub.f32 0.0, %v2449
        %v2961 = vsub.f32 0.0, %v2451
        %v2962 = vsub.f32 0.0, %v2454
        %v2963 = vsub.f32 0.0, %v2456
        %v2964 = vsub.f32 0.0, %v2459
        %v2965 = vsub.f32 0.0, %v2461
        %v2966 = vsub.f32 0.0, %v2464
        %v2967 = vsub.f32 0.0, %v2466
        %v2968 = vsub.f32 0.0, %v2469
        %v2969 = vsub.f32 0.0, %v2471
        %v2970 = vsub.f32 0.0, %v2474
        %v2971 = vsub.f32 0.0, %v2476
        %v2972 = vsub.f32 0.0, %v2479
        %v2973 = vsub.f32 0.0, %v2481
        %v2974 = vsub.f32 0.0, %v2484
        %v2975 = vsub.f32 0.0, %v2486
        %v2976 = vsub.f32 0.0, %v2489
        %v2977 = vsub.f32 0.0, %v2491
        %v2978 = vsub.f32 0.0, %v2494
        %v2979 = vsub.f32 0.0, %v2496
        %v2980 = vsub.f32 0.0, %v2499
        %v2981 = vsub.f32 0.0, %v2501
        %v2982 = vsub.f32 0.0, %v2504
        %v2983 = vsub.f32 0.0, %v2506
        %v2984 = vsub.f32 0.0, %v2509
        %v2985 = vsub.f32 0.0, %v2511
        %v2986 = vsub.f32 0.0, %v2514
        %v2987 = vsub.f32 0.0, %v2516
        %v2988 = vsub.f32 0.0, %v2519
        %v2989 = vsub.f32 0.0, %v2521
        %v2990 = vsub.f32 0.0, %v2524
        %v2991 = vsub.f32 0.0, %v2526
        %v2992 = vsub.f32 0.0, %v2529
        %v2993 = vsub.f32 0.0, %v2531
        %v2994 = vsub.f32 0.0, %v2534
        %v2995 = vsub.f32 0.0, %v2536
        %v2996 = vsub.f32 0.0, %v2539
        %v2997 = vsub.f32 0.0, %v2541
        %v2998 = vsub.f32 0.0, %v2544
        %v2999 = vsub.f32 0.0, %v2546
        %v3000 = vsub.f32 0.0, %v2549
        %v3001 = vsub.f32 0.0, %v2551
        %v3002 = vsub.f32 0.0, %v2554
        %v3003 = vsub.f32 0.0, %v2556
        %v3004 = vsub.f32 0.0, %v2559
        %v3005 = vsub.f32 0.0, %v2561
        %v3006 = vsub.f32 0.0, %v2564
        %v3007 = vsub.f32 0.0, %v2566
        %v3008 = vsub.f32 0.0, %v2569
        %v3009 = vsub.f32 0.0, %v2571
        %v3010 = vsub.f32 0.0, %v2574
        %v3011 = vsub.f32 0.0, %v2576
        %v3012 = vsub.f32 0.0, %v2579
        %v3013 = vsub.f32 0.0, %v2581
        %v3014 = vsub.f32 0.0, %v2584
        %v3015 = vsub.f32 0.0, %v2586
        %v3016 = vsub.f32 0.0, %v2589
        %v3017 = vsub.f32 0.0, %v2591
        %v3018 = vsub.f32 0.0, %v2594
        %v3019 = vsub.f32 0.0, %v2596
        %v3020 = vsub.f32 0.0, %v2599
        %v3021 = vsub.f32 0.0, %v2601
        %v3022 = vsub.f32 0.0, %v2604
        %v3023 = vsub.f32 0.0, %v2606
        %v3024 = vsub.f32 0.0, %v2609
        %v3025 = vsub.f32 0.0, %v2611
        %v3026 = vsub.f32 0.0, %v2614
        %v3027 = vsub.f32 0.0, %v2616
        %v3028 = vsub.f32 0.0, %v2619
        %v3029 = vsub.f32 0.0, %v2621
        %v3030 = vsub.f32 0.0, %v2624
        %v3031 = vsub.f32 0.0, %v2626
        %v3032 = vsub.f32 0.0, %v2629
        %v3033 = vsub.f32 0.0, %v2631
        %v3034 = vsub.f32 0.0, %v2634
        %v3035 = vsub.f32 0.0, %v2636
        %v3036 = vsub.f32 0.0, %v2639
        %v3037 = vsub.f32 0.0, %v2641
        %v3038 = vsub.f32 0.0, %v2644
        %v3039 = vsub.f32 0.0, %v2646
        %v3040 = vsub.f32 0.0, %v2649
        %v3041 = vsub.f32 0.0, %v2651
        %v3042 = vsub.f32 0.0, %v2654
        %v3043 = vsub.f32 0.0, %v2656
        %v3044 = vsub.f32 0.0, %v2659
        %v3045 = vsub.f32 0.0, %v2661
        %v3046 = vsub.f32 0.0, %v2664
        %v3047 = vsub.f32 0.0, %v2666
        %v3048 = vsub.f32 0.0, %v2669
        %v3049 = vsub.f32 0.0, %v2671
        %v3050 = vsub.f32 0.0, %v2674
        %v3051 = vsub.f32 0.0, %v2676
        %v3052 = vsub.f32 0.0, %v2679
        %v3053 = vsub.f32 0.0, %v2681
        %v3054 = vsub.f32 0.0, %v2684
        %v3055 = vsub.f32 0.0, %v2686
        %v3056 = vsub.f32 0.0, %v2689
        %v3057 = vsub.f32 0.0, %v2691
        %v3058 = vsub.f32 0.0, %v2694
        %v3059 = vsub.f32 0.0, %v2696
        %v3060 = vsub.f32 0.0, %v2699
        %v3061 = vsub.f32 0.0, %v2701
        %v3062 = vsub.f32 0.0, %v2704
        %v3063 = vsub.f32 0.0, %v2706
        %v3064 = vsub.f32 0.0, %v2709
        %v3065 = vsub.f32 0.0, %v2711
        %v3066 = vsub.f32 0.0, %v2714
        %v3067 = vsub.f32 0.0, %v2716
        %v3068 = vsub.f32 0.0, %v2719
        %v3069 = vsub.f32 0.0, %v2721
        %v3070 = vsub.f32 0.0, %v2724
        %v3071 = vsub.f32 0.0, %v2726
        %v3072 = vsub.f32 0.0, %v2729
        %v3073 = vsub.f32 0.0, %v2731
        %v3074 = vsub.f32 0.0, %v2734
        %v3075 = vsub.f32 0.0, %v2736
        %v3076 = vsub.f32 0.0, %v2739
        %v3077 = vsub.f32 0.0, %v2741
        %v3078 = vsub.f32 0.0, %v2744
        %v3079 = vsub.f32 0.0, %v2746
        %v3080 = vsub.f32 0.0, %v2749
        %v3081 = vsub.f32 0.0, %v2751
        %v3082 = vsub.f32 0.0, %v2754
        %v3083 = vsub.f32 0.0, %v2756
        %v3084 = vsub.f32 0.0, %v2759
        %v3085 = vsub.f32 0.0, %v2761
        %v3086 = vsub.f32 0.0, %v2764
        %v3087 = vsub.f32 0.0, %v2766
        %v3088 = vsub.f32 0.0, %v2769
        %v3089 = vsub.f32 0.0, %v2771
        %v3090 = vsub.f32 0.0, %v2774
        %v3091 = vsub.f32 0.0, %v2776
        %v3092 = vsub.f32 0.0, %v2779
        %v3093 = vsub.f32 0.0, %v2781
        %v3094 = vsub.f32 0.0, %v2784
        %v3095 = vsub.f32 0.0, %v2786
        %v3096 = vsub.f32 0.0, %v2789
        %v3097 = vsub.f32 0.0, %v2791
        %v3098 = vsub.f32 0.0, %v2794
        %v3099 = vsub.f32 0.0, %v2796
        %v3100 = vsub.f32 0.0, %v2799
        %v3101 = vsub.f32 0.0, %v2801
        %v3102 = vsub.f32 0.0, %v2804
        %v3103 = vsub.f32 0.0, %v2806
        %v3104 = vsub.f32 0.0, %v2809
        %v3105 = vsub.f32 0.0, %v2811
        %v3106 = vsub.f32 0.0, %v2814
        %v3107 = vsub.f32 0.0, %v2816
        %v3108 = vsub.f32 0.0, %v2819
        %v3109 = vsub.f32 0.0, %v2821
        %v3110 = vsub.f32 0.0, %v2824
        %v3111 = vsub.f32 0.0, %v2826
        %v3112 = vsub.f32 0.0, %v2829
        %v3113 = vsub.f32 0.0, %v2831
        %v3114 = vsub.f32 0.0, %v2834
        %v3115 = vsub.f32 0.0, %v2836
        %v3116 = vsub.f32 0.0, %v2839
        %v3117 = vsub.f32 0.0, %v2841
        %v3118 = vsub.f32 0.0, %v2844
        %v3119 = vsub.f32 0.0, %v2846
        %v3120 = vsub.f32 0.0, %v2849
        %v3121 = vsub.f32 0.0, %v2851
        %v3122 = vsub.f32 0.0, %v2854
        %v3123 = vsub.f32 0.0, %v2856
        %v3124 = vsub.f32 0.0, %v2859
        %v3125 = vsub.f32 0.0, %v2861
        %v3126 = vsub.f32 0.0, %v2864
        %v3127 = vsub.f32 0.0, %v2866
        %v3128 = vsub.f32 0.0, %v2869
        %v3385 = vlaneseq
        %v3386 = vshrl.u32 %v3385, 7
        %v3387 = vsub.s32 %v2871, %v3386
        %v3388 = vrot.slane %v2230, %v3387
        %v3389 = vadd.s32 %v2871, 4294967288
        %v3390 = vlaneseq
        %v3391 = vshrl.u32 %v3390, 7
        %v3392 = vsub.s32 %v3389, %v3391
        %v3393 = vrot.slane %v2234, %v3392
        %vm3394 = vcmask 130112
        %v3395 = vsel %vm3394, %v3393, %v3388
        %v3396 = vlaneseq
        %v3397 = vshrl.u32 %v3396, 7
        %v3398 = vsub.s32 %v2871, %v3397
        %v3399 = vrot.slane %v2236, %v3398
        %v3400 = vlaneseq
        %v3401 = vshrl.u32 %v3400, 7
        %v3402 = vsub.s32 %v3389, %v3401
        %v3403 = vrot.slane %v2239, %v3402
        %v3404 = vsel %vm3394, %v3403, %v3399
        %v3405 = vlaneseq
        %v3406 = vshrl.u32 %v3405, 7
        %v3407 = vsub.s32 %v2871, %v3406
        %v3408 = vrot.slane %v2241, %v3407
        %v3409 = vlaneseq
        %v3410 = vshrl.u32 %v3409, 7
        %v3411 = vsub.s32 %v3389, %v3410
        %v3412 = vrot.slane %v2244, %v3411
        %v3413 = vsel %vm3394, %v3412, %v3408
        %v3414 = vlaneseq
        %v3415 = vshrl.u32 %v3414, 7
        %v3416 = vsub.s32 %v2871, %v3415
        %v3417 = vrot.slane %v2246, %v3416
        %v3418 = vlaneseq
        %v3419 = vshrl.u32 %v3418, 7
        %v3420 = vsub.s32 %v3389, %v3419
        %v3421 = vrot.slane %v2249, %v3420
        %v3422 = vsel %vm3394, %v3421, %v3417
        %v3423 = vlaneseq
        %v3424 = vshrl.u32 %v3423, 7
        %v3425 = vsub.s32 %v2871, %v3424
        %v3426 = vrot.slane %v2251, %v3425
        %v3427 = vlaneseq
        %v3428 = vshrl.u32 %v3427, 7
        %v3429 = vsub.s32 %v3389, %v3428
        %v3430 = vrot.slane %v2254, %v3429
        %v3431 = vsel %vm3394, %v3430, %v3426
        %v3432 = vlaneseq
        %v3433 = vshrl.u32 %v3432, 7
        %v3434 = vsub.s32 %v2871, %v3433
        %v3435 = vrot.slane %v2256, %v3434
        %v3436 = vlaneseq
        %v3437 = vshrl.u32 %v3436, 7
        %v3438 = vsub.s32 %v3389, %v3437
        %v3439 = vrot.slane %v2259, %v3438
        %v3440 = vsel %vm3394, %v3439, %v3435
        %v3441 = vlaneseq
        %v3442 = vshrl.u32 %v3441, 7
        %v3443 = vsub.s32 %v2871, %v3442
        %v3444 = vrot.slane %v2261, %v3443
        %v3445 = vlaneseq
        %v3446 = vshrl.u32 %v3445, 7
        %v3447 = vsub.s32 %v3389, %v3446
        %v3448 = vrot.slane %v2264, %v3447
        %v3449 = vsel %vm3394, %v3448, %v3444
        %v3450 = vlaneseq
        %v3451 = vshrl.u32 %v3450, 7
        %v3452 = vsub.s32 %v2871, %v3451
        %v3453 = vrot.slane %v2266, %v3452
        %v3454 = vlaneseq
        %v3455 = vshrl.u32 %v3454, 7
        %v3456 = vsub.s32 %v3389, %v3455
        %v3457 = vrot.slane %v2269, %v3456
        %v3458 = vsel %vm3394, %v3457, %v3453
        %v3459 = vlaneseq
        %v3460 = vshrl.u32 %v3459, 7
        %v3461 = vsub.s32 %v2871, %v3460
        %v3462 = vrot.slane %v2271, %v3461
        %v3463 = vlaneseq
        %v3464 = vshrl.u32 %v3463, 7
        %v3465 = vsub.s32 %v3389, %v3464
        %v3466 = vrot.slane %v2274, %v3465
        %v3467 = vsel %vm3394, %v3466, %v3462
        %v3468 = vlaneseq
        %v3469 = vshrl.u32 %v3468, 7
        %v3470 = vsub.s32 %v2871, %v3469
        %v3471 = vrot.slane %v2276, %v3470
        %v3472 = vlaneseq
        %v3473 = vshrl.u32 %v3472, 7
        %v3474 = vsub.s32 %v3389, %v3473
        %v3475 = vrot.slane %v2279, %v3474
        %v3476 = vsel %vm3394, %v3475, %v3471
        %v3477 = vlaneseq
        %v3478 = vshrl.u32 %v3477, 7
        %v3479 = vsub.s32 %v2871, %v3478
        %v3480 = vrot.slane %v2281, %v3479
        %v3481 = vlaneseq
        %v3482 = vshrl.u32 %v3481, 7
        %v3483 = vsub.s32 %v3389, %v3482
        %v3484 = vrot.slane %v2284, %v3483
        %v3485 = vsel %vm3394, %v3484, %v3480
        %v3486 = vlaneseq
        %v3487 = vshrl.u32 %v3486, 7
        %v3488 = vsub.s32 %v2871, %v3487
        %v3489 = vrot.slane %v2286, %v3488
        %v3490 = vlaneseq
        %v3491 = vshrl.u32 %v3490, 7
        %v3492 = vsub.s32 %v3389, %v3491
        %v3493 = vrot.slane %v2289, %v3492
        %v3494 = vsel %vm3394, %v3493, %v3489
        %v3495 = vlaneseq
        %v3496 = vshrl.u32 %v3495, 7
        %v3497 = vsub.s32 %v2871, %v3496
        %v3498 = vrot.slane %v2291, %v3497
        %v3499 = vlaneseq
        %v3500 = vshrl.u32 %v3499, 7
        %v3501 = vsub.s32 %v3389, %v3500
        %v3502 = vrot.slane %v2294, %v3501
        %v3503 = vsel %vm3394, %v3502, %v3498
        %v3504 = vlaneseq
        %v3505 = vshrl.u32 %v3504, 7
        %v3506 = vsub.s32 %v2871, %v3505
        %v3507 = vrot.slane %v2296, %v3506
        %v3508 = vlaneseq
        %v3509 = vshrl.u32 %v3508, 7
        %v3510 = vsub.s32 %v3389, %v3509
        %v3511 = vrot.slane %v2299, %v3510
        %v3512 = vsel %vm3394, %v3511, %v3507
        %v3513 = vlaneseq
        %v3514 = vshrl.u32 %v3513, 7
        %v3515 = vsub.s32 %v2871, %v3514
        %v3516 = vrot.slane %v2301, %v3515
        %v3517 = vlaneseq
        %v3518 = vshrl.u32 %v3517, 7
        %v3519 = vsub.s32 %v3389, %v3518
        %v3520 = vrot.slane %v2304, %v3519
        %v3521 = vsel %vm3394, %v3520, %v3516
        %v3522 = vlaneseq
        %v3523 = vshrl.u32 %v3522, 7
        %v3524 = vsub.s32 %v2871, %v3523
        %v3525 = vrot.slane %v2306, %v3524
        %v3526 = vlaneseq
        %v3527 = vshrl.u32 %v3526, 7
        %v3528 = vsub.s32 %v3389, %v3527
        %v3529 = vrot.slane %v2309, %v3528
        %v3530 = vsel %vm3394, %v3529, %v3525
        %v3531 = vlaneseq
        %v3532 = vshrl.u32 %v3531, 7
        %v3533 = vsub.s32 %v2871, %v3532
        %v3534 = vrot.slane %v2311, %v3533
        %v3535 = vlaneseq
        %v3536 = vshrl.u32 %v3535, 7
        %v3537 = vsub.s32 %v3389, %v3536
        %v3538 = vrot.slane %v2314, %v3537
        %v3539 = vsel %vm3394, %v3538, %v3534
        %v3540 = vlaneseq
        %v3541 = vshrl.u32 %v3540, 7
        %v3542 = vsub.s32 %v2871, %v3541
        %v3543 = vrot.slane %v2316, %v3542
        %v3544 = vlaneseq
        %v3545 = vshrl.u32 %v3544, 7
        %v3546 = vsub.s32 %v3389, %v3545
        %v3547 = vrot.slane %v2319, %v3546
        %v3548 = vsel %vm3394, %v3547, %v3543
        %v3549 = vlaneseq
        %v3550 = vshrl.u32 %v3549, 7
        %v3551 = vsub.s32 %v2871, %v3550
        %v3552 = vrot.slane %v2321, %v3551
        %v3553 = vlaneseq
        %v3554 = vshrl.u32 %v3553, 7
        %v3555 = vsub.s32 %v3389, %v3554
        %v3556 = vrot.slane %v2324, %v3555
        %v3557 = vsel %vm3394, %v3556, %v3552
        %v3558 = vlaneseq
        %v3559 = vshrl.u32 %v3558, 7
        %v3560 = vsub.s32 %v2871, %v3559
        %v3561 = vrot.slane %v2326, %v3560
        %v3562 = vlaneseq
        %v3563 = vshrl.u32 %v3562, 7
        %v3564 = vsub.s32 %v3389, %v3563
        %v3565 = vrot.slane %v2329, %v3564
        %v3566 = vsel %vm3394, %v3565, %v3561
        %v3567 = vlaneseq
        %v3568 = vshrl.u32 %v3567, 7
        %v3569 = vsub.s32 %v2871, %v3568
        %v3570 = vrot.slane %v2331, %v3569
        %v3571 = vlaneseq
        %v3572 = vshrl.u32 %v3571, 7
        %v3573 = vsub.s32 %v3389, %v3572
        %v3574 = vrot.slane %v2334, %v3573
        %v3575 = vsel %vm3394, %v3574, %v3570
        %v3576 = vlaneseq
        %v3577 = vshrl.u32 %v3576, 7
        %v3578 = vsub.s32 %v2871, %v3577
        %v3579 = vrot.slane %v2336, %v3578
        %v3580 = vlaneseq
        %v3581 = vshrl.u32 %v3580, 7
        %v3582 = vsub.s32 %v3389, %v3581
        %v3583 = vrot.slane %v2339, %v3582
        %v3584 = vsel %vm3394, %v3583, %v3579
        %v3585 = vlaneseq
        %v3586 = vshrl.u32 %v3585, 7
        %v3587 = vsub.s32 %v2871, %v3586
        %v3588 = vrot.slane %v2341, %v3587
        %v3589 = vlaneseq
        %v3590 = vshrl.u32 %v3589, 7
        %v3591 = vsub.s32 %v3389, %v3590
        %v3592 = vrot.slane %v2344, %v3591
        %v3593 = vsel %vm3394, %v3592, %v3588
        %v3594 = vlaneseq
        %v3595 = vshrl.u32 %v3594, 7
        %v3596 = vsub.s32 %v2871, %v3595
        %v3597 = vrot.slane %v2346, %v3596
        %v3598 = vlaneseq
        %v3599 = vshrl.u32 %v3598, 7
        %v3600 = vsub.s32 %v3389, %v3599
        %v3601 = vrot.slane %v2349, %v3600
        %v3602 = vsel %vm3394, %v3601, %v3597
        %v3603 = vlaneseq
        %v3604 = vshrl.u32 %v3603, 7
        %v3605 = vsub.s32 %v2871, %v3604
        %v3606 = vrot.slane %v2351, %v3605
        %v3607 = vlaneseq
        %v3608 = vshrl.u32 %v3607, 7
        %v3609 = vsub.s32 %v3389, %v3608
        %v3610 = vrot.slane %v2354, %v3609
        %v3611 = vsel %vm3394, %v3610, %v3606
        %v3612 = vlaneseq
        %v3613 = vshrl.u32 %v3612, 7
        %v3614 = vsub.s32 %v2871, %v3613
        %v3615 = vrot.slane %v2356, %v3614
        %v3616 = vlaneseq
        %v3617 = vshrl.u32 %v3616, 7
        %v3618 = vsub.s32 %v3389, %v3617
        %v3619 = vrot.slane %v2359, %v3618
        %v3620 = vsel %vm3394, %v3619, %v3615
        %v3621 = vlaneseq
        %v3622 = vshrl.u32 %v3621, 7
        %v3623 = vsub.s32 %v2871, %v3622
        %v3624 = vrot.slane %v2361, %v3623
        %v3625 = vlaneseq
        %v3626 = vshrl.u32 %v3625, 7
        %v3627 = vsub.s32 %v3389, %v3626
        %v3628 = vrot.slane %v2364, %v3627
        %v3629 = vsel %vm3394, %v3628, %v3624
        %v3630 = vlaneseq
        %v3631 = vshrl.u32 %v3630, 7
        %v3632 = vsub.s32 %v2871, %v3631
        %v3633 = vrot.slane %v2366, %v3632
        %v3634 = vlaneseq
        %v3635 = vshrl.u32 %v3634, 7
        %v3636 = vsub.s32 %v3389, %v3635
        %v3637 = vrot.slane %v2369, %v3636
        %v3638 = vsel %vm3394, %v3637, %v3633
        %v3639 = vlaneseq
        %v3640 = vshrl.u32 %v3639, 7
        %v3641 = vsub.s32 %v2871, %v3640
        %v3642 = vrot.slane %v2371, %v3641
        %v3643 = vlaneseq
        %v3644 = vshrl.u32 %v3643, 7
        %v3645 = vsub.s32 %v3389, %v3644
        %v3646 = vrot.slane %v2374, %v3645
        %v3647 = vsel %vm3394, %v3646, %v3642
        %v3648 = vlaneseq
        %v3649 = vshrl.u32 %v3648, 7
        %v3650 = vsub.s32 %v2871, %v3649
        %v3651 = vrot.slane %v2376, %v3650
        %v3652 = vlaneseq
        %v3653 = vshrl.u32 %v3652, 7
        %v3654 = vsub.s32 %v3389, %v3653
        %v3655 = vrot.slane %v2379, %v3654
        %v3656 = vsel %vm3394, %v3655, %v3651
        %v3657 = vlaneseq
        %v3658 = vshrl.u32 %v3657, 7
        %v3659 = vsub.s32 %v2871, %v3658
        %v3660 = vrot.slane %v2381, %v3659
        %v3661 = vlaneseq
        %v3662 = vshrl.u32 %v3661, 7
        %v3663 = vsub.s32 %v3389, %v3662
        %v3664 = vrot.slane %v2384, %v3663
        %v3665 = vsel %vm3394, %v3664, %v3660
        %v3666 = vlaneseq
        %v3667 = vshrl.u32 %v3666, 7
        %v3668 = vsub.s32 %v2871, %v3667
        %v3669 = vrot.slane %v2386, %v3668
        %v3670 = vlaneseq
        %v3671 = vshrl.u32 %v3670, 7
        %v3672 = vsub.s32 %v3389, %v3671
        %v3673 = vrot.slane %v2389, %v3672
        %v3674 = vsel %vm3394, %v3673, %v3669
        %v3675 = vlaneseq
        %v3676 = vshrl.u32 %v3675, 7
        %v3677 = vsub.s32 %v2871, %v3676
        %v3678 = vrot.slane %v2391, %v3677
        %v3679 = vlaneseq
        %v3680 = vshrl.u32 %v3679, 7
        %v3681 = vsub.s32 %v3389, %v3680
        %v3682 = vrot.slane %v2394, %v3681
        %v3683 = vsel %vm3394, %v3682, %v3678
        %v3684 = vlaneseq
        %v3685 = vshrl.u32 %v3684, 7
        %v3686 = vsub.s32 %v2871, %v3685
        %v3687 = vrot.slane %v2396, %v3686
        %v3688 = vlaneseq
        %v3689 = vshrl.u32 %v3688, 7
        %v3690 = vsub.s32 %v3389, %v3689
        %v3691 = vrot.slane %v2399, %v3690
        %v3692 = vsel %vm3394, %v3691, %v3687
        %v3693 = vlaneseq
        %v3694 = vshrl.u32 %v3693, 7
        %v3695 = vsub.s32 %v2871, %v3694
        %v3696 = vrot.slane %v2401, %v3695
        %v3697 = vlaneseq
        %v3698 = vshrl.u32 %v3697, 7
        %v3699 = vsub.s32 %v3389, %v3698
        %v3700 = vrot.slane %v2404, %v3699
        %v3701 = vsel %vm3394, %v3700, %v3696
        %v3702 = vlaneseq
        %v3703 = vshrl.u32 %v3702, 7
        %v3704 = vsub.s32 %v2871, %v3703
        %v3705 = vrot.slane %v2406, %v3704
        %v3706 = vlaneseq
        %v3707 = vshrl.u32 %v3706, 7
        %v3708 = vsub.s32 %v3389, %v3707
        %v3709 = vrot.slane %v2409, %v3708
        %v3710 = vsel %vm3394, %v3709, %v3705
        %v3711 = vlaneseq
        %v3712 = vshrl.u32 %v3711, 7
        %v3713 = vsub.s32 %v2871, %v3712
        %v3714 = vrot.slane %v2411, %v3713
        %v3715 = vlaneseq
        %v3716 = vshrl.u32 %v3715, 7
        %v3717 = vsub.s32 %v3389, %v3716
        %v3718 = vrot.slane %v2414, %v3717
        %v3719 = vsel %vm3394, %v3718, %v3714
        %v3720 = vlaneseq
        %v3721 = vshrl.u32 %v3720, 7
        %v3722 = vsub.s32 %v2871, %v3721
        %v3723 = vrot.slane %v2416, %v3722
        %v3724 = vlaneseq
        %v3725 = vshrl.u32 %v3724, 7
        %v3726 = vsub.s32 %v3389, %v3725
        %v3727 = vrot.slane %v2419, %v3726
        %v3728 = vsel %vm3394, %v3727, %v3723
        %v3729 = vlaneseq
        %v3730 = vshrl.u32 %v3729, 7
        %v3731 = vsub.s32 %v2871, %v3730
        %v3732 = vrot.slane %v2421, %v3731
        %v3733 = vlaneseq
        %v3734 = vshrl.u32 %v3733, 7
        %v3735 = vsub.s32 %v3389, %v3734
        %v3736 = vrot.slane %v2424, %v3735
        %v3737 = vsel %vm3394, %v3736, %v3732
        %v3738 = vlaneseq
        %v3739 = vshrl.u32 %v3738, 7
        %v3740 = vsub.s32 %v2871, %v3739
        %v3741 = vrot.slane %v2426, %v3740
        %v3742 = vlaneseq
        %v3743 = vshrl.u32 %v3742, 7
        %v3744 = vsub.s32 %v3389, %v3743
        %v3745 = vrot.slane %v2429, %v3744
        %v3746 = vsel %vm3394, %v3745, %v3741
        %v3747 = vlaneseq
        %v3748 = vshrl.u32 %v3747, 7
        %v3749 = vsub.s32 %v2871, %v3748
        %v3750 = vrot.slane %v2431, %v3749
        %v3751 = vlaneseq
        %v3752 = vshrl.u32 %v3751, 7
        %v3753 = vsub.s32 %v3389, %v3752
        %v3754 = vrot.slane %v2434, %v3753
        %v3755 = vsel %vm3394, %v3754, %v3750
        %v3756 = vlaneseq
        %v3757 = vshrl.u32 %v3756, 7
        %v3758 = vsub.s32 %v2871, %v3757
        %v3759 = vrot.slane %v2436, %v3758
        %v3760 = vlaneseq
        %v3761 = vshrl.u32 %v3760, 7
        %v3762 = vsub.s32 %v3389, %v3761
        %v3763 = vrot.slane %v2439, %v3762
        %v3764 = vsel %vm3394, %v3763, %v3759
        %v3765 = vlaneseq
        %v3766 = vshrl.u32 %v3765, 7
        %v3767 = vsub.s32 %v2871, %v3766
        %v3768 = vrot.slane %v2441, %v3767
        %v3769 = vlaneseq
        %v3770 = vshrl.u32 %v3769, 7
        %v3771 = vsub.s32 %v3389, %v3770
        %v3772 = vrot.slane %v2444, %v3771
        %v3773 = vsel %vm3394, %v3772, %v3768
        %v3774 = vlaneseq
        %v3775 = vshrl.u32 %v3774, 7
        %v3776 = vsub.s32 %v2871, %v3775
        %v3777 = vrot.slane %v2446, %v3776
        %v3778 = vlaneseq
        %v3779 = vshrl.u32 %v3778, 7
        %v3780 = vsub.s32 %v3389, %v3779
        %v3781 = vrot.slane %v2449, %v3780
        %v3782 = vsel %vm3394, %v3781, %v3777
        %v3783 = vlaneseq
        %v3784 = vshrl.u32 %v3783, 7
        %v3785 = vsub.s32 %v2871, %v3784
        %v3786 = vrot.slane %v2451, %v3785
        %v3787 = vlaneseq
        %v3788 = vshrl.u32 %v3787, 7
        %v3789 = vsub.s32 %v3389, %v3788
        %v3790 = vrot.slane %v2454, %v3789
        %v3791 = vsel %vm3394, %v3790, %v3786
        %v3792 = vlaneseq
        %v3793 = vshrl.u32 %v3792, 7
        %v3794 = vsub.s32 %v2871, %v3793
        %v3795 = vrot.slane %v2456, %v3794
        %v3796 = vlaneseq
        %v3797 = vshrl.u32 %v3796, 7
        %v3798 = vsub.s32 %v3389, %v3797
        %v3799 = vrot.slane %v2459, %v3798
        %v3800 = vsel %vm3394, %v3799, %v3795
        %v3801 = vlaneseq
        %v3802 = vshrl.u32 %v3801, 7
        %v3803 = vsub.s32 %v2871, %v3802
        %v3804 = vrot.slane %v2461, %v3803
        %v3805 = vlaneseq
        %v3806 = vshrl.u32 %v3805, 7
        %v3807 = vsub.s32 %v3389, %v3806
        %v3808 = vrot.slane %v2464, %v3807
        %v3809 = vsel %vm3394, %v3808, %v3804
        %v3810 = vlaneseq
        %v3811 = vshrl.u32 %v3810, 7
        %v3812 = vsub.s32 %v2871, %v3811
        %v3813 = vrot.slane %v2466, %v3812
        %v3814 = vlaneseq
        %v3815 = vshrl.u32 %v3814, 7
        %v3816 = vsub.s32 %v3389, %v3815
        %v3817 = vrot.slane %v2469, %v3816
        %v3818 = vsel %vm3394, %v3817, %v3813
        %v3819 = vlaneseq
        %v3820 = vshrl.u32 %v3819, 7
        %v3821 = vsub.s32 %v2871, %v3820
        %v3822 = vrot.slane %v2471, %v3821
        %v3823 = vlaneseq
        %v3824 = vshrl.u32 %v3823, 7
        %v3825 = vsub.s32 %v3389, %v3824
        %v3826 = vrot.slane %v2474, %v3825
        %v3827 = vsel %vm3394, %v3826, %v3822
        %v3828 = vlaneseq
        %v3829 = vshrl.u32 %v3828, 7
        %v3830 = vsub.s32 %v2871, %v3829
        %v3831 = vrot.slane %v2476, %v3830
        %v3832 = vlaneseq
        %v3833 = vshrl.u32 %v3832, 7
        %v3834 = vsub.s32 %v3389, %v3833
        %v3835 = vrot.slane %v2479, %v3834
        %v3836 = vsel %vm3394, %v3835, %v3831
        %v3837 = vlaneseq
        %v3838 = vshrl.u32 %v3837, 7
        %v3839 = vsub.s32 %v2871, %v3838
        %v3840 = vrot.slane %v2481, %v3839
        %v3841 = vlaneseq
        %v3842 = vshrl.u32 %v3841, 7
        %v3843 = vsub.s32 %v3389, %v3842
        %v3844 = vrot.slane %v2484, %v3843
        %v3845 = vsel %vm3394, %v3844, %v3840
        %v3846 = vlaneseq
        %v3847 = vshrl.u32 %v3846, 7
        %v3848 = vsub.s32 %v2871, %v3847
        %v3849 = vrot.slane %v2486, %v3848
        %v3850 = vlaneseq
        %v3851 = vshrl.u32 %v3850, 7
        %v3852 = vsub.s32 %v3389, %v3851
        %v3853 = vrot.slane %v2489, %v3852
        %v3854 = vsel %vm3394, %v3853, %v3849
        %v3855 = vlaneseq
        %v3856 = vshrl.u32 %v3855, 7
        %v3857 = vsub.s32 %v2871, %v3856
        %v3858 = vrot.slane %v2491, %v3857
        %v3859 = vlaneseq
        %v3860 = vshrl.u32 %v3859, 7
        %v3861 = vsub.s32 %v3389, %v3860
        %v3862 = vrot.slane %v2494, %v3861
        %v3863 = vsel %vm3394, %v3862, %v3858
        %v3864 = vlaneseq
        %v3865 = vshrl.u32 %v3864, 7
        %v3866 = vsub.s32 %v2871, %v3865
        %v3867 = vrot.slane %v2496, %v3866
        %v3868 = vlaneseq
        %v3869 = vshrl.u32 %v3868, 7
        %v3870 = vsub.s32 %v3389, %v3869
        %v3871 = vrot.slane %v2499, %v3870
        %v3872 = vsel %vm3394, %v3871, %v3867
        %v3873 = vlaneseq
        %v3874 = vshrl.u32 %v3873, 7
        %v3875 = vsub.s32 %v2871, %v3874
        %v3876 = vrot.slane %v2501, %v3875
        %v3877 = vlaneseq
        %v3878 = vshrl.u32 %v3877, 7
        %v3879 = vsub.s32 %v3389, %v3878
        %v3880 = vrot.slane %v2504, %v3879
        %v3881 = vsel %vm3394, %v3880, %v3876
        %v3882 = vlaneseq
        %v3883 = vshrl.u32 %v3882, 7
        %v3884 = vsub.s32 %v2871, %v3883
        %v3885 = vrot.slane %v2506, %v3884
        %v3886 = vlaneseq
        %v3887 = vshrl.u32 %v3886, 7
        %v3888 = vsub.s32 %v3389, %v3887
        %v3889 = vrot.slane %v2509, %v3888
        %v3890 = vsel %vm3394, %v3889, %v3885
        %v3891 = vlaneseq
        %v3892 = vshrl.u32 %v3891, 7
        %v3893 = vsub.s32 %v2871, %v3892
        %v3894 = vrot.slane %v2511, %v3893
        %v3895 = vlaneseq
        %v3896 = vshrl.u32 %v3895, 7
        %v3897 = vsub.s32 %v3389, %v3896
        %v3898 = vrot.slane %v2514, %v3897
        %v3899 = vsel %vm3394, %v3898, %v3894
        %v3900 = vlaneseq
        %v3901 = vshrl.u32 %v3900, 7
        %v3902 = vsub.s32 %v2871, %v3901
        %v3903 = vrot.slane %v2516, %v3902
        %v3904 = vlaneseq
        %v3905 = vshrl.u32 %v3904, 7
        %v3906 = vsub.s32 %v3389, %v3905
        %v3907 = vrot.slane %v2519, %v3906
        %v3908 = vsel %vm3394, %v3907, %v3903
        %v3909 = vlaneseq
        %v3910 = vshrl.u32 %v3909, 7
        %v3911 = vsub.s32 %v2871, %v3910
        %v3912 = vrot.slane %v2521, %v3911
        %v3913 = vlaneseq
        %v3914 = vshrl.u32 %v3913, 7
        %v3915 = vsub.s32 %v3389, %v3914
        %v3916 = vrot.slane %v2524, %v3915
        %v3917 = vsel %vm3394, %v3916, %v3912
        %v3918 = vlaneseq
        %v3919 = vshrl.u32 %v3918, 7
        %v3920 = vsub.s32 %v2871, %v3919
        %v3921 = vrot.slane %v2526, %v3920
        %v3922 = vlaneseq
        %v3923 = vshrl.u32 %v3922, 7
        %v3924 = vsub.s32 %v3389, %v3923
        %v3925 = vrot.slane %v2529, %v3924
        %v3926 = vsel %vm3394, %v3925, %v3921
        %v3927 = vlaneseq
        %v3928 = vshrl.u32 %v3927, 7
        %v3929 = vsub.s32 %v2871, %v3928
        %v3930 = vrot.slane %v2531, %v3929
        %v3931 = vlaneseq
        %v3932 = vshrl.u32 %v3931, 7
        %v3933 = vsub.s32 %v3389, %v3932
        %v3934 = vrot.slane %v2534, %v3933
        %v3935 = vsel %vm3394, %v3934, %v3930
        %v3936 = vlaneseq
        %v3937 = vshrl.u32 %v3936, 7
        %v3938 = vsub.s32 %v2871, %v3937
        %v3939 = vrot.slane %v2536, %v3938
        %v3940 = vlaneseq
        %v3941 = vshrl.u32 %v3940, 7
        %v3942 = vsub.s32 %v3389, %v3941
        %v3943 = vrot.slane %v2539, %v3942
        %v3944 = vsel %vm3394, %v3943, %v3939
        %v3945 = vlaneseq
        %v3946 = vshrl.u32 %v3945, 7
        %v3947 = vsub.s32 %v2871, %v3946
        %v3948 = vrot.slane %v2541, %v3947
        %v3949 = vlaneseq
        %v3950 = vshrl.u32 %v3949, 7
        %v3951 = vsub.s32 %v3389, %v3950
        %v3952 = vrot.slane %v2544, %v3951
        %v3953 = vsel %vm3394, %v3952, %v3948
        %v3954 = vlaneseq
        %v3955 = vshrl.u32 %v3954, 7
        %v3956 = vsub.s32 %v2871, %v3955
        %v3957 = vrot.slane %v2546, %v3956
        %v3958 = vlaneseq
        %v3959 = vshrl.u32 %v3958, 7
        %v3960 = vsub.s32 %v3389, %v3959
        %v3961 = vrot.slane %v2549, %v3960
        %v3962 = vsel %vm3394, %v3961, %v3957
        %v3963 = vlaneseq
        %v3964 = vshrl.u32 %v3963, 7
        %v3965 = vsub.s32 %v2871, %v3964
        %v3966 = vrot.slane %v2551, %v3965
        %v3967 = vlaneseq
        %v3968 = vshrl.u32 %v3967, 7
        %v3969 = vsub.s32 %v3389, %v3968
        %v3970 = vrot.slane %v2554, %v3969
        %v3971 = vsel %vm3394, %v3970, %v3966
        %v3972 = vlaneseq
        %v3973 = vshrl.u32 %v3972, 7
        %v3974 = vsub.s32 %v2871, %v3973
        %v3975 = vrot.slane %v2556, %v3974
        %v3976 = vlaneseq
        %v3977 = vshrl.u32 %v3976, 7
        %v3978 = vsub.s32 %v3389, %v3977
        %v3979 = vrot.slane %v2559, %v3978
        %v3980 = vsel %vm3394, %v3979, %v3975
        %v3981 = vlaneseq
        %v3982 = vshrl.u32 %v3981, 7
        %v3983 = vsub.s32 %v2871, %v3982
        %v3984 = vrot.slane %v2561, %v3983
        %v3985 = vlaneseq
        %v3986 = vshrl.u32 %v3985, 7
        %v3987 = vsub.s32 %v3389, %v3986
        %v3988 = vrot.slane %v2564, %v3987
        %v3989 = vsel %vm3394, %v3988, %v3984
        %v3990 = vlaneseq
        %v3991 = vshrl.u32 %v3990, 7
        %v3992 = vsub.s32 %v2871, %v3991
        %v3993 = vrot.slane %v2566, %v3992
        %v3994 = vlaneseq
        %v3995 = vshrl.u32 %v3994, 7
        %v3996 = vsub.s32 %v3389, %v3995
        %v3997 = vrot.slane %v2569, %v3996
        %v3998 = vsel %vm3394, %v3997, %v3993
        %v3999 = vlaneseq
        %v4000 = vshrl.u32 %v3999, 7
        %v4001 = vsub.s32 %v2871, %v4000
        %v4002 = vrot.slane %v2571, %v4001
        %v4003 = vlaneseq
        %v4004 = vshrl.u32 %v4003, 7
        %v4005 = vsub.s32 %v3389, %v4004
        %v4006 = vrot.slane %v2574, %v4005
        %v4007 = vsel %vm3394, %v4006, %v4002
        %v4008 = vlaneseq
        %v4009 = vshrl.u32 %v4008, 7
        %v4010 = vsub.s32 %v2871, %v4009
        %v4011 = vrot.slane %v2576, %v4010
        %v4012 = vlaneseq
        %v4013 = vshrl.u32 %v4012, 7
        %v4014 = vsub.s32 %v3389, %v4013
        %v4015 = vrot.slane %v2579, %v4014
        %v4016 = vsel %vm3394, %v4015, %v4011
        %v4017 = vlaneseq
        %v4018 = vshrl.u32 %v4017, 7
        %v4019 = vsub.s32 %v2871, %v4018
        %v4020 = vrot.slane %v2581, %v4019
        %v4021 = vlaneseq
        %v4022 = vshrl.u32 %v4021, 7
        %v4023 = vsub.s32 %v3389, %v4022
        %v4024 = vrot.slane %v2584, %v4023
        %v4025 = vsel %vm3394, %v4024, %v4020
        %v4026 = vlaneseq
        %v4027 = vshrl.u32 %v4026, 7
        %v4028 = vsub.s32 %v2871, %v4027
        %v4029 = vrot.slane %v2586, %v4028
        %v4030 = vlaneseq
        %v4031 = vshrl.u32 %v4030, 7
        %v4032 = vsub.s32 %v3389, %v4031
        %v4033 = vrot.slane %v2589, %v4032
        %v4034 = vsel %vm3394, %v4033, %v4029
        %v4035 = vlaneseq
        %v4036 = vshrl.u32 %v4035, 7
        %v4037 = vsub.s32 %v2871, %v4036
        %v4038 = vrot.slane %v2591, %v4037
        %v4039 = vlaneseq
        %v4040 = vshrl.u32 %v4039, 7
        %v4041 = vsub.s32 %v3389, %v4040
        %v4042 = vrot.slane %v2594, %v4041
        %v4043 = vsel %vm3394, %v4042, %v4038
        %v4044 = vlaneseq
        %v4045 = vshrl.u32 %v4044, 7
        %v4046 = vsub.s32 %v2871, %v4045
        %v4047 = vrot.slane %v2596, %v4046
        %v4048 = vlaneseq
        %v4049 = vshrl.u32 %v4048, 7
        %v4050 = vsub.s32 %v3389, %v4049
        %v4051 = vrot.slane %v2599, %v4050
        %v4052 = vsel %vm3394, %v4051, %v4047
        %v4053 = vlaneseq
        %v4054 = vshrl.u32 %v4053, 7
        %v4055 = vsub.s32 %v2871, %v4054
        %v4056 = vrot.slane %v2601, %v4055
        %v4057 = vlaneseq
        %v4058 = vshrl.u32 %v4057, 7
        %v4059 = vsub.s32 %v3389, %v4058
        %v4060 = vrot.slane %v2604, %v4059
        %v4061 = vsel %vm3394, %v4060, %v4056
        %v4062 = vlaneseq
        %v4063 = vshrl.u32 %v4062, 7
        %v4064 = vsub.s32 %v2871, %v4063
        %v4065 = vrot.slane %v2606, %v4064
        %v4066 = vlaneseq
        %v4067 = vshrl.u32 %v4066, 7
        %v4068 = vsub.s32 %v3389, %v4067
        %v4069 = vrot.slane %v2609, %v4068
        %v4070 = vsel %vm3394, %v4069, %v4065
        %v4071 = vlaneseq
        %v4072 = vshrl.u32 %v4071, 7
        %v4073 = vsub.s32 %v2871, %v4072
        %v4074 = vrot.slane %v2611, %v4073
        %v4075 = vlaneseq
        %v4076 = vshrl.u32 %v4075, 7
        %v4077 = vsub.s32 %v3389, %v4076
        %v4078 = vrot.slane %v2614, %v4077
        %v4079 = vsel %vm3394, %v4078, %v4074
        %v4080 = vlaneseq
        %v4081 = vshrl.u32 %v4080, 7
        %v4082 = vsub.s32 %v2871, %v4081
        %v4083 = vrot.slane %v2616, %v4082
        %v4084 = vlaneseq
        %v4085 = vshrl.u32 %v4084, 7
        %v4086 = vsub.s32 %v3389, %v4085
        %v4087 = vrot.slane %v2619, %v4086
        %v4088 = vsel %vm3394, %v4087, %v4083
        %v4089 = vlaneseq
        %v4090 = vshrl.u32 %v4089, 7
        %v4091 = vsub.s32 %v2871, %v4090
        %v4092 = vrot.slane %v2621, %v4091
        %v4093 = vlaneseq
        %v4094 = vshrl.u32 %v4093, 7
        %v4095 = vsub.s32 %v3389, %v4094
        %v4096 = vrot.slane %v2624, %v4095
        %v4097 = vsel %vm3394, %v4096, %v4092
        %v4098 = vlaneseq
        %v4099 = vshrl.u32 %v4098, 7
        %v4100 = vsub.s32 %v2871, %v4099
        %v4101 = vrot.slane %v2626, %v4100
        %v4102 = vlaneseq
        %v4103 = vshrl.u32 %v4102, 7
        %v4104 = vsub.s32 %v3389, %v4103
        %v4105 = vrot.slane %v2629, %v4104
        %v4106 = vsel %vm3394, %v4105, %v4101
        %v4107 = vlaneseq
        %v4108 = vshrl.u32 %v4107, 7
        %v4109 = vsub.s32 %v2871, %v4108
        %v4110 = vrot.slane %v2631, %v4109
        %v4111 = vlaneseq
        %v4112 = vshrl.u32 %v4111, 7
        %v4113 = vsub.s32 %v3389, %v4112
        %v4114 = vrot.slane %v2634, %v4113
        %v4115 = vsel %vm3394, %v4114, %v4110
        %v4116 = vlaneseq
        %v4117 = vshrl.u32 %v4116, 7
        %v4118 = vsub.s32 %v2871, %v4117
        %v4119 = vrot.slane %v2636, %v4118
        %v4120 = vlaneseq
        %v4121 = vshrl.u32 %v4120, 7
        %v4122 = vsub.s32 %v3389, %v4121
        %v4123 = vrot.slane %v2639, %v4122
        %v4124 = vsel %vm3394, %v4123, %v4119
        %v4125 = vlaneseq
        %v4126 = vshrl.u32 %v4125, 7
        %v4127 = vsub.s32 %v2871, %v4126
        %v4128 = vrot.slane %v2641, %v4127
        %v4129 = vlaneseq
        %v4130 = vshrl.u32 %v4129, 7
        %v4131 = vsub.s32 %v3389, %v4130
        %v4132 = vrot.slane %v2644, %v4131
        %v4133 = vsel %vm3394, %v4132, %v4128
        %v4134 = vlaneseq
        %v4135 = vshrl.u32 %v4134, 7
        %v4136 = vsub.s32 %v2871, %v4135
        %v4137 = vrot.slane %v2646, %v4136
        %v4138 = vlaneseq
        %v4139 = vshrl.u32 %v4138, 7
        %v4140 = vsub.s32 %v3389, %v4139
        %v4141 = vrot.slane %v2649, %v4140
        %v4142 = vsel %vm3394, %v4141, %v4137
        %v4143 = vlaneseq
        %v4144 = vshrl.u32 %v4143, 7
        %v4145 = vsub.s32 %v2871, %v4144
        %v4146 = vrot.slane %v2651, %v4145
        %v4147 = vlaneseq
        %v4148 = vshrl.u32 %v4147, 7
        %v4149 = vsub.s32 %v3389, %v4148
        %v4150 = vrot.slane %v2654, %v4149
        %v4151 = vsel %vm3394, %v4150, %v4146
        %v4152 = vlaneseq
        %v4153 = vshrl.u32 %v4152, 7
        %v4154 = vsub.s32 %v2871, %v4153
        %v4155 = vrot.slane %v2656, %v4154
        %v4156 = vlaneseq
        %v4157 = vshrl.u32 %v4156, 7
        %v4158 = vsub.s32 %v3389, %v4157
        %v4159 = vrot.slane %v2659, %v4158
        %v4160 = vsel %vm3394, %v4159, %v4155
        %v4161 = vlaneseq
        %v4162 = vshrl.u32 %v4161, 7
        %v4163 = vsub.s32 %v2871, %v4162
        %v4164 = vrot.slane %v2661, %v4163
        %v4165 = vlaneseq
        %v4166 = vshrl.u32 %v4165, 7
        %v4167 = vsub.s32 %v3389, %v4166
        %v4168 = vrot.slane %v2664, %v4167
        %v4169 = vsel %vm3394, %v4168, %v4164
        %v4170 = vlaneseq
        %v4171 = vshrl.u32 %v4170, 7
        %v4172 = vsub.s32 %v2871, %v4171
        %v4173 = vrot.slane %v2666, %v4172
        %v4174 = vlaneseq
        %v4175 = vshrl.u32 %v4174, 7
        %v4176 = vsub.s32 %v3389, %v4175
        %v4177 = vrot.slane %v2669, %v4176
        %v4178 = vsel %vm3394, %v4177, %v4173
        %v4179 = vlaneseq
        %v4180 = vshrl.u32 %v4179, 7
        %v4181 = vsub.s32 %v2871, %v4180
        %v4182 = vrot.slane %v2671, %v4181
        %v4183 = vlaneseq
        %v4184 = vshrl.u32 %v4183, 7
        %v4185 = vsub.s32 %v3389, %v4184
        %v4186 = vrot.slane %v2674, %v4185
        %v4187 = vsel %vm3394, %v4186, %v4182
        %v4188 = vlaneseq
        %v4189 = vshrl.u32 %v4188, 7
        %v4190 = vsub.s32 %v2871, %v4189
        %v4191 = vrot.slane %v2676, %v4190
        %v4192 = vlaneseq
        %v4193 = vshrl.u32 %v4192, 7
        %v4194 = vsub.s32 %v3389, %v4193
        %v4195 = vrot.slane %v2679, %v4194
        %v4196 = vsel %vm3394, %v4195, %v4191
        %v4197 = vlaneseq
        %v4198 = vshrl.u32 %v4197, 7
        %v4199 = vsub.s32 %v2871, %v4198
        %v4200 = vrot.slane %v2681, %v4199
        %v4201 = vlaneseq
        %v4202 = vshrl.u32 %v4201, 7
        %v4203 = vsub.s32 %v3389, %v4202
        %v4204 = vrot.slane %v2684, %v4203
        %v4205 = vsel %vm3394, %v4204, %v4200
        %v4206 = vlaneseq
        %v4207 = vshrl.u32 %v4206, 7
        %v4208 = vsub.s32 %v2871, %v4207
        %v4209 = vrot.slane %v2686, %v4208
        %v4210 = vlaneseq
        %v4211 = vshrl.u32 %v4210, 7
        %v4212 = vsub.s32 %v3389, %v4211
        %v4213 = vrot.slane %v2689, %v4212
        %v4214 = vsel %vm3394, %v4213, %v4209
        %v4215 = vlaneseq
        %v4216 = vshrl.u32 %v4215, 7
        %v4217 = vsub.s32 %v2871, %v4216
        %v4218 = vrot.slane %v2691, %v4217
        %v4219 = vlaneseq
        %v4220 = vshrl.u32 %v4219, 7
        %v4221 = vsub.s32 %v3389, %v4220
        %v4222 = vrot.slane %v2694, %v4221
        %v4223 = vsel %vm3394, %v4222, %v4218
        %v4224 = vlaneseq
        %v4225 = vshrl.u32 %v4224, 7
        %v4226 = vsub.s32 %v2871, %v4225
        %v4227 = vrot.slane %v2696, %v4226
        %v4228 = vlaneseq
        %v4229 = vshrl.u32 %v4228, 7
        %v4230 = vsub.s32 %v3389, %v4229
        %v4231 = vrot.slane %v2699, %v4230
        %v4232 = vsel %vm3394, %v4231, %v4227
        %v4233 = vlaneseq
        %v4234 = vshrl.u32 %v4233, 7
        %v4235 = vsub.s32 %v2871, %v4234
        %v4236 = vrot.slane %v2701, %v4235
        %v4237 = vlaneseq
        %v4238 = vshrl.u32 %v4237, 7
        %v4239 = vsub.s32 %v3389, %v4238
        %v4240 = vrot.slane %v2704, %v4239
        %v4241 = vsel %vm3394, %v4240, %v4236
        %v4242 = vlaneseq
        %v4243 = vshrl.u32 %v4242, 7
        %v4244 = vsub.s32 %v2871, %v4243
        %v4245 = vrot.slane %v2706, %v4244
        %v4246 = vlaneseq
        %v4247 = vshrl.u32 %v4246, 7
        %v4248 = vsub.s32 %v3389, %v4247
        %v4249 = vrot.slane %v2709, %v4248
        %v4250 = vsel %vm3394, %v4249, %v4245
        %v4251 = vlaneseq
        %v4252 = vshrl.u32 %v4251, 7
        %v4253 = vsub.s32 %v2871, %v4252
        %v4254 = vrot.slane %v2711, %v4253
        %v4255 = vlaneseq
        %v4256 = vshrl.u32 %v4255, 7
        %v4257 = vsub.s32 %v3389, %v4256
        %v4258 = vrot.slane %v2714, %v4257
        %v4259 = vsel %vm3394, %v4258, %v4254
        %v4260 = vlaneseq
        %v4261 = vshrl.u32 %v4260, 7
        %v4262 = vsub.s32 %v2871, %v4261
        %v4263 = vrot.slane %v2716, %v4262
        %v4264 = vlaneseq
        %v4265 = vshrl.u32 %v4264, 7
        %v4266 = vsub.s32 %v3389, %v4265
        %v4267 = vrot.slane %v2719, %v4266
        %v4268 = vsel %vm3394, %v4267, %v4263
        %v4269 = vlaneseq
        %v4270 = vshrl.u32 %v4269, 7
        %v4271 = vsub.s32 %v2871, %v4270
        %v4272 = vrot.slane %v2721, %v4271
        %v4273 = vlaneseq
        %v4274 = vshrl.u32 %v4273, 7
        %v4275 = vsub.s32 %v3389, %v4274
        %v4276 = vrot.slane %v2724, %v4275
        %v4277 = vsel %vm3394, %v4276, %v4272
        %v4278 = vlaneseq
        %v4279 = vshrl.u32 %v4278, 7
        %v4280 = vsub.s32 %v2871, %v4279
        %v4281 = vrot.slane %v2726, %v4280
        %v4282 = vlaneseq
        %v4283 = vshrl.u32 %v4282, 7
        %v4284 = vsub.s32 %v3389, %v4283
        %v4285 = vrot.slane %v2729, %v4284
        %v4286 = vsel %vm3394, %v4285, %v4281
        %v4287 = vlaneseq
        %v4288 = vshrl.u32 %v4287, 7
        %v4289 = vsub.s32 %v2871, %v4288
        %v4290 = vrot.slane %v2731, %v4289
        %v4291 = vlaneseq
        %v4292 = vshrl.u32 %v4291, 7
        %v4293 = vsub.s32 %v3389, %v4292
        %v4294 = vrot.slane %v2734, %v4293
        %v4295 = vsel %vm3394, %v4294, %v4290
        %v4296 = vlaneseq
        %v4297 = vshrl.u32 %v4296, 7
        %v4298 = vsub.s32 %v2871, %v4297
        %v4299 = vrot.slane %v2736, %v4298
        %v4300 = vlaneseq
        %v4301 = vshrl.u32 %v4300, 7
        %v4302 = vsub.s32 %v3389, %v4301
        %v4303 = vrot.slane %v2739, %v4302
        %v4304 = vsel %vm3394, %v4303, %v4299
        %v4305 = vlaneseq
        %v4306 = vshrl.u32 %v4305, 7
        %v4307 = vsub.s32 %v2871, %v4306
        %v4308 = vrot.slane %v2741, %v4307
        %v4309 = vlaneseq
        %v4310 = vshrl.u32 %v4309, 7
        %v4311 = vsub.s32 %v3389, %v4310
        %v4312 = vrot.slane %v2744, %v4311
        %v4313 = vsel %vm3394, %v4312, %v4308
        %v4314 = vlaneseq
        %v4315 = vshrl.u32 %v4314, 7
        %v4316 = vsub.s32 %v2871, %v4315
        %v4317 = vrot.slane %v2746, %v4316
        %v4318 = vlaneseq
        %v4319 = vshrl.u32 %v4318, 7
        %v4320 = vsub.s32 %v3389, %v4319
        %v4321 = vrot.slane %v2749, %v4320
        %v4322 = vsel %vm3394, %v4321, %v4317
        %v4323 = vlaneseq
        %v4324 = vshrl.u32 %v4323, 7
        %v4325 = vsub.s32 %v2871, %v4324
        %v4326 = vrot.slane %v2751, %v4325
        %v4327 = vlaneseq
        %v4328 = vshrl.u32 %v4327, 7
        %v4329 = vsub.s32 %v3389, %v4328
        %v4330 = vrot.slane %v2754, %v4329
        %v4331 = vsel %vm3394, %v4330, %v4326
        %v4332 = vlaneseq
        %v4333 = vshrl.u32 %v4332, 7
        %v4334 = vsub.s32 %v2871, %v4333
        %v4335 = vrot.slane %v2756, %v4334
        %v4336 = vlaneseq
        %v4337 = vshrl.u32 %v4336, 7
        %v4338 = vsub.s32 %v3389, %v4337
        %v4339 = vrot.slane %v2759, %v4338
        %v4340 = vsel %vm3394, %v4339, %v4335
        %v4341 = vlaneseq
        %v4342 = vshrl.u32 %v4341, 7
        %v4343 = vsub.s32 %v2871, %v4342
        %v4344 = vrot.slane %v2761, %v4343
        %v4345 = vlaneseq
        %v4346 = vshrl.u32 %v4345, 7
        %v4347 = vsub.s32 %v3389, %v4346
        %v4348 = vrot.slane %v2764, %v4347
        %v4349 = vsel %vm3394, %v4348, %v4344
        %v4350 = vlaneseq
        %v4351 = vshrl.u32 %v4350, 7
        %v4352 = vsub.s32 %v2871, %v4351
        %v4353 = vrot.slane %v2766, %v4352
        %v4354 = vlaneseq
        %v4355 = vshrl.u32 %v4354, 7
        %v4356 = vsub.s32 %v3389, %v4355
        %v4357 = vrot.slane %v2769, %v4356
        %v4358 = vsel %vm3394, %v4357, %v4353
        %v4359 = vlaneseq
        %v4360 = vshrl.u32 %v4359, 7
        %v4361 = vsub.s32 %v2871, %v4360
        %v4362 = vrot.slane %v2771, %v4361
        %v4363 = vlaneseq
        %v4364 = vshrl.u32 %v4363, 7
        %v4365 = vsub.s32 %v3389, %v4364
        %v4366 = vrot.slane %v2774, %v4365
        %v4367 = vsel %vm3394, %v4366, %v4362
        %v4368 = vlaneseq
        %v4369 = vshrl.u32 %v4368, 7
        %v4370 = vsub.s32 %v2871, %v4369
        %v4371 = vrot.slane %v2776, %v4370
        %v4372 = vlaneseq
        %v4373 = vshrl.u32 %v4372, 7
        %v4374 = vsub.s32 %v3389, %v4373
        %v4375 = vrot.slane %v2779, %v4374
        %v4376 = vsel %vm3394, %v4375, %v4371
        %v4377 = vlaneseq
        %v4378 = vshrl.u32 %v4377, 7
        %v4379 = vsub.s32 %v2871, %v4378
        %v4380 = vrot.slane %v2781, %v4379
        %v4381 = vlaneseq
        %v4382 = vshrl.u32 %v4381, 7
        %v4383 = vsub.s32 %v3389, %v4382
        %v4384 = vrot.slane %v2784, %v4383
        %v4385 = vsel %vm3394, %v4384, %v4380
        %v4386 = vlaneseq
        %v4387 = vshrl.u32 %v4386, 7
        %v4388 = vsub.s32 %v2871, %v4387
        %v4389 = vrot.slane %v2786, %v4388
        %v4390 = vlaneseq
        %v4391 = vshrl.u32 %v4390, 7
        %v4392 = vsub.s32 %v3389, %v4391
        %v4393 = vrot.slane %v2789, %v4392
        %v4394 = vsel %vm3394, %v4393, %v4389
        %v4395 = vlaneseq
        %v4396 = vshrl.u32 %v4395, 7
        %v4397 = vsub.s32 %v2871, %v4396
        %v4398 = vrot.slane %v2791, %v4397
        %v4399 = vlaneseq
        %v4400 = vshrl.u32 %v4399, 7
        %v4401 = vsub.s32 %v3389, %v4400
        %v4402 = vrot.slane %v2794, %v4401
        %v4403 = vsel %vm3394, %v4402, %v4398
        %v4404 = vlaneseq
        %v4405 = vshrl.u32 %v4404, 7
        %v4406 = vsub.s32 %v2871, %v4405
        %v4407 = vrot.slane %v2796, %v4406
        %v4408 = vlaneseq
        %v4409 = vshrl.u32 %v4408, 7
        %v4410 = vsub.s32 %v3389, %v4409
        %v4411 = vrot.slane %v2799, %v4410
        %v4412 = vsel %vm3394, %v4411, %v4407
        %v4413 = vlaneseq
        %v4414 = vshrl.u32 %v4413, 7
        %v4415 = vsub.s32 %v2871, %v4414
        %v4416 = vrot.slane %v2801, %v4415
        %v4417 = vlaneseq
        %v4418 = vshrl.u32 %v4417, 7
        %v4419 = vsub.s32 %v3389, %v4418
        %v4420 = vrot.slane %v2804, %v4419
        %v4421 = vsel %vm3394, %v4420, %v4416
        %v4422 = vlaneseq
        %v4423 = vshrl.u32 %v4422, 7
        %v4424 = vsub.s32 %v2871, %v4423
        %v4425 = vrot.slane %v2806, %v4424
        %v4426 = vlaneseq
        %v4427 = vshrl.u32 %v4426, 7
        %v4428 = vsub.s32 %v3389, %v4427
        %v4429 = vrot.slane %v2809, %v4428
        %v4430 = vsel %vm3394, %v4429, %v4425
        %v4431 = vlaneseq
        %v4432 = vshrl.u32 %v4431, 7
        %v4433 = vsub.s32 %v2871, %v4432
        %v4434 = vrot.slane %v2811, %v4433
        %v4435 = vlaneseq
        %v4436 = vshrl.u32 %v4435, 7
        %v4437 = vsub.s32 %v3389, %v4436
        %v4438 = vrot.slane %v2814, %v4437
        %v4439 = vsel %vm3394, %v4438, %v4434
        %v4440 = vlaneseq
        %v4441 = vshrl.u32 %v4440, 7
        %v4442 = vsub.s32 %v2871, %v4441
        %v4443 = vrot.slane %v2816, %v4442
        %v4444 = vlaneseq
        %v4445 = vshrl.u32 %v4444, 7
        %v4446 = vsub.s32 %v3389, %v4445
        %v4447 = vrot.slane %v2819, %v4446
        %v4448 = vsel %vm3394, %v4447, %v4443
        %v4449 = vlaneseq
        %v4450 = vshrl.u32 %v4449, 7
        %v4451 = vsub.s32 %v2871, %v4450
        %v4452 = vrot.slane %v2821, %v4451
        %v4453 = vlaneseq
        %v4454 = vshrl.u32 %v4453, 7
        %v4455 = vsub.s32 %v3389, %v4454
        %v4456 = vrot.slane %v2824, %v4455
        %v4457 = vsel %vm3394, %v4456, %v4452
        %v4458 = vlaneseq
        %v4459 = vshrl.u32 %v4458, 7
        %v4460 = vsub.s32 %v2871, %v4459
        %v4461 = vrot.slane %v2826, %v4460
        %v4462 = vlaneseq
        %v4463 = vshrl.u32 %v4462, 7
        %v4464 = vsub.s32 %v3389, %v4463
        %v4465 = vrot.slane %v2829, %v4464
        %v4466 = vsel %vm3394, %v4465, %v4461
        %v4467 = vlaneseq
        %v4468 = vshrl.u32 %v4467, 7
        %v4469 = vsub.s32 %v2871, %v4468
        %v4470 = vrot.slane %v2831, %v4469
        %v4471 = vlaneseq
        %v4472 = vshrl.u32 %v4471, 7
        %v4473 = vsub.s32 %v3389, %v4472
        %v4474 = vrot.slane %v2834, %v4473
        %v4475 = vsel %vm3394, %v4474, %v4470
        %v4476 = vlaneseq
        %v4477 = vshrl.u32 %v4476, 7
        %v4478 = vsub.s32 %v2871, %v4477
        %v4479 = vrot.slane %v2836, %v4478
        %v4480 = vlaneseq
        %v4481 = vshrl.u32 %v4480, 7
        %v4482 = vsub.s32 %v3389, %v4481
        %v4483 = vrot.slane %v2839, %v4482
        %v4484 = vsel %vm3394, %v4483, %v4479
        %v4485 = vlaneseq
        %v4486 = vshrl.u32 %v4485, 7
        %v4487 = vsub.s32 %v2871, %v4486
        %v4488 = vrot.slane %v2841, %v4487
        %v4489 = vlaneseq
        %v4490 = vshrl.u32 %v4489, 7
        %v4491 = vsub.s32 %v3389, %v4490
        %v4492 = vrot.slane %v2844, %v4491
        %v4493 = vsel %vm3394, %v4492, %v4488
        %v4494 = vlaneseq
        %v4495 = vshrl.u32 %v4494, 7
        %v4496 = vsub.s32 %v2871, %v4495
        %v4497 = vrot.slane %v2846, %v4496
        %v4498 = vlaneseq
        %v4499 = vshrl.u32 %v4498, 7
        %v4500 = vsub.s32 %v3389, %v4499
        %v4501 = vrot.slane %v2849, %v4500
        %v4502 = vsel %vm3394, %v4501, %v4497
        %v4503 = vlaneseq
        %v4504 = vshrl.u32 %v4503, 7
        %v4505 = vsub.s32 %v2871, %v4504
        %v4506 = vrot.slane %v2851, %v4505
        %v4507 = vlaneseq
        %v4508 = vshrl.u32 %v4507, 7
        %v4509 = vsub.s32 %v3389, %v4508
        %v4510 = vrot.slane %v2854, %v4509
        %v4511 = vsel %vm3394, %v4510, %v4506
        %v4512 = vlaneseq
        %v4513 = vshrl.u32 %v4512, 7
        %v4514 = vsub.s32 %v2871, %v4513
        %v4515 = vrot.slane %v2856, %v4514
        %v4516 = vlaneseq
        %v4517 = vshrl.u32 %v4516, 7
        %v4518 = vsub.s32 %v3389, %v4517
        %v4519 = vrot.slane %v2859, %v4518
        %v4520 = vsel %vm3394, %v4519, %v4515
        %v4521 = vlaneseq
        %v4522 = vshrl.u32 %v4521, 7
        %v4523 = vsub.s32 %v2871, %v4522
        %v4524 = vrot.slane %v2861, %v4523
        %v4525 = vlaneseq
        %v4526 = vshrl.u32 %v4525, 7
        %v4527 = vsub.s32 %v3389, %v4526
        %v4528 = vrot.slane %v2864, %v4527
        %v4529 = vsel %vm3394, %v4528, %v4524
        %v4530 = vlaneseq
        %v4531 = vshrl.u32 %v4530, 7
        %v4532 = vsub.s32 %v2871, %v4531
        %v4533 = vrot.slane %v2866, %v4532
        %v4534 = vlaneseq
        %v4535 = vshrl.u32 %v4534, 7
        %v4536 = vsub.s32 %v3389, %v4535
        %v4537 = vrot.slane %v2869, %v4536
        %v4538 = vsel %vm3394, %v4537, %v4533
        %vm4539 = vcmask 1041409
        %v4540 = vsel %vm4539, %v3404, %v3395
        %vm4541 = vcmask 1042434
        %v4542 = vsel %vm4541, %v3413, %v4540
        %vm4543 = vcmask 1043459
        %v4544 = vsel %vm4543, %v3422, %v4542
        %vm4545 = vcmask 1044484
        %v4546 = vsel %vm4545, %v3431, %v4544
        %vm4547 = vcmask 1045509
        %v4548 = vsel %vm4547, %v3440, %v4546
        %vm4549 = vcmask 1046534
        %v4550 = vsel %vm4549, %v3449, %v4548
        %vm4551 = vcmask 1047559
        %v4552 = vsel %vm4551, %v3458, %v4550
        %v4553 = vsel %vm4539, %v3476, %v3467
        %v4554 = vsel %vm4541, %v3485, %v4553
        %v4555 = vsel %vm4543, %v3494, %v4554
        %v4556 = vsel %vm4545, %v3503, %v4555
        %v4557 = vsel %vm4547, %v3512, %v4556
        %v4558 = vsel %vm4549, %v3521, %v4557
        %v4559 = vsel %vm4551, %v3530, %v4558
        %v4560 = vsel %vm4539, %v3548, %v3539
        %v4561 = vsel %vm4541, %v3557, %v4560
        %v4562 = vsel %vm4543, %v3566, %v4561
        %v4563 = vsel %vm4545, %v3575, %v4562
        %v4564 = vsel %vm4547, %v3584, %v4563
        %v4565 = vsel %vm4549, %v3593, %v4564
        %v4566 = vsel %vm4551, %v3602, %v4565
        %v4567 = vsel %vm4539, %v3620, %v3611
        %v4568 = vsel %vm4541, %v3629, %v4567
        %v4569 = vsel %vm4543, %v3638, %v4568
        %v4570 = vsel %vm4545, %v3647, %v4569
        %v4571 = vsel %vm4547, %v3656, %v4570
        %v4572 = vsel %vm4549, %v3665, %v4571
        %v4573 = vsel %vm4551, %v3674, %v4572
        %v4574 = vsel %vm4539, %v3692, %v3683
        %v4575 = vsel %vm4541, %v3701, %v4574
        %v4576 = vsel %vm4543, %v3710, %v4575
        %v4577 = vsel %vm4545, %v3719, %v4576
        %v4578 = vsel %vm4547, %v3728, %v4577
        %v4579 = vsel %vm4549, %v3737, %v4578
        %v4580 = vsel %vm4551, %v3746, %v4579
        %v4581 = vsel %vm4539, %v3764, %v3755
        %v4582 = vsel %vm4541, %v3773, %v4581
        %v4583 = vsel %vm4543, %v3782, %v4582
        %v4584 = vsel %vm4545, %v3791, %v4583
        %v4585 = vsel %vm4547, %v3800, %v4584
        %v4586 = vsel %vm4549, %v3809, %v4585
        %v4587 = vsel %vm4551, %v3818, %v4586
        %v4588 = vsel %vm4539, %v3836, %v3827
        %v4589 = vsel %vm4541, %v3845, %v4588
        %v4590 = vsel %vm4543, %v3854, %v4589
        %v4591 = vsel %vm4545, %v3863, %v4590
        %v4592 = vsel %vm4547, %v3872, %v4591
        %v4593 = vsel %vm4549, %v3881, %v4592
        %v4594 = vsel %vm4551, %v3890, %v4593
        %v4595 = vsel %vm4539, %v3908, %v3899
        %v4596 = vsel %vm4541, %v3917, %v4595
        %v4597 = vsel %vm4543, %v3926, %v4596
        %v4598 = vsel %vm4545, %v3935, %v4597
        %v4599 = vsel %vm4547, %v3944, %v4598
        %v4600 = vsel %vm4549, %v3953, %v4599
        %v4601 = vsel %vm4551, %v3962, %v4600
        %v4602 = vsel %vm4539, %v3980, %v3971
        %v4603 = vsel %vm4541, %v3989, %v4602
        %v4604 = vsel %vm4543, %v3998, %v4603
        %v4605 = vsel %vm4545, %v4007, %v4604
        %v4606 = vsel %vm4547, %v4016, %v4605
        %v4607 = vsel %vm4549, %v4025, %v4606
        %v4608 = vsel %vm4551, %v4034, %v4607
        %v4609 = vsel %vm4539, %v4052, %v4043
        %v4610 = vsel %vm4541, %v4061, %v4609
        %v4611 = vsel %vm4543, %v4070, %v4610
        %v4612 = vsel %vm4545, %v4079, %v4611
        %v4613 = vsel %vm4547, %v4088, %v4612
        %v4614 = vsel %vm4549, %v4097, %v4613
        %v4615 = vsel %vm4551, %v4106, %v4614
        %v4616 = vsel %vm4539, %v4124, %v4115
        %v4617 = vsel %vm4541, %v4133, %v4616
        %v4618 = vsel %vm4543, %v4142, %v4617
        %v4619 = vsel %vm4545, %v4151, %v4618
        %v4620 = vsel %vm4547, %v4160, %v4619
        %v4621 = vsel %vm4549, %v4169, %v4620
        %v4622 = vsel %vm4551, %v4178, %v4621
        %v4623 = vsel %vm4539, %v4196, %v4187
        %v4624 = vsel %vm4541, %v4205, %v4623
        %v4625 = vsel %vm4543, %v4214, %v4624
        %v4626 = vsel %vm4545, %v4223, %v4625
        %v4627 = vsel %vm4547, %v4232, %v4626
        %v4628 = vsel %vm4549, %v4241, %v4627
        %v4629 = vsel %vm4551, %v4250, %v4628
        %v4630 = vsel %vm4539, %v4268, %v4259
        %v4631 = vsel %vm4541, %v4277, %v4630
        %v4632 = vsel %vm4543, %v4286, %v4631
        %v4633 = vsel %vm4545, %v4295, %v4632
        %v4634 = vsel %vm4547, %v4304, %v4633
        %v4635 = vsel %vm4549, %v4313, %v4634
        %v4636 = vsel %vm4551, %v4322, %v4635
        %v4637 = vsel %vm4539, %v4340, %v4331
        %v4638 = vsel %vm4541, %v4349, %v4637
        %v4639 = vsel %vm4543, %v4358, %v4638
        %v4640 = vsel %vm4545, %v4367, %v4639
        %v4641 = vsel %vm4547, %v4376, %v4640
        %v4642 = vsel %vm4549, %v4385, %v4641
        %v4643 = vsel %vm4551, %v4394, %v4642
        %v4644 = vsel %vm4539, %v4412, %v4403
        %v4645 = vsel %vm4541, %v4421, %v4644
        %v4646 = vsel %vm4543, %v4430, %v4645
        %v4647 = vsel %vm4545, %v4439, %v4646
        %v4648 = vsel %vm4547, %v4448, %v4647
        %v4649 = vsel %vm4549, %v4457, %v4648
        %v4650 = vsel %vm4551, %v4466, %v4649
        %v4651 = vsel %vm4539, %v4484, %v4475
        %v4652 = vsel %vm4541, %v4493, %v4651
        %v4653 = vsel %vm4543, %v4502, %v4652
        %v4654 = vsel %vm4545, %v4511, %v4653
        %v4655 = vsel %vm4547, %v4520, %v4654
        %v4656 = vsel %vm4549, %v4529, %v4655
        %v4657 = vsel %vm4551, %v4538, %v4656
        %v4930 = vlaneseq
        %v4931 = vshrl.u32 %v4930, 7
        %v4932 = vsub.s32 %v2871, %v4931
        %v4933 = vrot.slane %v2873, %v4932
        %v4934 = vlaneseq
        %v4935 = vshrl.u32 %v4934, 7
        %v4936 = vsub.s32 %v3389, %v4935
        %v4937 = vrot.slane %v2874, %v4936
        %v4938 = vsel %vm3394, %v4937, %v4933
        %v4939 = vlaneseq
        %v4940 = vshrl.u32 %v4939, 7
        %v4941 = vsub.s32 %v2871, %v4940
        %v4942 = vrot.slane %v2875, %v4941
        %v4943 = vlaneseq
        %v4944 = vshrl.u32 %v4943, 7
        %v4945 = vsub.s32 %v3389, %v4944
        %v4946 = vrot.slane %v2876, %v4945
        %v4947 = vsel %vm3394, %v4946, %v4942
        %v4948 = vlaneseq
        %v4949 = vshrl.u32 %v4948, 7
        %v4950 = vsub.s32 %v2871, %v4949
        %v4951 = vrot.slane %v2877, %v4950
        %v4952 = vlaneseq
        %v4953 = vshrl.u32 %v4952, 7
        %v4954 = vsub.s32 %v3389, %v4953
        %v4955 = vrot.slane %v2878, %v4954
        %v4956 = vsel %vm3394, %v4955, %v4951
        %v4957 = vlaneseq
        %v4958 = vshrl.u32 %v4957, 7
        %v4959 = vsub.s32 %v2871, %v4958
        %v4960 = vrot.slane %v2879, %v4959
        %v4961 = vlaneseq
        %v4962 = vshrl.u32 %v4961, 7
        %v4963 = vsub.s32 %v3389, %v4962
        %v4964 = vrot.slane %v2880, %v4963
        %v4965 = vsel %vm3394, %v4964, %v4960
        %v4966 = vlaneseq
        %v4967 = vshrl.u32 %v4966, 7
        %v4968 = vsub.s32 %v2871, %v4967
        %v4969 = vrot.slane %v2881, %v4968
        %v4970 = vlaneseq
        %v4971 = vshrl.u32 %v4970, 7
        %v4972 = vsub.s32 %v3389, %v4971
        %v4973 = vrot.slane %v2882, %v4972
        %v4974 = vsel %vm3394, %v4973, %v4969
        %v4975 = vlaneseq
        %v4976 = vshrl.u32 %v4975, 7
        %v4977 = vsub.s32 %v2871, %v4976
        %v4978 = vrot.slane %v2883, %v4977
        %v4979 = vlaneseq
        %v4980 = vshrl.u32 %v4979, 7
        %v4981 = vsub.s32 %v3389, %v4980
        %v4982 = vrot.slane %v2884, %v4981
        %v4983 = vsel %vm3394, %v4982, %v4978
        %v4984 = vlaneseq
        %v4985 = vshrl.u32 %v4984, 7
        %v4986 = vsub.s32 %v2871, %v4985
        %v4987 = vrot.slane %v2885, %v4986
        %v4988 = vlaneseq
        %v4989 = vshrl.u32 %v4988, 7
        %v4990 = vsub.s32 %v3389, %v4989
        %v4991 = vrot.slane %v2886, %v4990
        %v4992 = vsel %vm3394, %v4991, %v4987
        %v4993 = vlaneseq
        %v4994 = vshrl.u32 %v4993, 7
        %v4995 = vsub.s32 %v2871, %v4994
        %v4996 = vrot.slane %v2887, %v4995
        %v4997 = vlaneseq
        %v4998 = vshrl.u32 %v4997, 7
        %v4999 = vsub.s32 %v3389, %v4998
        %v5000 = vrot.slane %v2888, %v4999
        %v5001 = vsel %vm3394, %v5000, %v4996
        %v5002 = vlaneseq
        %v5003 = vshrl.u32 %v5002, 7
        %v5004 = vsub.s32 %v2871, %v5003
        %v5005 = vrot.slane %v2889, %v5004
        %v5006 = vlaneseq
        %v5007 = vshrl.u32 %v5006, 7
        %v5008 = vsub.s32 %v3389, %v5007
        %v5009 = vrot.slane %v2890, %v5008
        %v5010 = vsel %vm3394, %v5009, %v5005
        %v5011 = vlaneseq
        %v5012 = vshrl.u32 %v5011, 7
        %v5013 = vsub.s32 %v2871, %v5012
        %v5014 = vrot.slane %v2891, %v5013
        %v5015 = vlaneseq
        %v5016 = vshrl.u32 %v5015, 7
        %v5017 = vsub.s32 %v3389, %v5016
        %v5018 = vrot.slane %v2892, %v5017
        %v5019 = vsel %vm3394, %v5018, %v5014
        %v5020 = vlaneseq
        %v5021 = vshrl.u32 %v5020, 7
        %v5022 = vsub.s32 %v2871, %v5021
        %v5023 = vrot.slane %v2893, %v5022
        %v5024 = vlaneseq
        %v5025 = vshrl.u32 %v5024, 7
        %v5026 = vsub.s32 %v3389, %v5025
        %v5027 = vrot.slane %v2894, %v5026
        %v5028 = vsel %vm3394, %v5027, %v5023
        %v5029 = vlaneseq
        %v5030 = vshrl.u32 %v5029, 7
        %v5031 = vsub.s32 %v2871, %v5030
        %v5032 = vrot.slane %v2895, %v5031
        %v5033 = vlaneseq
        %v5034 = vshrl.u32 %v5033, 7
        %v5035 = vsub.s32 %v3389, %v5034
        %v5036 = vrot.slane %v2896, %v5035
        %v5037 = vsel %vm3394, %v5036, %v5032
        %v5038 = vlaneseq
        %v5039 = vshrl.u32 %v5038, 7
        %v5040 = vsub.s32 %v2871, %v5039
        %v5041 = vrot.slane %v2897, %v5040
        %v5042 = vlaneseq
        %v5043 = vshrl.u32 %v5042, 7
        %v5044 = vsub.s32 %v3389, %v5043
        %v5045 = vrot.slane %v2898, %v5044
        %v5046 = vsel %vm3394, %v5045, %v5041
        %v5047 = vlaneseq
        %v5048 = vshrl.u32 %v5047, 7
        %v5049 = vsub.s32 %v2871, %v5048
        %v5050 = vrot.slane %v2899, %v5049
        %v5051 = vlaneseq
        %v5052 = vshrl.u32 %v5051, 7
        %v5053 = vsub.s32 %v3389, %v5052
        %v5054 = vrot.slane %v2900, %v5053
        %v5055 = vsel %vm3394, %v5054, %v5050
        %v5056 = vlaneseq
        %v5057 = vshrl.u32 %v5056, 7
        %v5058 = vsub.s32 %v2871, %v5057
        %v5059 = vrot.slane %v2901, %v5058
        %v5060 = vlaneseq
        %v5061 = vshrl.u32 %v5060, 7
        %v5062 = vsub.s32 %v3389, %v5061
        %v5063 = vrot.slane %v2902, %v5062
        %v5064 = vsel %vm3394, %v5063, %v5059
        %v5065 = vlaneseq
        %v5066 = vshrl.u32 %v5065, 7
        %v5067 = vsub.s32 %v2871, %v5066
        %v5068 = vrot.slane %v2903, %v5067
        %v5069 = vlaneseq
        %v5070 = vshrl.u32 %v5069, 7
        %v5071 = vsub.s32 %v3389, %v5070
        %v5072 = vrot.slane %v2904, %v5071
        %v5073 = vsel %vm3394, %v5072, %v5068
        %v5074 = vlaneseq
        %v5075 = vshrl.u32 %v5074, 7
        %v5076 = vsub.s32 %v2871, %v5075
        %v5077 = vrot.slane %v2905, %v5076
        %v5078 = vlaneseq
        %v5079 = vshrl.u32 %v5078, 7
        %v5080 = vsub.s32 %v3389, %v5079
        %v5081 = vrot.slane %v2906, %v5080
        %v5082 = vsel %vm3394, %v5081, %v5077
        %v5083 = vlaneseq
        %v5084 = vshrl.u32 %v5083, 7
        %v5085 = vsub.s32 %v2871, %v5084
        %v5086 = vrot.slane %v2907, %v5085
        %v5087 = vlaneseq
        %v5088 = vshrl.u32 %v5087, 7
        %v5089 = vsub.s32 %v3389, %v5088
        %v5090 = vrot.slane %v2908, %v5089
        %v5091 = vsel %vm3394, %v5090, %v5086
        %v5092 = vlaneseq
        %v5093 = vshrl.u32 %v5092, 7
        %v5094 = vsub.s32 %v2871, %v5093
        %v5095 = vrot.slane %v2909, %v5094
        %v5096 = vlaneseq
        %v5097 = vshrl.u32 %v5096, 7
        %v5098 = vsub.s32 %v3389, %v5097
        %v5099 = vrot.slane %v2910, %v5098
        %v5100 = vsel %vm3394, %v5099, %v5095
        %v5101 = vlaneseq
        %v5102 = vshrl.u32 %v5101, 7
        %v5103 = vsub.s32 %v2871, %v5102
        %v5104 = vrot.slane %v2911, %v5103
        %v5105 = vlaneseq
        %v5106 = vshrl.u32 %v5105, 7
        %v5107 = vsub.s32 %v3389, %v5106
        %v5108 = vrot.slane %v2912, %v5107
        %v5109 = vsel %vm3394, %v5108, %v5104
        %v5110 = vlaneseq
        %v5111 = vshrl.u32 %v5110, 7
        %v5112 = vsub.s32 %v2871, %v5111
        %v5113 = vrot.slane %v2913, %v5112
        %v5114 = vlaneseq
        %v5115 = vshrl.u32 %v5114, 7
        %v5116 = vsub.s32 %v3389, %v5115
        %v5117 = vrot.slane %v2914, %v5116
        %v5118 = vsel %vm3394, %v5117, %v5113
        %v5119 = vlaneseq
        %v5120 = vshrl.u32 %v5119, 7
        %v5121 = vsub.s32 %v2871, %v5120
        %v5122 = vrot.slane %v2915, %v5121
        %v5123 = vlaneseq
        %v5124 = vshrl.u32 %v5123, 7
        %v5125 = vsub.s32 %v3389, %v5124
        %v5126 = vrot.slane %v2916, %v5125
        %v5127 = vsel %vm3394, %v5126, %v5122
        %v5128 = vlaneseq
        %v5129 = vshrl.u32 %v5128, 7
        %v5130 = vsub.s32 %v2871, %v5129
        %v5131 = vrot.slane %v2917, %v5130
        %v5132 = vlaneseq
        %v5133 = vshrl.u32 %v5132, 7
        %v5134 = vsub.s32 %v3389, %v5133
        %v5135 = vrot.slane %v2918, %v5134
        %v5136 = vsel %vm3394, %v5135, %v5131
        %v5137 = vlaneseq
        %v5138 = vshrl.u32 %v5137, 7
        %v5139 = vsub.s32 %v2871, %v5138
        %v5140 = vrot.slane %v2919, %v5139
        %v5141 = vlaneseq
        %v5142 = vshrl.u32 %v5141, 7
        %v5143 = vsub.s32 %v3389, %v5142
        %v5144 = vrot.slane %v2920, %v5143
        %v5145 = vsel %vm3394, %v5144, %v5140
        %v5146 = vlaneseq
        %v5147 = vshrl.u32 %v5146, 7
        %v5148 = vsub.s32 %v2871, %v5147
        %v5149 = vrot.slane %v2921, %v5148
        %v5150 = vlaneseq
        %v5151 = vshrl.u32 %v5150, 7
        %v5152 = vsub.s32 %v3389, %v5151
        %v5153 = vrot.slane %v2922, %v5152
        %v5154 = vsel %vm3394, %v5153, %v5149
        %v5155 = vlaneseq
        %v5156 = vshrl.u32 %v5155, 7
        %v5157 = vsub.s32 %v2871, %v5156
        %v5158 = vrot.slane %v2923, %v5157
        %v5159 = vlaneseq
        %v5160 = vshrl.u32 %v5159, 7
        %v5161 = vsub.s32 %v3389, %v5160
        %v5162 = vrot.slane %v2924, %v5161
        %v5163 = vsel %vm3394, %v5162, %v5158
        %v5164 = vlaneseq
        %v5165 = vshrl.u32 %v5164, 7
        %v5166 = vsub.s32 %v2871, %v5165
        %v5167 = vrot.slane %v2925, %v5166
        %v5168 = vlaneseq
        %v5169 = vshrl.u32 %v5168, 7
        %v5170 = vsub.s32 %v3389, %v5169
        %v5171 = vrot.slane %v2926, %v5170
        %v5172 = vsel %vm3394, %v5171, %v5167
        %v5173 = vlaneseq
        %v5174 = vshrl.u32 %v5173, 7
        %v5175 = vsub.s32 %v2871, %v5174
        %v5176 = vrot.slane %v2927, %v5175
        %v5177 = vlaneseq
        %v5178 = vshrl.u32 %v5177, 7
        %v5179 = vsub.s32 %v3389, %v5178
        %v5180 = vrot.slane %v2928, %v5179
        %v5181 = vsel %vm3394, %v5180, %v5176
        %v5182 = vlaneseq
        %v5183 = vshrl.u32 %v5182, 7
        %v5184 = vsub.s32 %v2871, %v5183
        %v5185 = vrot.slane %v2929, %v5184
        %v5186 = vlaneseq
        %v5187 = vshrl.u32 %v5186, 7
        %v5188 = vsub.s32 %v3389, %v5187
        %v5189 = vrot.slane %v2930, %v5188
        %v5190 = vsel %vm3394, %v5189, %v5185
        %v5191 = vlaneseq
        %v5192 = vshrl.u32 %v5191, 7
        %v5193 = vsub.s32 %v2871, %v5192
        %v5194 = vrot.slane %v2931, %v5193
        %v5195 = vlaneseq
        %v5196 = vshrl.u32 %v5195, 7
        %v5197 = vsub.s32 %v3389, %v5196
        %v5198 = vrot.slane %v2932, %v5197
        %v5199 = vsel %vm3394, %v5198, %v5194
        %v5200 = vlaneseq
        %v5201 = vshrl.u32 %v5200, 7
        %v5202 = vsub.s32 %v2871, %v5201
        %v5203 = vrot.slane %v2933, %v5202
        %v5204 = vlaneseq
        %v5205 = vshrl.u32 %v5204, 7
        %v5206 = vsub.s32 %v3389, %v5205
        %v5207 = vrot.slane %v2934, %v5206
        %v5208 = vsel %vm3394, %v5207, %v5203
        %v5209 = vlaneseq
        %v5210 = vshrl.u32 %v5209, 7
        %v5211 = vsub.s32 %v2871, %v5210
        %v5212 = vrot.slane %v2935, %v5211
        %v5213 = vlaneseq
        %v5214 = vshrl.u32 %v5213, 7
        %v5215 = vsub.s32 %v3389, %v5214
        %v5216 = vrot.slane %v2936, %v5215
        %v5217 = vsel %vm3394, %v5216, %v5212
        %v5218 = vlaneseq
        %v5219 = vshrl.u32 %v5218, 7
        %v5220 = vsub.s32 %v2871, %v5219
        %v5221 = vrot.slane %v2937, %v5220
        %v5222 = vlaneseq
        %v5223 = vshrl.u32 %v5222, 7
        %v5224 = vsub.s32 %v3389, %v5223
        %v5225 = vrot.slane %v2938, %v5224
        %v5226 = vsel %vm3394, %v5225, %v5221
        %v5227 = vlaneseq
        %v5228 = vshrl.u32 %v5227, 7
        %v5229 = vsub.s32 %v2871, %v5228
        %v5230 = vrot.slane %v2939, %v5229
        %v5231 = vlaneseq
        %v5232 = vshrl.u32 %v5231, 7
        %v5233 = vsub.s32 %v3389, %v5232
        %v5234 = vrot.slane %v2940, %v5233
        %v5235 = vsel %vm3394, %v5234, %v5230
        %v5236 = vlaneseq
        %v5237 = vshrl.u32 %v5236, 7
        %v5238 = vsub.s32 %v2871, %v5237
        %v5239 = vrot.slane %v2941, %v5238
        %v5240 = vlaneseq
        %v5241 = vshrl.u32 %v5240, 7
        %v5242 = vsub.s32 %v3389, %v5241
        %v5243 = vrot.slane %v2942, %v5242
        %v5244 = vsel %vm3394, %v5243, %v5239
        %v5245 = vlaneseq
        %v5246 = vshrl.u32 %v5245, 7
        %v5247 = vsub.s32 %v2871, %v5246
        %v5248 = vrot.slane %v2943, %v5247
        %v5249 = vlaneseq
        %v5250 = vshrl.u32 %v5249, 7
        %v5251 = vsub.s32 %v3389, %v5250
        %v5252 = vrot.slane %v2944, %v5251
        %v5253 = vsel %vm3394, %v5252, %v5248
        %v5254 = vlaneseq
        %v5255 = vshrl.u32 %v5254, 7
        %v5256 = vsub.s32 %v2871, %v5255
        %v5257 = vrot.slane %v2945, %v5256
        %v5258 = vlaneseq
        %v5259 = vshrl.u32 %v5258, 7
        %v5260 = vsub.s32 %v3389, %v5259
        %v5261 = vrot.slane %v2946, %v5260
        %v5262 = vsel %vm3394, %v5261, %v5257
        %v5263 = vlaneseq
        %v5264 = vshrl.u32 %v5263, 7
        %v5265 = vsub.s32 %v2871, %v5264
        %v5266 = vrot.slane %v2947, %v5265
        %v5267 = vlaneseq
        %v5268 = vshrl.u32 %v5267, 7
        %v5269 = vsub.s32 %v3389, %v5268
        %v5270 = vrot.slane %v2948, %v5269
        %v5271 = vsel %vm3394, %v5270, %v5266
        %v5272 = vlaneseq
        %v5273 = vshrl.u32 %v5272, 7
        %v5274 = vsub.s32 %v2871, %v5273
        %v5275 = vrot.slane %v2949, %v5274
        %v5276 = vlaneseq
        %v5277 = vshrl.u32 %v5276, 7
        %v5278 = vsub.s32 %v3389, %v5277
        %v5279 = vrot.slane %v2950, %v5278
        %v5280 = vsel %vm3394, %v5279, %v5275
        %v5281 = vlaneseq
        %v5282 = vshrl.u32 %v5281, 7
        %v5283 = vsub.s32 %v2871, %v5282
        %v5284 = vrot.slane %v2951, %v5283
        %v5285 = vlaneseq
        %v5286 = vshrl.u32 %v5285, 7
        %v5287 = vsub.s32 %v3389, %v5286
        %v5288 = vrot.slane %v2952, %v5287
        %v5289 = vsel %vm3394, %v5288, %v5284
        %v5290 = vlaneseq
        %v5291 = vshrl.u32 %v5290, 7
        %v5292 = vsub.s32 %v2871, %v5291
        %v5293 = vrot.slane %v2953, %v5292
        %v5294 = vlaneseq
        %v5295 = vshrl.u32 %v5294, 7
        %v5296 = vsub.s32 %v3389, %v5295
        %v5297 = vrot.slane %v2954, %v5296
        %v5298 = vsel %vm3394, %v5297, %v5293
        %v5299 = vlaneseq
        %v5300 = vshrl.u32 %v5299, 7
        %v5301 = vsub.s32 %v2871, %v5300
        %v5302 = vrot.slane %v2955, %v5301
        %v5303 = vlaneseq
        %v5304 = vshrl.u32 %v5303, 7
        %v5305 = vsub.s32 %v3389, %v5304
        %v5306 = vrot.slane %v2956, %v5305
        %v5307 = vsel %vm3394, %v5306, %v5302
        %v5308 = vlaneseq
        %v5309 = vshrl.u32 %v5308, 7
        %v5310 = vsub.s32 %v2871, %v5309
        %v5311 = vrot.slane %v2957, %v5310
        %v5312 = vlaneseq
        %v5313 = vshrl.u32 %v5312, 7
        %v5314 = vsub.s32 %v3389, %v5313
        %v5315 = vrot.slane %v2958, %v5314
        %v5316 = vsel %vm3394, %v5315, %v5311
        %v5317 = vlaneseq
        %v5318 = vshrl.u32 %v5317, 7
        %v5319 = vsub.s32 %v2871, %v5318
        %v5320 = vrot.slane %v2959, %v5319
        %v5321 = vlaneseq
        %v5322 = vshrl.u32 %v5321, 7
        %v5323 = vsub.s32 %v3389, %v5322
        %v5324 = vrot.slane %v2960, %v5323
        %v5325 = vsel %vm3394, %v5324, %v5320
        %v5326 = vlaneseq
        %v5327 = vshrl.u32 %v5326, 7
        %v5328 = vsub.s32 %v2871, %v5327
        %v5329 = vrot.slane %v2961, %v5328
        %v5330 = vlaneseq
        %v5331 = vshrl.u32 %v5330, 7
        %v5332 = vsub.s32 %v3389, %v5331
        %v5333 = vrot.slane %v2962, %v5332
        %v5334 = vsel %vm3394, %v5333, %v5329
        %v5335 = vlaneseq
        %v5336 = vshrl.u32 %v5335, 7
        %v5337 = vsub.s32 %v2871, %v5336
        %v5338 = vrot.slane %v2963, %v5337
        %v5339 = vlaneseq
        %v5340 = vshrl.u32 %v5339, 7
        %v5341 = vsub.s32 %v3389, %v5340
        %v5342 = vrot.slane %v2964, %v5341
        %v5343 = vsel %vm3394, %v5342, %v5338
        %v5344 = vlaneseq
        %v5345 = vshrl.u32 %v5344, 7
        %v5346 = vsub.s32 %v2871, %v5345
        %v5347 = vrot.slane %v2965, %v5346
        %v5348 = vlaneseq
        %v5349 = vshrl.u32 %v5348, 7
        %v5350 = vsub.s32 %v3389, %v5349
        %v5351 = vrot.slane %v2966, %v5350
        %v5352 = vsel %vm3394, %v5351, %v5347
        %v5353 = vlaneseq
        %v5354 = vshrl.u32 %v5353, 7
        %v5355 = vsub.s32 %v2871, %v5354
        %v5356 = vrot.slane %v2967, %v5355
        %v5357 = vlaneseq
        %v5358 = vshrl.u32 %v5357, 7
        %v5359 = vsub.s32 %v3389, %v5358
        %v5360 = vrot.slane %v2968, %v5359
        %v5361 = vsel %vm3394, %v5360, %v5356
        %v5362 = vlaneseq
        %v5363 = vshrl.u32 %v5362, 7
        %v5364 = vsub.s32 %v2871, %v5363
        %v5365 = vrot.slane %v2969, %v5364
        %v5366 = vlaneseq
        %v5367 = vshrl.u32 %v5366, 7
        %v5368 = vsub.s32 %v3389, %v5367
        %v5369 = vrot.slane %v2970, %v5368
        %v5370 = vsel %vm3394, %v5369, %v5365
        %v5371 = vlaneseq
        %v5372 = vshrl.u32 %v5371, 7
        %v5373 = vsub.s32 %v2871, %v5372
        %v5374 = vrot.slane %v2971, %v5373
        %v5375 = vlaneseq
        %v5376 = vshrl.u32 %v5375, 7
        %v5377 = vsub.s32 %v3389, %v5376
        %v5378 = vrot.slane %v2972, %v5377
        %v5379 = vsel %vm3394, %v5378, %v5374
        %v5380 = vlaneseq
        %v5381 = vshrl.u32 %v5380, 7
        %v5382 = vsub.s32 %v2871, %v5381
        %v5383 = vrot.slane %v2973, %v5382
        %v5384 = vlaneseq
        %v5385 = vshrl.u32 %v5384, 7
        %v5386 = vsub.s32 %v3389, %v5385
        %v5387 = vrot.slane %v2974, %v5386
        %v5388 = vsel %vm3394, %v5387, %v5383
        %v5389 = vlaneseq
        %v5390 = vshrl.u32 %v5389, 7
        %v5391 = vsub.s32 %v2871, %v5390
        %v5392 = vrot.slane %v2975, %v5391
        %v5393 = vlaneseq
        %v5394 = vshrl.u32 %v5393, 7
        %v5395 = vsub.s32 %v3389, %v5394
        %v5396 = vrot.slane %v2976, %v5395
        %v5397 = vsel %vm3394, %v5396, %v5392
        %v5398 = vlaneseq
        %v5399 = vshrl.u32 %v5398, 7
        %v5400 = vsub.s32 %v2871, %v5399
        %v5401 = vrot.slane %v2977, %v5400
        %v5402 = vlaneseq
        %v5403 = vshrl.u32 %v5402, 7
        %v5404 = vsub.s32 %v3389, %v5403
        %v5405 = vrot.slane %v2978, %v5404
        %v5406 = vsel %vm3394, %v5405, %v5401
        %v5407 = vlaneseq
        %v5408 = vshrl.u32 %v5407, 7
        %v5409 = vsub.s32 %v2871, %v5408
        %v5410 = vrot.slane %v2979, %v5409
        %v5411 = vlaneseq
        %v5412 = vshrl.u32 %v5411, 7
        %v5413 = vsub.s32 %v3389, %v5412
        %v5414 = vrot.slane %v2980, %v5413
        %v5415 = vsel %vm3394, %v5414, %v5410
        %v5416 = vlaneseq
        %v5417 = vshrl.u32 %v5416, 7
        %v5418 = vsub.s32 %v2871, %v5417
        %v5419 = vrot.slane %v2981, %v5418
        %v5420 = vlaneseq
        %v5421 = vshrl.u32 %v5420, 7
        %v5422 = vsub.s32 %v3389, %v5421
        %v5423 = vrot.slane %v2982, %v5422
        %v5424 = vsel %vm3394, %v5423, %v5419
        %v5425 = vlaneseq
        %v5426 = vshrl.u32 %v5425, 7
        %v5427 = vsub.s32 %v2871, %v5426
        %v5428 = vrot.slane %v2983, %v5427
        %v5429 = vlaneseq
        %v5430 = vshrl.u32 %v5429, 7
        %v5431 = vsub.s32 %v3389, %v5430
        %v5432 = vrot.slane %v2984, %v5431
        %v5433 = vsel %vm3394, %v5432, %v5428
        %v5434 = vlaneseq
        %v5435 = vshrl.u32 %v5434, 7
        %v5436 = vsub.s32 %v2871, %v5435
        %v5437 = vrot.slane %v2985, %v5436
        %v5438 = vlaneseq
        %v5439 = vshrl.u32 %v5438, 7
        %v5440 = vsub.s32 %v3389, %v5439
        %v5441 = vrot.slane %v2986, %v5440
        %v5442 = vsel %vm3394, %v5441, %v5437
        %v5443 = vlaneseq
        %v5444 = vshrl.u32 %v5443, 7
        %v5445 = vsub.s32 %v2871, %v5444
        %v5446 = vrot.slane %v2987, %v5445
        %v5447 = vlaneseq
        %v5448 = vshrl.u32 %v5447, 7
        %v5449 = vsub.s32 %v3389, %v5448
        %v5450 = vrot.slane %v2988, %v5449
        %v5451 = vsel %vm3394, %v5450, %v5446
        %v5452 = vlaneseq
        %v5453 = vshrl.u32 %v5452, 7
        %v5454 = vsub.s32 %v2871, %v5453
        %v5455 = vrot.slane %v2989, %v5454
        %v5456 = vlaneseq
        %v5457 = vshrl.u32 %v5456, 7
        %v5458 = vsub.s32 %v3389, %v5457
        %v5459 = vrot.slane %v2990, %v5458
        %v5460 = vsel %vm3394, %v5459, %v5455
        %v5461 = vlaneseq
        %v5462 = vshrl.u32 %v5461, 7
        %v5463 = vsub.s32 %v2871, %v5462
        %v5464 = vrot.slane %v2991, %v5463
        %v5465 = vlaneseq
        %v5466 = vshrl.u32 %v5465, 7
        %v5467 = vsub.s32 %v3389, %v5466
        %v5468 = vrot.slane %v2992, %v5467
        %v5469 = vsel %vm3394, %v5468, %v5464
        %v5470 = vlaneseq
        %v5471 = vshrl.u32 %v5470, 7
        %v5472 = vsub.s32 %v2871, %v5471
        %v5473 = vrot.slane %v2993, %v5472
        %v5474 = vlaneseq
        %v5475 = vshrl.u32 %v5474, 7
        %v5476 = vsub.s32 %v3389, %v5475
        %v5477 = vrot.slane %v2994, %v5476
        %v5478 = vsel %vm3394, %v5477, %v5473
        %v5479 = vlaneseq
        %v5480 = vshrl.u32 %v5479, 7
        %v5481 = vsub.s32 %v2871, %v5480
        %v5482 = vrot.slane %v2995, %v5481
        %v5483 = vlaneseq
        %v5484 = vshrl.u32 %v5483, 7
        %v5485 = vsub.s32 %v3389, %v5484
        %v5486 = vrot.slane %v2996, %v5485
        %v5487 = vsel %vm3394, %v5486, %v5482
        %v5488 = vlaneseq
        %v5489 = vshrl.u32 %v5488, 7
        %v5490 = vsub.s32 %v2871, %v5489
        %v5491 = vrot.slane %v2997, %v5490
        %v5492 = vlaneseq
        %v5493 = vshrl.u32 %v5492, 7
        %v5494 = vsub.s32 %v3389, %v5493
        %v5495 = vrot.slane %v2998, %v5494
        %v5496 = vsel %vm3394, %v5495, %v5491
        %v5497 = vlaneseq
        %v5498 = vshrl.u32 %v5497, 7
        %v5499 = vsub.s32 %v2871, %v5498
        %v5500 = vrot.slane %v2999, %v5499
        %v5501 = vlaneseq
        %v5502 = vshrl.u32 %v5501, 7
        %v5503 = vsub.s32 %v3389, %v5502
        %v5504 = vrot.slane %v3000, %v5503
        %v5505 = vsel %vm3394, %v5504, %v5500
        %v5506 = vlaneseq
        %v5507 = vshrl.u32 %v5506, 7
        %v5508 = vsub.s32 %v2871, %v5507
        %v5509 = vrot.slane %v3001, %v5508
        %v5510 = vlaneseq
        %v5511 = vshrl.u32 %v5510, 7
        %v5512 = vsub.s32 %v3389, %v5511
        %v5513 = vrot.slane %v3002, %v5512
        %v5514 = vsel %vm3394, %v5513, %v5509
        %v5515 = vlaneseq
        %v5516 = vshrl.u32 %v5515, 7
        %v5517 = vsub.s32 %v2871, %v5516
        %v5518 = vrot.slane %v3003, %v5517
        %v5519 = vlaneseq
        %v5520 = vshrl.u32 %v5519, 7
        %v5521 = vsub.s32 %v3389, %v5520
        %v5522 = vrot.slane %v3004, %v5521
        %v5523 = vsel %vm3394, %v5522, %v5518
        %v5524 = vlaneseq
        %v5525 = vshrl.u32 %v5524, 7
        %v5526 = vsub.s32 %v2871, %v5525
        %v5527 = vrot.slane %v3005, %v5526
        %v5528 = vlaneseq
        %v5529 = vshrl.u32 %v5528, 7
        %v5530 = vsub.s32 %v3389, %v5529
        %v5531 = vrot.slane %v3006, %v5530
        %v5532 = vsel %vm3394, %v5531, %v5527
        %v5533 = vlaneseq
        %v5534 = vshrl.u32 %v5533, 7
        %v5535 = vsub.s32 %v2871, %v5534
        %v5536 = vrot.slane %v3007, %v5535
        %v5537 = vlaneseq
        %v5538 = vshrl.u32 %v5537, 7
        %v5539 = vsub.s32 %v3389, %v5538
        %v5540 = vrot.slane %v3008, %v5539
        %v5541 = vsel %vm3394, %v5540, %v5536
        %v5542 = vlaneseq
        %v5543 = vshrl.u32 %v5542, 7
        %v5544 = vsub.s32 %v2871, %v5543
        %v5545 = vrot.slane %v3009, %v5544
        %v5546 = vlaneseq
        %v5547 = vshrl.u32 %v5546, 7
        %v5548 = vsub.s32 %v3389, %v5547
        %v5549 = vrot.slane %v3010, %v5548
        %v5550 = vsel %vm3394, %v5549, %v5545
        %v5551 = vlaneseq
        %v5552 = vshrl.u32 %v5551, 7
        %v5553 = vsub.s32 %v2871, %v5552
        %v5554 = vrot.slane %v3011, %v5553
        %v5555 = vlaneseq
        %v5556 = vshrl.u32 %v5555, 7
        %v5557 = vsub.s32 %v3389, %v5556
        %v5558 = vrot.slane %v3012, %v5557
        %v5559 = vsel %vm3394, %v5558, %v5554
        %v5560 = vlaneseq
        %v5561 = vshrl.u32 %v5560, 7
        %v5562 = vsub.s32 %v2871, %v5561
        %v5563 = vrot.slane %v3013, %v5562
        %v5564 = vlaneseq
        %v5565 = vshrl.u32 %v5564, 7
        %v5566 = vsub.s32 %v3389, %v5565
        %v5567 = vrot.slane %v3014, %v5566
        %v5568 = vsel %vm3394, %v5567, %v5563
        %v5569 = vlaneseq
        %v5570 = vshrl.u32 %v5569, 7
        %v5571 = vsub.s32 %v2871, %v5570
        %v5572 = vrot.slane %v3015, %v5571
        %v5573 = vlaneseq
        %v5574 = vshrl.u32 %v5573, 7
        %v5575 = vsub.s32 %v3389, %v5574
        %v5576 = vrot.slane %v3016, %v5575
        %v5577 = vsel %vm3394, %v5576, %v5572
        %v5578 = vlaneseq
        %v5579 = vshrl.u32 %v5578, 7
        %v5580 = vsub.s32 %v2871, %v5579
        %v5581 = vrot.slane %v3017, %v5580
        %v5582 = vlaneseq
        %v5583 = vshrl.u32 %v5582, 7
        %v5584 = vsub.s32 %v3389, %v5583
        %v5585 = vrot.slane %v3018, %v5584
        %v5586 = vsel %vm3394, %v5585, %v5581
        %v5587 = vlaneseq
        %v5588 = vshrl.u32 %v5587, 7
        %v5589 = vsub.s32 %v2871, %v5588
        %v5590 = vrot.slane %v3019, %v5589
        %v5591 = vlaneseq
        %v5592 = vshrl.u32 %v5591, 7
        %v5593 = vsub.s32 %v3389, %v5592
        %v5594 = vrot.slane %v3020, %v5593
        %v5595 = vsel %vm3394, %v5594, %v5590
        %v5596 = vlaneseq
        %v5597 = vshrl.u32 %v5596, 7
        %v5598 = vsub.s32 %v2871, %v5597
        %v5599 = vrot.slane %v3021, %v5598
        %v5600 = vlaneseq
        %v5601 = vshrl.u32 %v5600, 7
        %v5602 = vsub.s32 %v3389, %v5601
        %v5603 = vrot.slane %v3022, %v5602
        %v5604 = vsel %vm3394, %v5603, %v5599
        %v5605 = vlaneseq
        %v5606 = vshrl.u32 %v5605, 7
        %v5607 = vsub.s32 %v2871, %v5606
        %v5608 = vrot.slane %v3023, %v5607
        %v5609 = vlaneseq
        %v5610 = vshrl.u32 %v5609, 7
        %v5611 = vsub.s32 %v3389, %v5610
        %v5612 = vrot.slane %v3024, %v5611
        %v5613 = vsel %vm3394, %v5612, %v5608
        %v5614 = vlaneseq
        %v5615 = vshrl.u32 %v5614, 7
        %v5616 = vsub.s32 %v2871, %v5615
        %v5617 = vrot.slane %v3025, %v5616
        %v5618 = vlaneseq
        %v5619 = vshrl.u32 %v5618, 7
        %v5620 = vsub.s32 %v3389, %v5619
        %v5621 = vrot.slane %v3026, %v5620
        %v5622 = vsel %vm3394, %v5621, %v5617
        %v5623 = vlaneseq
        %v5624 = vshrl.u32 %v5623, 7
        %v5625 = vsub.s32 %v2871, %v5624
        %v5626 = vrot.slane %v3027, %v5625
        %v5627 = vlaneseq
        %v5628 = vshrl.u32 %v5627, 7
        %v5629 = vsub.s32 %v3389, %v5628
        %v5630 = vrot.slane %v3028, %v5629
        %v5631 = vsel %vm3394, %v5630, %v5626
        %v5632 = vlaneseq
        %v5633 = vshrl.u32 %v5632, 7
        %v5634 = vsub.s32 %v2871, %v5633
        %v5635 = vrot.slane %v3029, %v5634
        %v5636 = vlaneseq
        %v5637 = vshrl.u32 %v5636, 7
        %v5638 = vsub.s32 %v3389, %v5637
        %v5639 = vrot.slane %v3030, %v5638
        %v5640 = vsel %vm3394, %v5639, %v5635
        %v5641 = vlaneseq
        %v5642 = vshrl.u32 %v5641, 7
        %v5643 = vsub.s32 %v2871, %v5642
        %v5644 = vrot.slane %v3031, %v5643
        %v5645 = vlaneseq
        %v5646 = vshrl.u32 %v5645, 7
        %v5647 = vsub.s32 %v3389, %v5646
        %v5648 = vrot.slane %v3032, %v5647
        %v5649 = vsel %vm3394, %v5648, %v5644
        %v5650 = vlaneseq
        %v5651 = vshrl.u32 %v5650, 7
        %v5652 = vsub.s32 %v2871, %v5651
        %v5653 = vrot.slane %v3033, %v5652
        %v5654 = vlaneseq
        %v5655 = vshrl.u32 %v5654, 7
        %v5656 = vsub.s32 %v3389, %v5655
        %v5657 = vrot.slane %v3034, %v5656
        %v5658 = vsel %vm3394, %v5657, %v5653
        %v5659 = vlaneseq
        %v5660 = vshrl.u32 %v5659, 7
        %v5661 = vsub.s32 %v2871, %v5660
        %v5662 = vrot.slane %v3035, %v5661
        %v5663 = vlaneseq
        %v5664 = vshrl.u32 %v5663, 7
        %v5665 = vsub.s32 %v3389, %v5664
        %v5666 = vrot.slane %v3036, %v5665
        %v5667 = vsel %vm3394, %v5666, %v5662
        %v5668 = vlaneseq
        %v5669 = vshrl.u32 %v5668, 7
        %v5670 = vsub.s32 %v2871, %v5669
        %v5671 = vrot.slane %v3037, %v5670
        %v5672 = vlaneseq
        %v5673 = vshrl.u32 %v5672, 7
        %v5674 = vsub.s32 %v3389, %v5673
        %v5675 = vrot.slane %v3038, %v5674
        %v5676 = vsel %vm3394, %v5675, %v5671
        %v5677 = vlaneseq
        %v5678 = vshrl.u32 %v5677, 7
        %v5679 = vsub.s32 %v2871, %v5678
        %v5680 = vrot.slane %v3039, %v5679
        %v5681 = vlaneseq
        %v5682 = vshrl.u32 %v5681, 7
        %v5683 = vsub.s32 %v3389, %v5682
        %v5684 = vrot.slane %v3040, %v5683
        %v5685 = vsel %vm3394, %v5684, %v5680
        %v5686 = vlaneseq
        %v5687 = vshrl.u32 %v5686, 7
        %v5688 = vsub.s32 %v2871, %v5687
        %v5689 = vrot.slane %v3041, %v5688
        %v5690 = vlaneseq
        %v5691 = vshrl.u32 %v5690, 7
        %v5692 = vsub.s32 %v3389, %v5691
        %v5693 = vrot.slane %v3042, %v5692
        %v5694 = vsel %vm3394, %v5693, %v5689
        %v5695 = vlaneseq
        %v5696 = vshrl.u32 %v5695, 7
        %v5697 = vsub.s32 %v2871, %v5696
        %v5698 = vrot.slane %v3043, %v5697
        %v5699 = vlaneseq
        %v5700 = vshrl.u32 %v5699, 7
        %v5701 = vsub.s32 %v3389, %v5700
        %v5702 = vrot.slane %v3044, %v5701
        %v5703 = vsel %vm3394, %v5702, %v5698
        %v5704 = vlaneseq
        %v5705 = vshrl.u32 %v5704, 7
        %v5706 = vsub.s32 %v2871, %v5705
        %v5707 = vrot.slane %v3045, %v5706
        %v5708 = vlaneseq
        %v5709 = vshrl.u32 %v5708, 7
        %v5710 = vsub.s32 %v3389, %v5709
        %v5711 = vrot.slane %v3046, %v5710
        %v5712 = vsel %vm3394, %v5711, %v5707
        %v5713 = vlaneseq
        %v5714 = vshrl.u32 %v5713, 7
        %v5715 = vsub.s32 %v2871, %v5714
        %v5716 = vrot.slane %v3047, %v5715
        %v5717 = vlaneseq
        %v5718 = vshrl.u32 %v5717, 7
        %v5719 = vsub.s32 %v3389, %v5718
        %v5720 = vrot.slane %v3048, %v5719
        %v5721 = vsel %vm3394, %v5720, %v5716
        %v5722 = vlaneseq
        %v5723 = vshrl.u32 %v5722, 7
        %v5724 = vsub.s32 %v2871, %v5723
        %v5725 = vrot.slane %v3049, %v5724
        %v5726 = vlaneseq
        %v5727 = vshrl.u32 %v5726, 7
        %v5728 = vsub.s32 %v3389, %v5727
        %v5729 = vrot.slane %v3050, %v5728
        %v5730 = vsel %vm3394, %v5729, %v5725
        %v5731 = vlaneseq
        %v5732 = vshrl.u32 %v5731, 7
        %v5733 = vsub.s32 %v2871, %v5732
        %v5734 = vrot.slane %v3051, %v5733
        %v5735 = vlaneseq
        %v5736 = vshrl.u32 %v5735, 7
        %v5737 = vsub.s32 %v3389, %v5736
        %v5738 = vrot.slane %v3052, %v5737
        %v5739 = vsel %vm3394, %v5738, %v5734
        %v5740 = vlaneseq
        %v5741 = vshrl.u32 %v5740, 7
        %v5742 = vsub.s32 %v2871, %v5741
        %v5743 = vrot.slane %v3053, %v5742
        %v5744 = vlaneseq
        %v5745 = vshrl.u32 %v5744, 7
        %v5746 = vsub.s32 %v3389, %v5745
        %v5747 = vrot.slane %v3054, %v5746
        %v5748 = vsel %vm3394, %v5747, %v5743
        %v5749 = vlaneseq
        %v5750 = vshrl.u32 %v5749, 7
        %v5751 = vsub.s32 %v2871, %v5750
        %v5752 = vrot.slane %v3055, %v5751
        %v5753 = vlaneseq
        %v5754 = vshrl.u32 %v5753, 7
        %v5755 = vsub.s32 %v3389, %v5754
        %v5756 = vrot.slane %v3056, %v5755
        %v5757 = vsel %vm3394, %v5756, %v5752
        %v5758 = vlaneseq
        %v5759 = vshrl.u32 %v5758, 7
        %v5760 = vsub.s32 %v2871, %v5759
        %v5761 = vrot.slane %v3057, %v5760
        %v5762 = vlaneseq
        %v5763 = vshrl.u32 %v5762, 7
        %v5764 = vsub.s32 %v3389, %v5763
        %v5765 = vrot.slane %v3058, %v5764
        %v5766 = vsel %vm3394, %v5765, %v5761
        %v5767 = vlaneseq
        %v5768 = vshrl.u32 %v5767, 7
        %v5769 = vsub.s32 %v2871, %v5768
        %v5770 = vrot.slane %v3059, %v5769
        %v5771 = vlaneseq
        %v5772 = vshrl.u32 %v5771, 7
        %v5773 = vsub.s32 %v3389, %v5772
        %v5774 = vrot.slane %v3060, %v5773
        %v5775 = vsel %vm3394, %v5774, %v5770
        %v5776 = vlaneseq
        %v5777 = vshrl.u32 %v5776, 7
        %v5778 = vsub.s32 %v2871, %v5777
        %v5779 = vrot.slane %v3061, %v5778
        %v5780 = vlaneseq
        %v5781 = vshrl.u32 %v5780, 7
        %v5782 = vsub.s32 %v3389, %v5781
        %v5783 = vrot.slane %v3062, %v5782
        %v5784 = vsel %vm3394, %v5783, %v5779
        %v5785 = vlaneseq
        %v5786 = vshrl.u32 %v5785, 7
        %v5787 = vsub.s32 %v2871, %v5786
        %v5788 = vrot.slane %v3063, %v5787
        %v5789 = vlaneseq
        %v5790 = vshrl.u32 %v5789, 7
        %v5791 = vsub.s32 %v3389, %v5790
        %v5792 = vrot.slane %v3064, %v5791
        %v5793 = vsel %vm3394, %v5792, %v5788
        %v5794 = vlaneseq
        %v5795 = vshrl.u32 %v5794, 7
        %v5796 = vsub.s32 %v2871, %v5795
        %v5797 = vrot.slane %v3065, %v5796
        %v5798 = vlaneseq
        %v5799 = vshrl.u32 %v5798, 7
        %v5800 = vsub.s32 %v3389, %v5799
        %v5801 = vrot.slane %v3066, %v5800
        %v5802 = vsel %vm3394, %v5801, %v5797
        %v5803 = vlaneseq
        %v5804 = vshrl.u32 %v5803, 7
        %v5805 = vsub.s32 %v2871, %v5804
        %v5806 = vrot.slane %v3067, %v5805
        %v5807 = vlaneseq
        %v5808 = vshrl.u32 %v5807, 7
        %v5809 = vsub.s32 %v3389, %v5808
        %v5810 = vrot.slane %v3068, %v5809
        %v5811 = vsel %vm3394, %v5810, %v5806
        %v5812 = vlaneseq
        %v5813 = vshrl.u32 %v5812, 7
        %v5814 = vsub.s32 %v2871, %v5813
        %v5815 = vrot.slane %v3069, %v5814
        %v5816 = vlaneseq
        %v5817 = vshrl.u32 %v5816, 7
        %v5818 = vsub.s32 %v3389, %v5817
        %v5819 = vrot.slane %v3070, %v5818
        %v5820 = vsel %vm3394, %v5819, %v5815
        %v5821 = vlaneseq
        %v5822 = vshrl.u32 %v5821, 7
        %v5823 = vsub.s32 %v2871, %v5822
        %v5824 = vrot.slane %v3071, %v5823
        %v5825 = vlaneseq
        %v5826 = vshrl.u32 %v5825, 7
        %v5827 = vsub.s32 %v3389, %v5826
        %v5828 = vrot.slane %v3072, %v5827
        %v5829 = vsel %vm3394, %v5828, %v5824
        %v5830 = vlaneseq
        %v5831 = vshrl.u32 %v5830, 7
        %v5832 = vsub.s32 %v2871, %v5831
        %v5833 = vrot.slane %v3073, %v5832
        %v5834 = vlaneseq
        %v5835 = vshrl.u32 %v5834, 7
        %v5836 = vsub.s32 %v3389, %v5835
        %v5837 = vrot.slane %v3074, %v5836
        %v5838 = vsel %vm3394, %v5837, %v5833
        %v5839 = vlaneseq
        %v5840 = vshrl.u32 %v5839, 7
        %v5841 = vsub.s32 %v2871, %v5840
        %v5842 = vrot.slane %v3075, %v5841
        %v5843 = vlaneseq
        %v5844 = vshrl.u32 %v5843, 7
        %v5845 = vsub.s32 %v3389, %v5844
        %v5846 = vrot.slane %v3076, %v5845
        %v5847 = vsel %vm3394, %v5846, %v5842
        %v5848 = vlaneseq
        %v5849 = vshrl.u32 %v5848, 7
        %v5850 = vsub.s32 %v2871, %v5849
        %v5851 = vrot.slane %v3077, %v5850
        %v5852 = vlaneseq
        %v5853 = vshrl.u32 %v5852, 7
        %v5854 = vsub.s32 %v3389, %v5853
        %v5855 = vrot.slane %v3078, %v5854
        %v5856 = vsel %vm3394, %v5855, %v5851
        %v5857 = vlaneseq
        %v5858 = vshrl.u32 %v5857, 7
        %v5859 = vsub.s32 %v2871, %v5858
        %v5860 = vrot.slane %v3079, %v5859
        %v5861 = vlaneseq
        %v5862 = vshrl.u32 %v5861, 7
        %v5863 = vsub.s32 %v3389, %v5862
        %v5864 = vrot.slane %v3080, %v5863
        %v5865 = vsel %vm3394, %v5864, %v5860
        %v5866 = vlaneseq
        %v5867 = vshrl.u32 %v5866, 7
        %v5868 = vsub.s32 %v2871, %v5867
        %v5869 = vrot.slane %v3081, %v5868
        %v5870 = vlaneseq
        %v5871 = vshrl.u32 %v5870, 7
        %v5872 = vsub.s32 %v3389, %v5871
        %v5873 = vrot.slane %v3082, %v5872
        %v5874 = vsel %vm3394, %v5873, %v5869
        %v5875 = vlaneseq
        %v5876 = vshrl.u32 %v5875, 7
        %v5877 = vsub.s32 %v2871, %v5876
        %v5878 = vrot.slane %v3083, %v5877
        %v5879 = vlaneseq
        %v5880 = vshrl.u32 %v5879, 7
        %v5881 = vsub.s32 %v3389, %v5880
        %v5882 = vrot.slane %v3084, %v5881
        %v5883 = vsel %vm3394, %v5882, %v5878
        %v5884 = vlaneseq
        %v5885 = vshrl.u32 %v5884, 7
        %v5886 = vsub.s32 %v2871, %v5885
        %v5887 = vrot.slane %v3085, %v5886
        %v5888 = vlaneseq
        %v5889 = vshrl.u32 %v5888, 7
        %v5890 = vsub.s32 %v3389, %v5889
        %v5891 = vrot.slane %v3086, %v5890
        %v5892 = vsel %vm3394, %v5891, %v5887
        %v5893 = vlaneseq
        %v5894 = vshrl.u32 %v5893, 7
        %v5895 = vsub.s32 %v2871, %v5894
        %v5896 = vrot.slane %v3087, %v5895
        %v5897 = vlaneseq
        %v5898 = vshrl.u32 %v5897, 7
        %v5899 = vsub.s32 %v3389, %v5898
        %v5900 = vrot.slane %v3088, %v5899
        %v5901 = vsel %vm3394, %v5900, %v5896
        %v5902 = vlaneseq
        %v5903 = vshrl.u32 %v5902, 7
        %v5904 = vsub.s32 %v2871, %v5903
        %v5905 = vrot.slane %v3089, %v5904
        %v5906 = vlaneseq
        %v5907 = vshrl.u32 %v5906, 7
        %v5908 = vsub.s32 %v3389, %v5907
        %v5909 = vrot.slane %v3090, %v5908
        %v5910 = vsel %vm3394, %v5909, %v5905
        %v5911 = vlaneseq
        %v5912 = vshrl.u32 %v5911, 7
        %v5913 = vsub.s32 %v2871, %v5912
        %v5914 = vrot.slane %v3091, %v5913
        %v5915 = vlaneseq
        %v5916 = vshrl.u32 %v5915, 7
        %v5917 = vsub.s32 %v3389, %v5916
        %v5918 = vrot.slane %v3092, %v5917
        %v5919 = vsel %vm3394, %v5918, %v5914
        %v5920 = vlaneseq
        %v5921 = vshrl.u32 %v5920, 7
        %v5922 = vsub.s32 %v2871, %v5921
        %v5923 = vrot.slane %v3093, %v5922
        %v5924 = vlaneseq
        %v5925 = vshrl.u32 %v5924, 7
        %v5926 = vsub.s32 %v3389, %v5925
        %v5927 = vrot.slane %v3094, %v5926
        %v5928 = vsel %vm3394, %v5927, %v5923
        %v5929 = vlaneseq
        %v5930 = vshrl.u32 %v5929, 7
        %v5931 = vsub.s32 %v2871, %v5930
        %v5932 = vrot.slane %v3095, %v5931
        %v5933 = vlaneseq
        %v5934 = vshrl.u32 %v5933, 7
        %v5935 = vsub.s32 %v3389, %v5934
        %v5936 = vrot.slane %v3096, %v5935
        %v5937 = vsel %vm3394, %v5936, %v5932
        %v5938 = vlaneseq
        %v5939 = vshrl.u32 %v5938, 7
        %v5940 = vsub.s32 %v2871, %v5939
        %v5941 = vrot.slane %v3097, %v5940
        %v5942 = vlaneseq
        %v5943 = vshrl.u32 %v5942, 7
        %v5944 = vsub.s32 %v3389, %v5943
        %v5945 = vrot.slane %v3098, %v5944
        %v5946 = vsel %vm3394, %v5945, %v5941
        %v5947 = vlaneseq
        %v5948 = vshrl.u32 %v5947, 7
        %v5949 = vsub.s32 %v2871, %v5948
        %v5950 = vrot.slane %v3099, %v5949
        %v5951 = vlaneseq
        %v5952 = vshrl.u32 %v5951, 7
        %v5953 = vsub.s32 %v3389, %v5952
        %v5954 = vrot.slane %v3100, %v5953
        %v5955 = vsel %vm3394, %v5954, %v5950
        %v5956 = vlaneseq
        %v5957 = vshrl.u32 %v5956, 7
        %v5958 = vsub.s32 %v2871, %v5957
        %v5959 = vrot.slane %v3101, %v5958
        %v5960 = vlaneseq
        %v5961 = vshrl.u32 %v5960, 7
        %v5962 = vsub.s32 %v3389, %v5961
        %v5963 = vrot.slane %v3102, %v5962
        %v5964 = vsel %vm3394, %v5963, %v5959
        %v5965 = vlaneseq
        %v5966 = vshrl.u32 %v5965, 7
        %v5967 = vsub.s32 %v2871, %v5966
        %v5968 = vrot.slane %v3103, %v5967
        %v5969 = vlaneseq
        %v5970 = vshrl.u32 %v5969, 7
        %v5971 = vsub.s32 %v3389, %v5970
        %v5972 = vrot.slane %v3104, %v5971
        %v5973 = vsel %vm3394, %v5972, %v5968
        %v5974 = vlaneseq
        %v5975 = vshrl.u32 %v5974, 7
        %v5976 = vsub.s32 %v2871, %v5975
        %v5977 = vrot.slane %v3105, %v5976
        %v5978 = vlaneseq
        %v5979 = vshrl.u32 %v5978, 7
        %v5980 = vsub.s32 %v3389, %v5979
        %v5981 = vrot.slane %v3106, %v5980
        %v5982 = vsel %vm3394, %v5981, %v5977
        %v5983 = vlaneseq
        %v5984 = vshrl.u32 %v5983, 7
        %v5985 = vsub.s32 %v2871, %v5984
        %v5986 = vrot.slane %v3107, %v5985
        %v5987 = vlaneseq
        %v5988 = vshrl.u32 %v5987, 7
        %v5989 = vsub.s32 %v3389, %v5988
        %v5990 = vrot.slane %v3108, %v5989
        %v5991 = vsel %vm3394, %v5990, %v5986
        %v5992 = vlaneseq
        %v5993 = vshrl.u32 %v5992, 7
        %v5994 = vsub.s32 %v2871, %v5993
        %v5995 = vrot.slane %v3109, %v5994
        %v5996 = vlaneseq
        %v5997 = vshrl.u32 %v5996, 7
        %v5998 = vsub.s32 %v3389, %v5997
        %v5999 = vrot.slane %v3110, %v5998
        %v6000 = vsel %vm3394, %v5999, %v5995
        %v6001 = vlaneseq
        %v6002 = vshrl.u32 %v6001, 7
        %v6003 = vsub.s32 %v2871, %v6002
        %v6004 = vrot.slane %v3111, %v6003
        %v6005 = vlaneseq
        %v6006 = vshrl.u32 %v6005, 7
        %v6007 = vsub.s32 %v3389, %v6006
        %v6008 = vrot.slane %v3112, %v6007
        %v6009 = vsel %vm3394, %v6008, %v6004
        %v6010 = vlaneseq
        %v6011 = vshrl.u32 %v6010, 7
        %v6012 = vsub.s32 %v2871, %v6011
        %v6013 = vrot.slane %v3113, %v6012
        %v6014 = vlaneseq
        %v6015 = vshrl.u32 %v6014, 7
        %v6016 = vsub.s32 %v3389, %v6015
        %v6017 = vrot.slane %v3114, %v6016
        %v6018 = vsel %vm3394, %v6017, %v6013
        %v6019 = vlaneseq
        %v6020 = vshrl.u32 %v6019, 7
        %v6021 = vsub.s32 %v2871, %v6020
        %v6022 = vrot.slane %v3115, %v6021
        %v6023 = vlaneseq
        %v6024 = vshrl.u32 %v6023, 7
        %v6025 = vsub.s32 %v3389, %v6024
        %v6026 = vrot.slane %v3116, %v6025
        %v6027 = vsel %vm3394, %v6026, %v6022
        %v6028 = vlaneseq
        %v6029 = vshrl.u32 %v6028, 7
        %v6030 = vsub.s32 %v2871, %v6029
        %v6031 = vrot.slane %v3117, %v6030
        %v6032 = vlaneseq
        %v6033 = vshrl.u32 %v6032, 7
        %v6034 = vsub.s32 %v3389, %v6033
        %v6035 = vrot.slane %v3118, %v6034
        %v6036 = vsel %vm3394, %v6035, %v6031
        %v6037 = vlaneseq
        %v6038 = vshrl.u32 %v6037, 7
        %v6039 = vsub.s32 %v2871, %v6038
        %v6040 = vrot.slane %v3119, %v6039
        %v6041 = vlaneseq
        %v6042 = vshrl.u32 %v6041, 7
        %v6043 = vsub.s32 %v3389, %v6042
        %v6044 = vrot.slane %v3120, %v6043
        %v6045 = vsel %vm3394, %v6044, %v6040
        %v6046 = vlaneseq
        %v6047 = vshrl.u32 %v6046, 7
        %v6048 = vsub.s32 %v2871, %v6047
        %v6049 = vrot.slane %v3121, %v6048
        %v6050 = vlaneseq
        %v6051 = vshrl.u32 %v6050, 7
        %v6052 = vsub.s32 %v3389, %v6051
        %v6053 = vrot.slane %v3122, %v6052
        %v6054 = vsel %vm3394, %v6053, %v6049
        %v6055 = vlaneseq
        %v6056 = vshrl.u32 %v6055, 7
        %v6057 = vsub.s32 %v2871, %v6056
        %v6058 = vrot.slane %v3123, %v6057
        %v6059 = vlaneseq
        %v6060 = vshrl.u32 %v6059, 7
        %v6061 = vsub.s32 %v3389, %v6060
        %v6062 = vrot.slane %v3124, %v6061
        %v6063 = vsel %vm3394, %v6062, %v6058
        %v6064 = vlaneseq
        %v6065 = vshrl.u32 %v6064, 7
        %v6066 = vsub.s32 %v2871, %v6065
        %v6067 = vrot.slane %v3125, %v6066
        %v6068 = vlaneseq
        %v6069 = vshrl.u32 %v6068, 7
        %v6070 = vsub.s32 %v3389, %v6069
        %v6071 = vrot.slane %v3126, %v6070
        %v6072 = vsel %vm3394, %v6071, %v6067
        %v6073 = vlaneseq
        %v6074 = vshrl.u32 %v6073, 7
        %v6075 = vsub.s32 %v2871, %v6074
        %v6076 = vrot.slane %v3127, %v6075
        %v6077 = vlaneseq
        %v6078 = vshrl.u32 %v6077, 7
        %v6079 = vsub.s32 %v3389, %v6078
        %v6080 = vrot.slane %v3128, %v6079
        %v6081 = vsel %vm3394, %v6080, %v6076
        %v6082 = vsel %vm4539, %v4947, %v4938
        %v6083 = vsel %vm4541, %v4956, %v6082
        %v6084 = vsel %vm4543, %v4965, %v6083
        %v6085 = vsel %vm4545, %v4974, %v6084
        %v6086 = vsel %vm4547, %v4983, %v6085
        %v6087 = vsel %vm4549, %v4992, %v6086
        %v6088 = vsel %vm4551, %v5001, %v6087
        %v6089 = vsel %vm4539, %v5019, %v5010
        %v6090 = vsel %vm4541, %v5028, %v6089
        %v6091 = vsel %vm4543, %v5037, %v6090
        %v6092 = vsel %vm4545, %v5046, %v6091
        %v6093 = vsel %vm4547, %v5055, %v6092
        %v6094 = vsel %vm4549, %v5064, %v6093
        %v6095 = vsel %vm4551, %v5073, %v6094
        %v6096 = vsel %vm4539, %v5091, %v5082
        %v6097 = vsel %vm4541, %v5100, %v6096
        %v6098 = vsel %vm4543, %v5109, %v6097
        %v6099 = vsel %vm4545, %v5118, %v6098
        %v6100 = vsel %vm4547, %v5127, %v6099
        %v6101 = vsel %vm4549, %v5136, %v6100
        %v6102 = vsel %vm4551, %v5145, %v6101
        %v6103 = vsel %vm4539, %v5163, %v5154
        %v6104 = vsel %vm4541, %v5172, %v6103
        %v6105 = vsel %vm4543, %v5181, %v6104
        %v6106 = vsel %vm4545, %v5190, %v6105
        %v6107 = vsel %vm4547, %v5199, %v6106
        %v6108 = vsel %vm4549, %v5208, %v6107
        %v6109 = vsel %vm4551, %v5217, %v6108
        %v6110 = vsel %vm4539, %v5235, %v5226
        %v6111 = vsel %vm4541, %v5244, %v6110
        %v6112 = vsel %vm4543, %v5253, %v6111
        %v6113 = vsel %vm4545, %v5262, %v6112
        %v6114 = vsel %vm4547, %v5271, %v6113
        %v6115 = vsel %vm4549, %v5280, %v6114
        %v6116 = vsel %vm4551, %v5289, %v6115
        %v6117 = vsel %vm4539, %v5307, %v5298
        %v6118 = vsel %vm4541, %v5316, %v6117
        %v6119 = vsel %vm4543, %v5325, %v6118
        %v6120 = vsel %vm4545, %v5334, %v6119
        %v6121 = vsel %vm4547, %v5343, %v6120
        %v6122 = vsel %vm4549, %v5352, %v6121
        %v6123 = vsel %vm4551, %v5361, %v6122
        %v6124 = vsel %vm4539, %v5379, %v5370
        %v6125 = vsel %vm4541, %v5388, %v6124
        %v6126 = vsel %vm4543, %v5397, %v6125
        %v6127 = vsel %vm4545, %v5406, %v6126
        %v6128 = vsel %vm4547, %v5415, %v6127
        %v6129 = vsel %vm4549, %v5424, %v6128
        %v6130 = vsel %vm4551, %v5433, %v6129
        %v6131 = vsel %vm4539, %v5451, %v5442
        %v6132 = vsel %vm4541, %v5460, %v6131
        %v6133 = vsel %vm4543, %v5469, %v6132
        %v6134 = vsel %vm4545, %v5478, %v6133
        %v6135 = vsel %vm4547, %v5487, %v6134
        %v6136 = vsel %vm4549, %v5496, %v6135
        %v6137 = vsel %vm4551, %v5505, %v6136
        %v6138 = vsel %vm4539, %v5523, %v5514
        %v6139 = vsel %vm4541, %v5532, %v6138
        %v6140 = vsel %vm4543, %v5541, %v6139
        %v6141 = vsel %vm4545, %v5550, %v6140
        %v6142 = vsel %vm4547, %v5559, %v6141
        %v6143 = vsel %vm4549, %v5568, %v6142
        %v6144 = vsel %vm4551, %v5577, %v6143
        %v6145 = vsel %vm4539, %v5595, %v5586
        %v6146 = vsel %vm4541, %v5604, %v6145
        %v6147 = vsel %vm4543, %v5613, %v6146
        %v6148 = vsel %vm4545, %v5622, %v6147
        %v6149 = vsel %vm4547, %v5631, %v6148
        %v6150 = vsel %vm4549, %v5640, %v6149
        %v6151 = vsel %vm4551, %v5649, %v6150
        %v6152 = vsel %vm4539, %v5667, %v5658
        %v6153 = vsel %vm4541, %v5676, %v6152
        %v6154 = vsel %vm4543, %v5685, %v6153
        %v6155 = vsel %vm4545, %v5694, %v6154
        %v6156 = vsel %vm4547, %v5703, %v6155
        %v6157 = vsel %vm4549, %v5712, %v6156
        %v6158 = vsel %vm4551, %v5721, %v6157
        %v6159 = vsel %vm4539, %v5739, %v5730
        %v6160 = vsel %vm4541, %v5748, %v6159
        %v6161 = vsel %vm4543, %v5757, %v6160
        %v6162 = vsel %vm4545, %v5766, %v6161
        %v6163 = vsel %vm4547, %v5775, %v6162
        %v6164 = vsel %vm4549, %v5784, %v6163
        %v6165 = vsel %vm4551, %v5793, %v6164
        %v6166 = vsel %vm4539, %v5811, %v5802
        %v6167 = vsel %vm4541, %v5820, %v6166
        %v6168 = vsel %vm4543, %v5829, %v6167
        %v6169 = vsel %vm4545, %v5838, %v6168
        %v6170 = vsel %vm4547, %v5847, %v6169
        %v6171 = vsel %vm4549, %v5856, %v6170
        %v6172 = vsel %vm4551, %v5865, %v6171
        %v6173 = vsel %vm4539, %v5883, %v5874
        %v6174 = vsel %vm4541, %v5892, %v6173
        %v6175 = vsel %vm4543, %v5901, %v6174
        %v6176 = vsel %vm4545, %v5910, %v6175
        %v6177 = vsel %vm4547, %v5919, %v6176
        %v6178 = vsel %vm4549, %v5928, %v6177
        %v6179 = vsel %vm4551, %v5937, %v6178
        %v6180 = vsel %vm4539, %v5955, %v5946
        %v6181 = vsel %vm4541, %v5964, %v6180
        %v6182 = vsel %vm4543, %v5973, %v6181
        %v6183 = vsel %vm4545, %v5982, %v6182
        %v6184 = vsel %vm4547, %v5991, %v6183
        %v6185 = vsel %vm4549, %v6000, %v6184
        %v6186 = vsel %vm4551, %v6009, %v6185
        %v6187 = vsel %vm4539, %v6027, %v6018
        %v6188 = vsel %vm4541, %v6036, %v6187
        %v6189 = vsel %vm4543, %v6045, %v6188
        %v6190 = vsel %vm4545, %v6054, %v6189
        %v6191 = vsel %vm4547, %v6063, %v6190
        %v6192 = vsel %vm4549, %v6072, %v6191
        %v6193 = vsel %vm4551, %v6081, %v6192
        %v6210 = vsel %vm2872, %v4552, %v6088
        %v6211 = vsel %vm2872, %v4559, %v6095
        %v6212 = vsel %vm2872, %v4566, %v6102
        %v6213 = vsel %vm2872, %v4573, %v6109
        %v6214 = vsel %vm2872, %v4580, %v6116
        %v6215 = vsel %vm2872, %v4587, %v6123
        %v6216 = vsel %vm2872, %v4594, %v6130
        %v6217 = vsel %vm2872, %v4601, %v6137
        %v6218 = vsel %vm2872, %v4608, %v6144
        %v6219 = vsel %vm2872, %v4615, %v6151
        %v6220 = vsel %vm2872, %v4622, %v6158
        %v6221 = vsel %vm2872, %v4629, %v6165
        %v6222 = vsel %vm2872, %v4636, %v6172
        %v6223 = vsel %vm2872, %v4643, %v6179
        %v6224 = vsel %vm2872, %v4650, %v6186
        %v6225 = vsel %vm2872, %v4657, %v6193
        %v6226 = vmax.f32 %v6210, -2.0
        %v6227 = vmax.f32 %v6211, -2.0
        %v6228 = vmax.f32 %v6212, -2.0
        %v6229 = vmax.f32 %v6213, -2.0
        %v6230 = vmax.f32 %v6214, -2.0
        %v6231 = vmax.f32 %v6215, -2.0
        %v6232 = vmax.f32 %v6216, -2.0
        %v6233 = vmax.f32 %v6217, -2.0
        %v6234 = vmax.f32 %v6218, -2.0
        %v6235 = vmax.f32 %v6219, -2.0
        %v6236 = vmax.f32 %v6220, -2.0
        %v6237 = vmax.f32 %v6221, -2.0
        %v6238 = vmax.f32 %v6222, -2.0
        %v6239 = vmax.f32 %v6223, -2.0
        %v6240 = vmax.f32 %v6224, -2.0
        %v6241 = vmax.f32 %v6225, -2.0
        %v6242 = vmin.f32 %v6226, 2.0
        %v6243 = vmin.f32 %v6227, 2.0
        %v6244 = vmin.f32 %v6228, 2.0
        %v6245 = vmin.f32 %v6229, 2.0
        %v6246 = vmin.f32 %v6230, 2.0
        %v6247 = vmin.f32 %v6231, 2.0
        %v6248 = vmin.f32 %v6232, 2.0
        %v6249 = vmin.f32 %v6233, 2.0
        %v6250 = vmin.f32 %v6234, 2.0
        %v6251 = vmin.f32 %v6235, 2.0
        %v6252 = vmin.f32 %v6236, 2.0
        %v6253 = vmin.f32 %v6237, 2.0
        %v6254 = vmin.f32 %v6238, 2.0
        %v6255 = vmin.f32 %v6239, 2.0
        %v6256 = vmin.f32 %v6240, 2.0
        %v6257 = vmin.f32 %v6241, 2.0
        %v6258 = vand.u32 2147483647, %v6242
        %v6259 = vand.u32 2147483647, %v6243
        %v6260 = vand.u32 2147483647, %v6244
        %v6261 = vand.u32 2147483647, %v6245
        %v6262 = vand.u32 2147483647, %v6246
        %v6263 = vand.u32 2147483647, %v6247
        %v6264 = vand.u32 2147483647, %v6248
        %v6265 = vand.u32 2147483647, %v6249
        %v6266 = vand.u32 2147483647, %v6250
        %v6267 = vand.u32 2147483647, %v6251
        %v6268 = vand.u32 2147483647, %v6252
        %v6269 = vand.u32 2147483647, %v6253
        %v6270 = vand.u32 2147483647, %v6254
        %v6271 = vand.u32 2147483647, %v6255
        %v6272 = vand.u32 2147483647, %v6256
        %v6273 = vand.u32 2147483647, %v6257
        %v6274 = vsub.f32 0.0, %v6258
        %v6275 = vsub.f32 0.0, %v6259
        %v6276 = vsub.f32 0.0, %v6260
        %v6277 = vsub.f32 0.0, %v6261
        %v6278 = vsub.f32 0.0, %v6262
        %v6279 = vsub.f32 0.0, %v6263
        %v6280 = vsub.f32 0.0, %v6264
        %v6281 = vsub.f32 0.0, %v6265
        %v6282 = vsub.f32 0.0, %v6266
        %v6283 = vsub.f32 0.0, %v6267
        %v6284 = vsub.f32 0.0, %v6268
        %v6285 = vsub.f32 0.0, %v6269
        %v6286 = vsub.f32 0.0, %v6270
        %v6287 = vsub.f32 0.0, %v6271
        %v6288 = vsub.f32 0.0, %v6272
        %v6289 = vsub.f32 0.0, %v6273
        %v6290 = vmul.f32 %v6274, 1.442695
        %v6291 = vpow.pop %v6290
        %v6292 = vmul.f32 %v6275, 1.442695
        %v6293 = vpow.pop %v6292
        %v6294 = vmul.f32 %v6276, 1.442695
        %v6295 = vpow.pop %v6294
        %v6296 = vmul.f32 %v6277, 1.442695
        %v6297 = vpow.pop %v6296
        %v6298 = vmul.f32 %v6278, 1.442695
        %v6299 = vpow.pop %v6298
        %v6300 = vmul.f32 %v6279, 1.442695
        %v6301 = vpow.pop %v6300
        %v6302 = vmul.f32 %v6280, 1.442695
        %v6303 = vpow.pop %v6302
        %v6304 = vmul.f32 %v6281, 1.442695
        %v6305 = vpow.pop %v6304
        %v6306 = vmul.f32 %v6282, 1.442695
        %v6307 = vpow.pop %v6306
        %v6308 = vmul.f32 %v6283, 1.442695
        %v6309 = vpow.pop %v6308
        %v6310 = vmul.f32 %v6284, 1.442695
        %v6311 = vpow.pop %v6310
        %v6312 = vmul.f32 %v6285, 1.442695
        %v6313 = vpow.pop %v6312
        %v6314 = vmul.f32 %v6286, 1.442695
        %v6315 = vpow.pop %v6314
        %v6316 = vmul.f32 %v6287, 1.442695
        %v6317 = vpow.pop %v6316
        %v6318 = vmul.f32 %v6288, 1.442695
        %v6319 = vpow.pop %v6318
        %v6320 = vmul.f32 %v6289, 1.442695
        %v6321 = vpow.pop %v6320
        %v6322 = vadd.f32 %v6291, 1.0
        %v6323 = vadd.f32 %v6293, 1.0
        %v6324 = vadd.f32 %v6295, 1.0
        %v6325 = vadd.f32 %v6297, 1.0
        %v6326 = vadd.f32 %v6299, 1.0
        %v6327 = vadd.f32 %v6301, 1.0
        %v6328 = vadd.f32 %v6303, 1.0
        %v6329 = vadd.f32 %v6305, 1.0
        %v6330 = vadd.f32 %v6307, 1.0
        %v6331 = vadd.f32 %v6309, 1.0
        %v6332 = vadd.f32 %v6311, 1.0
        %v6333 = vadd.f32 %v6313, 1.0
        %v6334 = vadd.f32 %v6315, 1.0
        %v6335 = vadd.f32 %v6317, 1.0
        %v6336 = vadd.f32 %v6319, 1.0
        %v6337 = vadd.f32 %v6321, 1.0
        %v6338 = vlog2.pop %v6322
        %v6339 = vmul.f32 %v6338, 0.6931472
        %v6340 = vlog2.pop %v6323
        %v6341 = vmul.f32 %v6340, 0.6931472
        %v6342 = vlog2.pop %v6324
        %v6343 = vmul.f32 %v6342, 0.6931472
        %v6344 = vlog2.pop %v6325
        %v6345 = vmul.f32 %v6344, 0.6931472
        %v6346 = vlog2.pop %v6326
        %v6347 = vmul.f32 %v6346, 0.6931472
        %v6348 = vlog2.pop %v6327
        %v6349 = vmul.f32 %v6348, 0.6931472
        %v6350 = vlog2.pop %v6328
        %v6351 = vmul.f32 %v6350, 0.6931472
        %v6352 = vlog2.pop %v6329
        %v6353 = vmul.f32 %v6352, 0.6931472
        %v6354 = vlog2.pop %v6330
        %v6355 = vmul.f32 %v6354, 0.6931472
        %v6356 = vlog2.pop %v6331
        %v6357 = vmul.f32 %v6356, 0.6931472
        %v6358 = vlog2.pop %v6332
        %v6359 = vmul.f32 %v6358, 0.6931472
        %v6360 = vlog2.pop %v6333
        %v6361 = vmul.f32 %v6360, 0.6931472
        %v6362 = vlog2.pop %v6334
        %v6363 = vmul.f32 %v6362, 0.6931472
        %v6364 = vlog2.pop %v6335
        %v6365 = vmul.f32 %v6364, 0.6931472
        %v6366 = vlog2.pop %v6336
        %v6367 = vmul.f32 %v6366, 0.6931472
        %v6368 = vlog2.pop %v6337
        %v6369 = vmul.f32 %v6368, 0.6931472
        %v6370 = vmin.f32 %v6242, 0.0
        %v6371 = vmin.f32 %v6243, 0.0
        %v6372 = vmin.f32 %v6244, 0.0
        %v6373 = vmin.f32 %v6245, 0.0
        %v6374 = vmin.f32 %v6246, 0.0
        %v6375 = vmin.f32 %v6247, 0.0
        %v6376 = vmin.f32 %v6248, 0.0
        %v6377 = vmin.f32 %v6249, 0.0
        %v6378 = vmin.f32 %v6250, 0.0
        %v6379 = vmin.f32 %v6251, 0.0
        %v6380 = vmin.f32 %v6252, 0.0
        %v6381 = vmin.f32 %v6253, 0.0
        %v6382 = vmin.f32 %v6254, 0.0
        %v6383 = vmin.f32 %v6255, 0.0
        %v6384 = vmin.f32 %v6256, 0.0
        %v6385 = vmin.f32 %v6257, 0.0
        %v6386 = vsub.f32 %v6339, %v6370
        %v6387 = vsub.f32 %v6341, %v6371
        %v6388 = vsub.f32 %v6343, %v6372
        %v6389 = vsub.f32 %v6345, %v6373
        %v6390 = vsub.f32 %v6347, %v6374
        %v6391 = vsub.f32 %v6349, %v6375
        %v6392 = vsub.f32 %v6351, %v6376
        %v6393 = vsub.f32 %v6353, %v6377
        %v6394 = vsub.f32 %v6355, %v6378
        %v6395 = vsub.f32 %v6357, %v6379
        %v6396 = vsub.f32 %v6359, %v6380
        %v6397 = vsub.f32 %v6361, %v6381
        %v6398 = vsub.f32 %v6363, %v6382
        %v6399 = vsub.f32 %v6365, %v6383
        %v6400 = vsub.f32 %v6367, %v6384
        %v6401 = vsub.f32 %v6369, %v6385
        %vm6402 = vcmask 72704
        %v6403 = vsel %vm6402, %v6386, 0.0
        %6404 = vadd.xlane.f32.xlu0 %v6403
        %v6405 = vpop.xlane.xlu0 %6404
        %v6406 = vsel %vm6402, %v6387, 0.0
        %6407 = vadd.xlane.f32.xlu0 %v6406
        %v6408 = vpop.xlane.xlu0 %6407
        %v6409 = vsel %vm6402, %v6388, 0.0
        %6410 = vadd.xlane.f32.xlu0 %v6409
        %v6411 = vpop.xlane.xlu0 %6410
        %v6412 = vsel %vm6402, %v6389, 0.0
        %6413 = vadd.xlane.f32.xlu0 %v6412
        %v6414 = vpop.xlane.xlu0 %6413
        %v6415 = vsel %vm6402, %v6390, 0.0
        %6416 = vadd.xlane.f32.xlu0 %v6415
        %v6417 = vpop.xlane.xlu0 %6416
        %v6418 = vsel %vm6402, %v6391, 0.0
        %6419 = vadd.xlane.f32.xlu0 %v6418
        %v6420 = vpop.xlane.xlu0 %6419
        %v6421 = vsel %vm6402, %v6392, 0.0
        %6422 = vadd.xlane.f32.xlu0 %v6421
        %v6423 = vpop.xlane.xlu0 %6422
        %v6424 = vsel %vm6402, %v6393, 0.0
        %6425 = vadd.xlane.f32.xlu0 %v6424
        %v6426 = vpop.xlane.xlu0 %6425
        %v6427 = vsel %vm6402, %v6394, 0.0
        %6428 = vadd.xlane.f32.xlu0 %v6427
        %v6429 = vpop.xlane.xlu0 %6428
        %v6430 = vsel %vm6402, %v6395, 0.0
        %6431 = vadd.xlane.f32.xlu0 %v6430
        %v6432 = vpop.xlane.xlu0 %6431
        %v6433 = vsel %vm6402, %v6396, 0.0
        %6434 = vadd.xlane.f32.xlu0 %v6433
        %v6435 = vpop.xlane.xlu0 %6434
        %v6436 = vsel %vm6402, %v6397, 0.0
        %6437 = vadd.xlane.f32.xlu0 %v6436
        %v6438 = vpop.xlane.xlu0 %6437
        %v6439 = vsel %vm6402, %v6398, 0.0
        %6440 = vadd.xlane.f32.xlu0 %v6439
        %v6441 = vpop.xlane.xlu0 %6440
        %v6442 = vsel %vm6402, %v6399, 0.0
        %6443 = vadd.xlane.f32.xlu0 %v6442
        %v6444 = vpop.xlane.xlu0 %6443
        %v6445 = vsel %vm6402, %v6400, 0.0
        %6446 = vadd.xlane.f32.xlu0 %v6445
        %v6447 = vpop.xlane.xlu0 %6446
        %v6448 = vsel %vm6402, %v6401, 0.0
        %6449 = vadd.xlane.f32.xlu0 %v6448
        %v6450 = vpop.xlane.xlu0 %6449
        %v6467 = vlaneseq
        %v6468 = vshrl.u32 %v6467, 7
        %v6469 = vsub.s32 %v2871, %v6468
        %v6470 = vrot.slane %v6405, %v6469
        %v6471 = vlaneseq
        %v6472 = vshrl.u32 %v6471, 7
        %v6473 = vsub.s32 %v3389, %v6472
        %v6474 = vrot.slane %v6408, %v6473
        %v6475 = vsel %vm3394, %v6474, %v6470
        %v6476 = vadd.s32 %v2871, 4294967280
        %v6477 = vlaneseq
        %v6478 = vshrl.u32 %v6477, 7
        %v6479 = vsub.s32 %v6476, %v6478
        %v6480 = vrot.slane %v6411, %v6479
        %vm6481 = vcmask 195712
        %v6482 = vsel %vm6481, %v6480, %v6475
        %v6483 = vadd.s32 %v2871, 4294967272
        %v6484 = vlaneseq
        %v6485 = vshrl.u32 %v6484, 7
        %v6486 = vsub.s32 %v6483, %v6485
        %v6487 = vrot.slane %v6414, %v6486
        %vm6488 = vcmask 261312
        %v6489 = vsel %vm6488, %v6487, %v6482
        %v6490 = vadd.s32 %v2871, 4294967264
        %v6491 = vlaneseq
        %v6492 = vshrl.u32 %v6491, 7
        %v6493 = vsub.s32 %v6490, %v6492
        %v6494 = vrot.slane %v6417, %v6493
        %vm6495 = vcmask 326912
        %v6496 = vsel %vm6495, %v6494, %v6489
        %v6497 = vadd.s32 %v2871, 4294967256
        %v6498 = vlaneseq
        %v6499 = vshrl.u32 %v6498, 7
        %v6500 = vsub.s32 %v6497, %v6499
        %v6501 = vrot.slane %v6420, %v6500
        %vm6502 = vcmask 392512
        %v6503 = vsel %vm6502, %v6501, %v6496
        %v6504 = vadd.s32 %v2871, 4294967248
        %v6505 = vlaneseq
        %v6506 = vshrl.u32 %v6505, 7
        %v6507 = vsub.s32 %v6504, %v6506
        %v6508 = vrot.slane %v6423, %v6507
        %vm6509 = vcmask 458112
        %v6510 = vsel %vm6509, %v6508, %v6503
        %v6511 = vadd.s32 %v2871, 4294967240
        %v6512 = vlaneseq
        %v6513 = vshrl.u32 %v6512, 7
        %v6514 = vsub.s32 %v6511, %v6513
        %v6515 = vrot.slane %v6426, %v6514
        %vm6516 = vcmask 523712
        %v6517 = vsel %vm6516, %v6515, %v6510
        %v6518 = vadd.s32 %v2871, 4294967232
        %v6519 = vlaneseq
        %v6520 = vshrl.u32 %v6519, 7
        %v6521 = vsub.s32 %v6518, %v6520
        %v6522 = vrot.slane %v6429, %v6521
        %vm6523 = vcmask 589312
        %v6524 = vsel %vm6523, %v6522, %v6517
        %v6525 = vadd.s32 %v2871, 4294967224
        %v6526 = vlaneseq
        %v6527 = vshrl.u32 %v6526, 7
        %v6528 = vsub.s32 %v6525, %v6527
        %v6529 = vrot.slane %v6432, %v6528
        %vm6530 = vcmask 654912
        %v6531 = vsel %vm6530, %v6529, %v6524
        %v6532 = vadd.s32 %v2871, 4294967216
        %v6533 = vlaneseq
        %v6534 = vshrl.u32 %v6533, 7
        %v6535 = vsub.s32 %v6532, %v6534
        %v6536 = vrot.slane %v6435, %v6535
        %vm6537 = vcmask 720512
        %v6538 = vsel %vm6537, %v6536, %v6531
        %v6539 = vadd.s32 %v2871, 4294967208
        %v6540 = vlaneseq
        %v6541 = vshrl.u32 %v6540, 7
        %v6542 = vsub.s32 %v6539, %v6541
        %v6543 = vrot.slane %v6438, %v6542
        %vm6544 = vcmask 786112
        %v6545 = vsel %vm6544, %v6543, %v6538
        %v6546 = vadd.s32 %v2871, 4294967200
        %v6547 = vlaneseq
        %v6548 = vshrl.u32 %v6547, 7
        %v6549 = vsub.s32 %v6546, %v6548
        %v6550 = vrot.slane %v6441, %v6549
        %vm6551 = vcmask 851712
        %v6552 = vsel %vm6551, %v6550, %v6545
        %v6553 = vadd.s32 %v2871, 4294967192
        %v6554 = vlaneseq
        %v6555 = vshrl.u32 %v6554, 7
        %v6556 = vsub.s32 %v6553, %v6555
        %v6557 = vrot.slane %v6444, %v6556
        %vm6558 = vcmask 917312
        %v6559 = vsel %vm6558, %v6557, %v6552
        %v6560 = vadd.s32 %v2871, 4294967184
        %v6561 = vlaneseq
        %v6562 = vshrl.u32 %v6561, 7
        %v6563 = vsub.s32 %v6560, %v6562
        %v6564 = vrot.slane %v6447, %v6563
        %vm6565 = vcmask 982912
        %v6566 = vsel %vm6565, %v6564, %v6559
        %v6567 = vadd.s32 %v2871, 4294967176
        %v6568 = vlaneseq
        %v6569 = vshrl.u32 %v6568, 7
        %v6570 = vsub.s32 %v6567, %v6569
        %v6571 = vrot.slane %v6450, %v6570
        %vm6572 = vcmask 1048512
        %v6573 = vsel %vm6572, %v6571, %v6566
        %6575 = vst [vmem:[%s57] sm:$0x1] %v6573
        %s6576 = sand.u32 %s31, 1
        %s6577 = scalar_lea.sflag [#allocation10], %s6576
        %s6578 = sand.u32 %s31, 1
        %s6579 = scalar_lea.vmem [#allocation9], %s6578
        // Predicated region
        $region67: #{tpu_custom_call.1} parent=11 // pred_check
          %p6580 = pneg %p37
        $region68: #{tpu_custom_call.1} parent=11 // pred_check_branch
          %6582 = sbr.rel (%p6580) target = $region70
        $region69: #{tpu_custom_call.1} parent=11 // pred_region
          %s6584 = ssub.s32 16, 16
          %6585 = vsyncadd %s6577, %s6584
          %s6586 = smul.addr %s22, 16
          %s6587 = scalar_lea.hbm %s5, %s6586
          %s6589 = sshll.u32 %s6579, 4
          %s6590 = int_to_ptr.vmem [resolvable:$true] %s6589
          %6592 = dma.vmem_to_hbm [thread:$0]  %s6590, 16, %s6587, %s6577
        $region70: #{tpu_custom_call.1} parent=11 // pred_fallthru
          _
      $region12: #{tpu_custom_call.1} parent=5 // pred_fallthru
        _
      %p6593 = scmp.le.s32.totalorder 1, %s22
      // Predicated region
      $region71: #{tpu_custom_call.1} parent=5 // pred_check
        %p6594 = pneg %p6593
      $region72: #{tpu_custom_call.1} parent=5 // pred_check_branch
        %6596 = sbr.rel (%p6594) target = $region74
      $region73: #{tpu_custom_call.1} parent=5 // pred_region
        %s6597 = ssub.s32 %s22, 1
        // Predicated region
        $region75: #{tpu_custom_call.1} parent=73 // pred_check
          %p6598 = pneg %p43
        $region76: #{tpu_custom_call.1} parent=73 // pred_check_branch
          %6600 = sbr.rel (%p6598) target = $region78
        $region77: #{tpu_custom_call.1} parent=73 // pred_region
          %s6601 = sand.u32 %s34, 1
          %s6602 = scalar_lea.sflag [#allocation10], %s6601
          %s6603 = sand.u32 %s34, 1
          %s6604 = scalar_lea.vmem [#allocation9], %s6603
          %6605 = dma.done %s6602, 16
        $region78: #{tpu_custom_call.1} parent=73 // pred_fallthru
          _
      $region74: #{tpu_custom_call.1} parent=5 // pred_fallthru
        _
    $region6: #{tpu_custom_call.1} parent=1 // loop_footer
      %s26 = sadd.s32 1, %s22
    $region7: #{tpu_custom_call.1} parent=1 // loop_footer_branch
      %21 = sbr.rel target = $region3
    $region8: #{tpu_custom_call.1} parent=1 // loop_exit
      _
    %6606 = vsyncpa [#allocation10], 1
    %s6607 = scalar_lea.sflag [#allocation10], 1
    %6608 = vsyncpa %s6607, 1
  %6609 = vsyncmov [#allocation4]
  %s6610 = vpop.sfrf %6609
  %p6611 = scmp.eq.s32.totalorder %s6610, 0
  %p6612 = pneg %p6611
  %6614 = shalt.err (%p6612)
  %s6615 = scalar_lea.sflag [#allocation4], 1
  %6616 = vsyncmov %s6615
  %s6617 = vpop.sfrf %6616
  %p6618 = scmp.eq.s32.totalorder %s6617, 0
  %p6619 = pneg %p6618
  %6621 = shalt.err (%p6619)

</llo_original>
